<compile_context>
chip_gen: v7x
topology: tpu7x:2x2x1
jax: 0.10.0
libtpu: 0.0.40
codegen_flags: <defaults>
</compile_context>

<pallas_src>
import functools

import jax
import jax.numpy as jnp
from jax.experimental import pallas as pl
from jax.experimental.pallas import tpu as pltpu

# ------------------------- small, Seq2Seq-consistent dims -------------------------
BATCH     = 2
VID_LEN   = 8      # number of video frames
FEAT_DIM  = 64     # raw avi feature dim (4096 in the homework, shrunk)
HIDDEN    = 32     # GRU hidden size
WORD_DIM  = 32     # word embedding dim
VOCAB     = 40
VOCAB_PAD = 128    # vocab padded to a full lane width for lane-dense stores / MXU N
MAX_LEN   = 6      # decoded caption length (incl. <SOS>)

VMEM_SPEC = pl.BlockSpec(memory_space=pltpu.MemorySpace.VMEM)


# ============================ in-kernel helper math ============================

def _fused_gru(h, xg, wh, bh):
    """One GRU step with fused gate weights.

    xg : (B, 3H)  precomputed  x @ [Wir|Wiz|Win] + [bir|biz|bin]
    wh : (H, 3H)  fused  [Whr|Whz|Whn],  bh : (1, 3H)  fused  [bhr|bhz|bhn]
    PyTorch nn.GRU semantics:
      r = sigmoid(xr + hr); z = sigmoid(xz + hz); n = tanh(xn + r*hn)
      h' = (1 - z) * n + z * h
    """
    H = h.shape[1]
    hg = jnp.dot(h, wh, preferred_element_type=jnp.float32) + bh      # (B, 3H)
    r = jax.nn.sigmoid(xg[:, :H]      + hg[:, :H])
    z = jax.nn.sigmoid(xg[:, H:2 * H] + hg[:, H:2 * H])
    n = jnp.tanh(      xg[:, 2 * H:]  + r * hg[:, 2 * H:])
    return (1.0 - z) * n + z * h


def _attention_context(h, enc_tbh, enc_sc, whs_row, bf):
    """Batched attention with the collapsed (activation-free) linear chain.

    score[t,b] = [enc[t,b], h[b]] @ (W1 W2 W3 W4 wt) + folded_bias
    enc_tbh : (T, B, H) time-major encoder outputs (VMEM resident)
    enc_sc  : (T, B, 1) precomputed enc-side score (constant per decode call)
    whs_row : (1, H)    hidden-side score weights; bf : (1, 1) folded bias
    Returns the context vectors (B, H).  All reductions are over the leading
    (untiled) axis or the lane axis.
    """
    hs = jnp.sum(h * whs_row, axis=1, keepdims=True) + bf              # (B, 1)
    s = enc_sc + hs[None, :, :]                                        # (T, B, 1)
    s = s - jnp.max(s, axis=0, keepdims=True)
    e = jnp.exp(s)
    denom = jnp.sum(e, axis=0, keepdims=True)                          # (1, B, 1)
    attn = e * pl.reciprocal(denom, approx=True)                       # softmax over T
    return jnp.sum(attn * enc_tbh, axis=0)                             # (B, H)


def _log_softmax(logits):
    m = jnp.max(logits, axis=1, keepdims=True)
    s = logits - m
    lse = jnp.log(jnp.sum(jnp.exp(s), axis=1, keepdims=True))
    return s - lse


def _row_argmax(logp):
    """Greedy token per row (first max index), shape (B, 1) int32."""
    B, V = logp.shape
    lane = jax.lax.broadcasted_iota(jnp.int32, (B, V), 1)
    m = jnp.max(logp, axis=1, keepdims=True)
    return jnp.min(jnp.where(logp == m, lane, V), axis=1, keepdims=True)


def _run_encoder(x_ref, cw_ref, cb_ref, wi_ref, bi_ref, wh_ref, bh_ref, enc_scr):
    """Compress linear + full GRU recurrence; encoder outputs stay in VMEM scratch.

    x_ref   : (T*B, F)  time-major rows (row = t*B + b)
    enc_scr : (T, B, H) VMEM scratch receiving the per-step hidden states
    Returns the last hidden state (B, H).
    """
    T, B, H = enc_scr.shape
    # compress linear (nn.Dropout(0.3) is identity in this forward/eval setting).
    # TODO(synk): training-mode dropout would need an RNG mask (pltpu.prng_random_bits).
    xh = jnp.dot(x_ref[...], cw_ref[...],
                 preferred_element_type=jnp.float32) + cb_ref[...]     # (T*B, H)
    # hoisted input-side gate matmul for all timesteps at once
    xg = jnp.dot(xh, wi_ref[...],
                 preferred_element_type=jnp.float32) + bi_ref[...]     # (T*B, 3H)
    wh = wh_ref[...]
    bh = bh_ref[...]
    h = jnp.zeros((B, H), jnp.float32)
    for t in range(T):                      # static unroll; recurrence stays in vregs
        h = _fused_gru(h, xg[t * B:(t + 1) * B, :], wh, bh)
        enc_scr[t] = h
    return h


# ================================ Pallas kernels ================================

def _seq2seq_train_kernel(x_ref, tgt_ref,
                          cw_ref, cb_ref, ewi_ref, ebi_ref, ewh_ref, ebh_ref,
                          emb_ref, we_ref, whs_ref, bf_ref,
                          wie_ref, wic_ref, dbi_ref, dwh_ref, dbh_ref,
                          ow_ref, ob_ref,
                          logp_ref, pred_ref, enc_scr):
    """Whole teacher-forced forward pass (encoder + attention decoder) in one kernel.

    tgt_ref  : (steps*B, 1) int32 time-major teacher tokens
    logp_ref : (steps, B, VOCAB_PAD) log-probabilities (padded lanes)
    pred_ref : (steps, B, 1) int32 greedy predictions
    """
    steps, B, _ = logp_ref.shape
    V = emb_ref.shape[0]

    # ---------------- encoder (output never leaves VMEM) ----------------
    h = _run_encoder(x_ref, cw_ref, cb_ref, ewi_ref, ebi_ref, ewh_ref, ebh_ref, enc_scr)
    enc = enc_scr[...]                                                 # (T, B, H)
    enc_sc = jnp.sum(enc * we_ref[...], axis=2, keepdims=True)         # (T, B, 1)

    # ---- hoisted teacher embedding gather + word-side gate matmul (all steps) ----
    tgt_lanes = jax.lax.broadcasted_iota(jnp.int32, (steps * B, V), 1)
    one_hot = (tgt_lanes == tgt_ref[...]).astype(jnp.float32)          # (steps*B, V)
    emb_all = jnp.dot(one_hot, emb_ref[...], preferred_element_type=jnp.float32)
    eg_all = jnp.dot(emb_all, wie_ref[...],
                     preferred_element_type=jnp.float32) + dbi_ref[...]  # (steps*B, 3H)

    whs = whs_ref[...]
    bf = bf_ref[...]
    wic = wic_ref[...]
    dwh = dwh_ref[...]
    dbh = dbh_ref[...]
    ow = ow_ref[...]
    ob = ob_ref[...]
    for i in range(steps):                  # static unroll over caption positions
        ctx = _attention_context(h, enc, enc_sc, whs, bf)
        xg = eg_all[i * B:(i + 1) * B, :] + jnp.dot(
            ctx, wic, preferred_element_type=jnp.float32)
        h = _fused_gru(h, xg, dwh, dbh)
        logits = jnp.dot(h, ow, preferred_element_type=jnp.float32) + ob
        logp = _log_softmax(logits)
        logp_ref[i] = logp
        pred_ref[i] = _row_argmax(logp)
    # TODO(synk): scheduled-sampling coin flip driven by tr_steps is not implemented.


def _seq2seq_infer_kernel(x_ref,
                          cw_ref, cb_ref, ewi_ref, ebi_ref, ewh_ref, ebh_ref,
                          emb_ref, we_ref, whs_ref, bf_ref,
                          wie_ref, wic_ref, dbi_ref, dwh_ref, dbh_ref,
                          ow_ref, ob_ref,
                          logp_ref, pred_ref, enc_scr):
    """Whole greedy-decoding forward pass in one kernel (argmax feedback on-chip)."""
    steps, B, _ = logp_ref.shape
    V = emb_ref.shape[0]

    h = _run_encoder(x_ref, cw_ref, cb_ref, ewi_ref, ebi_ref, ewh_ref, ebh_ref, enc_scr)
    enc = enc_scr[...]                                                 # (T, B, H)
    enc_sc = jnp.sum(enc * we_ref[...], axis=2, keepdims=True)         # (T, B, 1)

    emb_tbl = emb_ref[...]                                             # (V, W) in VMEM
    whs = whs_ref[...]
    bf = bf_ref[...]
    wie = wie_ref[...]
    wic = wic_ref[...]
    dbi = dbi_ref[...]
    dwh = dwh_ref[...]
    dbh = dbh_ref[...]
    ow = ow_ref[...]
    ob = ob_ref[...]
    vocab_lanes = jax.lax.broadcasted_iota(jnp.int32, (B, V), 1)

    ids = jnp.ones((B, 1), jnp.int32)                                  # <SOS> id == 1
    for i in range(steps):
        # embedding gather as a one-hot matmul (MXU-friendly, no dynamic gather)
        one_hot = (vocab_lanes == ids).astype(jnp.float32)             # (B, V)
        emb = jnp.dot(one_hot, emb_tbl, preferred_element_type=jnp.float32)
        ctx = _attention_context(h, enc, enc_sc, whs, bf)
        xg = (jnp.dot(emb, wie, preferred_element_type=jnp.float32) +
              jnp.dot(ctx, wic, preferred_element_type=jnp.float32) + dbi)
        h = _fused_gru(h, xg, dwh, dbh)
        logits = jnp.dot(h, ow, preferred_element_type=jnp.float32) + ob
        logp = _log_softmax(logits)
        logp_ref[i] = logp
        ids = _row_argmax(logp)                                        # greedy feedback
        pred_ref[i] = ids


# ================================ parameters ================================

def _uniform(key, shape, bound):
    return jax.random.uniform(key, shape, jnp.float32, -bound, bound)


def _init_gru(ks, in_dim, hidden):
    b = 1.0 / float(hidden) ** 0.5
    g = {}
    for name, d in (('wir', in_dim), ('wiz', in_dim), ('win', in_dim),
                    ('whr', hidden), ('whz', hidden), ('whn', hidden)):
        g[name] = _uniform(next(ks), (d, hidden), b)
    for name in ('bir', 'biz', 'bin', 'bhr', 'bhz', 'bhn'):
        g[name] = _uniform(next(ks), (1, hidden), b)
    return g


def _init_attn(ks, H):
    a = {}
    b1 = 1.0 / float(2 * H) ** 0.5
    a['w1'] = _uniform(next(ks), (2 * H, H), b1)
    a['b1'] = _uniform(next(ks), (1, H), b1)
    b2 = 1.0 / float(H) ** 0.5
    for i in (2, 3, 4):
        a[f'w{i}'] = _uniform(next(ks), (H, H), b2)
        a[f'b{i}'] = _uniform(next(ks), (1, H), b2)
    a['wt'] = _uniform(next(ks), (H, 1), b2)
    return a


def init_params(key):
    """Raw per-gate / per-layer parameters (matches the PyTorch module layout)."""
    ks = iter(jax.random.split(key, 64))
    H, F, V, W = HIDDEN, FEAT_DIM, VOCAB, WORD_DIM
    p = {}
    b = 1.0 / float(F) ** 0.5
    p['enc_compress_w'] = _uniform(next(ks), (F, H), b)    # stored (in, out)
    p['enc_compress_b'] = _uniform(next(ks), (1, H), b)
    p['enc_gru'] = _init_gru(ks, in_dim=H, hidden=H)
    p['embed'] = jax.random.normal(next(ks), (V, W), jnp.float32)
    p['attn'] = _init_attn(ks, H)
    p['dec_gru'] = _init_gru(ks, in_dim=W + H, hidden=H)   # input = [word_emb, ctx]
    b = 1.0 / float(H) ** 0.5
    p['out_w'] = _uniform(next(ks), (H, V), b)
    p['out_b'] = _uniform(next(ks), (1, V), b)
    return p


def prepare_params(p):
    """One-time fusion / algebraic folding of the raw parameters for the kernels."""
    H, W, V = HIDDEN, WORD_DIM, VOCAB

    def fuse_gru(g):
        wi = jnp.concatenate([g['wir'], g['wiz'], g['win']], axis=1)   # (in, 3H)
        wh = jnp.concatenate([g['whr'], g['whz'], g['whn']], axis=1)   # (H, 3H)
        bi = jnp.concatenate([g['bir'], g['biz'], g['bin']], axis=1)   # (1, 3H)
        bh = jnp.concatenate([g['bhr'], g['bhz'], g['bhn']], axis=1)   # (1, 3H)
        return wi, wh, bi, bh

    enc_wi, enc_wh, enc_bi, enc_bh = fuse_gru(p['enc_gru'])
    dec_wi, dec_wh, dec_bi, dec_bh = fuse_gru(p['dec_gru'])

    # collapse the activation-free attention chain: score = m @ (W1 W2 W3 W4 wt) + bf
    a = p['attn']
    chain = a['w1'] @ a['w2'] @ a['w3'] @ a['w4'] @ a['wt']            # (2H, 1)
    bf = ((((a['b1'] @ a['w2'] + a['b2']) @ a['w3'] + a['b3'])
           @ a['w4'] + a['b4']) @ a['wt'])                             # (1, 1)

    # lane-dense padded output projection (padded bias -1e30 keeps log-softmax exact)
    ow = jnp.zeros((H, VOCAB_PAD), jnp.float32).at[:, :V].set(p['out_w'])
    ob = jnp.full((1, VOCAB_PAD), -1e30, jnp.float32).at[:, :V].set(p['out_b'])

    return {
        'enc_cw': p['enc_compress_w'], 'enc_cb': p['enc_compress_b'],
        'enc_wi': enc_wi, 'enc_bi': enc_bi, 'enc_wh': enc_wh, 'enc_bh': enc_bh,
        'embed': p['embed'],
        'attn_we':  chain[:H, 0].reshape(1, 1, H),   # enc-side score weights
        'attn_whs': chain[H:, 0].reshape(1, H),      # hidden-side score weights
        'attn_bf':  bf,
        'dec_wie': dec_wi[:W, :],                    # word-embedding rows of Wi
        'dec_wic': dec_wi[W:, :],                    # context rows of Wi
        'dec_bi': dec_bi, 'dec_wh': dec_wh, 'dec_bh': dec_bh,
        'out_w_pad': ow, 'out_b_pad': ob,
    }


# ================================ model forward ================================

def _forward_train(fp, avi_feat, targets):
    B, T, F = avi_feat.shape
    H = HIDDEN
    steps = targets.shape[1] - 1
    x_tm = jnp.transpose(avi_feat, (1, 0, 2)).reshape(T * B, F)        # time-major rows
    tgt_tm = jnp.transpose(targets[:, :-1].astype(jnp.int32),
                           (1, 0)).reshape(steps * B, 1)               # (steps*B, 1)
    logp_tm, pred_tm = pl.pallas_call(
        _seq2seq_train_kernel,
        out_shape=(jax.ShapeDtypeStruct((steps, B, VOCAB_PAD), jnp.float32),
                   jax.ShapeDtypeStruct((steps, B, 1), jnp.int32)),
        in_specs=[VMEM_SPEC] * 19,
        out_specs=(VMEM_SPEC, VMEM_SPEC),
        scratch_shapes=[pltpu.VMEM((T, B, H), jnp.float32)],
    )(x_tm, tgt_tm,
      fp['enc_cw'], fp['enc_cb'], fp['enc_wi'], fp['enc_bi'],
      fp['enc_wh'], fp['enc_bh'],
      fp['embed'], fp['attn_we'], fp['attn_whs'], fp['attn_bf'],
      fp['dec_wie'], fp['dec_wic'], fp['dec_bi'], fp['dec_wh'], fp['dec_bh'],
      fp['out_w_pad'], fp['out_b_pad'])
    seq_logProb = jnp.transpose(logp_tm, (1, 0, 2))[:, :, :VOCAB]      # (B, L-1, V)
    seq_predictions = jnp.transpose(pred_tm[:, :, 0], (1, 0))          # (B, L-1)
    return seq_logProb, seq_predictions


def _forward_inference(fp, avi_feat, max_len=MAX_LEN):
    B, T, F = avi_feat.shape
    H = HIDDEN
    steps = max_len - 1
    x_tm = jnp.transpose(avi_feat, (1, 0, 2)).reshape(T * B, F)        # time-major rows
    logp_tm, pred_tm = pl.pallas_call(
        _seq2seq_infer_kernel,
        out_shape=(jax.ShapeDtypeStruct((steps, B, VOCAB_PAD), jnp.float32),
                   jax.ShapeDtypeStruct((steps, B, 1), jnp.int32)),
        in_specs=[VMEM_SPEC] * 18,
        out_specs=(VMEM_SPEC, VMEM_SPEC),
        scratch_shapes=[pltpu.VMEM((T, B, H), jnp.float32)],
    )(x_tm,
      fp['enc_cw'], fp['enc_cb'], fp['enc_wi'], fp['enc_bi'],
      fp['enc_wh'], fp['enc_bh'],
      fp['embed'], fp['attn_we'], fp['attn_whs'], fp['attn_bf'],
      fp['dec_wie'], fp['dec_wic'], fp['dec_bi'], fp['dec_wh'], fp['dec_bh'],
      fp['out_w_pad'], fp['out_b_pad'])
    seq_logProb = jnp.transpose(logp_tm, (1, 0, 2))[:, :, :VOCAB]      # (B, L-1, V)
    seq_predictions = jnp.transpose(pred_tm[:, :, 0], (1, 0))          # (B, L-1)
    return seq_logProb, seq_predictions


@functools.partial(jax.jit, static_argnames=('mode',))
def models_forward(fp, avi_feat, mode, target_sentences=None, tr_steps=None):
    """Pallas equivalent of Models.forward(avi_feat, mode, target_sentences, tr_steps)."""
    del tr_steps  # TODO(synk): scheduled-sampling coin flip driven by tr_steps ignored.
    if mode == 'train':
        return _forward_train(fp, avi_feat, target_sentences)
    elif mode == 'inference':
        return _forward_inference(fp, avi_feat)
    else:
        raise ValueError(mode)


# ================================ demo ================================

if __name__ == "__main__":
    key = jax.random.PRNGKey(0)
    pkey, dkey, tkey = jax.random.split(key, 3)

    params = init_params(pkey)
    fused = prepare_params(params)

    avi_feat = jax.random.normal(dkey, (BATCH, VID_LEN, FEAT_DIM), jnp.float32)
    target_sentences = jax.random.randint(tkey, (BATCH, MAX_LEN), 0, VOCAB,
                                          dtype=jnp.int32)

    # inference branch of Models.forward
    inf_logp, inf_pred = models_forward(fused, avi_feat, mode='inference')
    # train branch of Models.forward (teacher forcing)
    tr_logp, tr_pred = models_forward(fused, avi_feat, mode='train',
                                      target_sentences=target_sentences, tr_steps=1)

    jax.block_until_ready((inf_logp, inf_pred, tr_logp, tr_pred))

    assert inf_logp.shape == (BATCH, MAX_LEN - 1, VOCAB)
    assert inf_pred.shape == (BATCH, MAX_LEN - 1)
    assert tr_logp.shape == (BATCH, MAX_LEN - 1, VOCAB)
    assert tr_pred.shape == (BATCH, MAX_LEN - 1)
    assert bool(jnp.all(jnp.isfinite(inf_logp))) and bool(jnp.all(jnp.isfinite(tr_logp)))
    assert bool(jnp.all((inf_pred >= 0) & (inf_pred < VOCAB)))
    assert bool(jnp.all((tr_pred >= 0) & (tr_pred < VOCAB)))
    # in-kernel greedy argmax must agree with an XLA argmax over the real vocab
    assert bool(jnp.all(tr_pred == jnp.argmax(tr_logp, axis=2)))

    print("KERNEL_OK")
</pallas_src>

<mosaic_0001>
module attributes {stable_mosaic.version = 11 : i64} {
  func.func @_seq2seq_infer_kernel(%arg0: memref<16x64xf32, #tpu.memory_space<vmem>>, %arg1: memref<64x32xf32, #tpu.memory_space<vmem>>, %arg2: memref<1x32xf32, #tpu.memory_space<vmem>>, %arg3: memref<32x96xf32, #tpu.memory_space<vmem>>, %arg4: memref<1x96xf32, #tpu.memory_space<vmem>>, %arg5: memref<32x96xf32, #tpu.memory_space<vmem>>, %arg6: memref<1x96xf32, #tpu.memory_space<vmem>>, %arg7: memref<40x32xf32, #tpu.memory_space<vmem>>, %arg8: memref<1x1x32xf32, #tpu.memory_space<vmem>>, %arg9: memref<1x32xf32, #tpu.memory_space<vmem>>, %arg10: memref<1x1xf32, #tpu.memory_space<vmem>>, %arg11: memref<32x96xf32, #tpu.memory_space<vmem>>, %arg12: memref<32x96xf32, #tpu.memory_space<vmem>>, %arg13: memref<1x96xf32, #tpu.memory_space<vmem>>, %arg14: memref<32x96xf32, #tpu.memory_space<vmem>>, %arg15: memref<1x96xf32, #tpu.memory_space<vmem>>, %arg16: memref<32x128xf32, #tpu.memory_space<vmem>>, %arg17: memref<1x128xf32, #tpu.memory_space<vmem>>, %arg18: memref<5x2x128xf32, #tpu.memory_space<vmem>>, %arg19: memref<5x2x1xi32, #tpu.memory_space<vmem>>, %arg20: memref<8x2x32xf32, #tpu.memory_space<vmem>>) attributes {dimension_semantics = [], scalar_prefetch = 0 : i64, scratch_operands = 1 : i64, tpu.core_type = #tpu.core_type<tc>} {
    %c0 = arith.constant 0 : index
    %c0_0 = arith.constant 0 : index
    %0 = vector.load %arg0[%c0, %c0_0] : memref<16x64xf32, #tpu.memory_space<vmem>>, vector<16x64xf32>
    %c0_1 = arith.constant 0 : index
    %c0_2 = arith.constant 0 : index
    %1 = vector.load %arg1[%c0_1, %c0_2] : memref<64x32xf32, #tpu.memory_space<vmem>>, vector<64x32xf32>
    %cst = arith.constant dense<0.000000e+00> : vector<16x32xf32>
    %2 = tpu.matmul %0, %1, %cst {dimension_numbers = #tpu.dot_dimension_numbers<[1], [0], [0], [1], [0, 0, 1, 1], [], []>} : vector<16x64xf32>, vector<64x32xf32>, vector<16x32xf32> -> vector<16x32xf32>
    %c0_3 = arith.constant 0 : index
    %c0_4 = arith.constant 0 : index
    %3 = vector.load %arg2[%c0_3, %c0_4] : memref<1x32xf32, #tpu.memory_space<vmem>>, vector<1x32xf32>
    %4 = vector.broadcast %3 : vector<1x32xf32> to vector<16x32xf32>
    %5 = arith.addf %2, %4 : vector<16x32xf32>
    %c0_5 = arith.constant 0 : index
    %c0_6 = arith.constant 0 : index
    %6 = vector.load %arg3[%c0_5, %c0_6] : memref<32x96xf32, #tpu.memory_space<vmem>>, vector<32x96xf32>
    %cst_7 = arith.constant dense<0.000000e+00> : vector<16x96xf32>
    %7 = tpu.matmul %5, %6, %cst_7 {dimension_numbers = #tpu.dot_dimension_numbers<[1], [0], [0], [1], [0, 0, 1, 1], [], []>} : vector<16x32xf32>, vector<32x96xf32>, vector<16x96xf32> -> vector<16x96xf32>
    %c0_8 = arith.constant 0 : index
    %c0_9 = arith.constant 0 : index
    %8 = vector.load %arg4[%c0_8, %c0_9] : memref<1x96xf32, #tpu.memory_space<vmem>>, vector<1x96xf32>
    %9 = vector.broadcast %8 : vector<1x96xf32> to vector<16x96xf32>
    %10 = arith.addf %7, %9 : vector<16x96xf32>
    %c0_10 = arith.constant 0 : index
    %c0_11 = arith.constant 0 : index
    %11 = vector.load %arg5[%c0_10, %c0_11] : memref<32x96xf32, #tpu.memory_space<vmem>>, vector<32x96xf32>
    %c0_12 = arith.constant 0 : index
    %c0_13 = arith.constant 0 : index
    %12 = vector.load %arg6[%c0_12, %c0_13] : memref<1x96xf32, #tpu.memory_space<vmem>>, vector<1x96xf32>
    %cst_14 = arith.constant 0.000000e+00 : f32
    %13 = vector.broadcast %cst_14 : f32 to vector<2x32xf32>
    %14 = vector.extract_strided_slice %10 {offsets = [0, 0], sizes = [2, 96], strides = [1, 1]} : vector<16x96xf32> to vector<2x96xf32>
    %cst_15 = arith.constant dense<0.000000e+00> : vector<2x96xf32>
    %15 = tpu.matmul %13, %11, %cst_15 {dimension_numbers = #tpu.dot_dimension_numbers<[1], [0], [0], [1], [0, 0, 1, 1], [], []>} : vector<2x32xf32>, vector<32x96xf32>, vector<2x96xf32> -> vector<2x96xf32>
    %16 = vector.broadcast %12 : vector<1x96xf32> to vector<2x96xf32>
    %17 = arith.addf %15, %16 : vector<2x96xf32>
    %18 = vector.extract_strided_slice %14 {offsets = [0, 0], sizes = [2, 32], strides = [1, 1]} : vector<2x96xf32> to vector<2x32xf32>
    %19 = vector.extract_strided_slice %17 {offsets = [0, 0], sizes = [2, 32], strides = [1, 1]} : vector<2x96xf32> to vector<2x32xf32>
    %20 = arith.addf %18, %19 : vector<2x32xf32>
    %21 = arith.negf %20 : vector<2x32xf32>
    %22 = math.exp %21 : vector<2x32xf32>
    %cst_16 = arith.constant 1.000000e+00 : f32
    %23 = vector.broadcast %cst_16 : f32 to vector<2x32xf32>
    %24 = arith.addf %23, %22 : vector<2x32xf32>
    %25 = arith.divf %23, %24 : vector<2x32xf32>
    %26 = vector.extract_strided_slice %14 {offsets = [0, 32], sizes = [2, 32], strides = [1, 1]} : vector<2x96xf32> to vector<2x32xf32>
    %27 = vector.extract_strided_slice %17 {offsets = [0, 32], sizes = [2, 32], strides = [1, 1]} : vector<2x96xf32> to vector<2x32xf32>
    %28 = arith.addf %26, %27 : vector<2x32xf32>
    %29 = arith.negf %28 : vector<2x32xf32>
    %30 = math.exp %29 : vector<2x32xf32>
    %cst_17 = arith.constant 1.000000e+00 : f32
    %31 = vector.broadcast %cst_17 : f32 to vector<2x32xf32>
    %32 = arith.addf %31, %30 : vector<2x32xf32>
    %33 = arith.divf %31, %32 : vector<2x32xf32>
    %34 = vector.extract_strided_slice %14 {offsets = [0, 64], sizes = [2, 32], strides = [1, 1]} : vector<2x96xf32> to vector<2x32xf32>
    %35 = vector.extract_strided_slice %17 {offsets = [0, 64], sizes = [2, 32], strides = [1, 1]} : vector<2x96xf32> to vector<2x32xf32>
    %36 = arith.mulf %25, %35 : vector<2x32xf32>
    %37 = arith.addf %34, %36 : vector<2x32xf32>
    %38 = math.tanh %37 : vector<2x32xf32>
    %cst_18 = arith.constant 1.000000e+00 : f32
    %39 = vector.broadcast %cst_18 : f32 to vector<2x32xf32>
    %40 = arith.subf %39, %33 : vector<2x32xf32>
    %41 = arith.mulf %40, %38 : vector<2x32xf32>
    %42 = arith.mulf %33, %13 : vector<2x32xf32>
    %43 = arith.addf %41, %42 : vector<2x32xf32>
    %c0_19 = arith.constant 0 : index
    %c0_20 = arith.constant 0 : index
    %c0_21 = arith.constant 0 : index
    %44 = vector.load %arg20[%c0_19, %c0_20, %c0_21] : memref<8x2x32xf32, #tpu.memory_space<vmem>>, vector<1x2x32xf32>
    %45 = vector.shape_cast %44 : vector<1x2x32xf32> to vector<2x32xf32>
    %46 = vector.shape_cast %43 : vector<2x32xf32> to vector<1x2x32xf32>
    tpu.vector_store %arg20[%c0_19, %c0_20, %c0_21], %46 {strides = array<i32>} : memref<8x2x32xf32, #tpu.memory_space<vmem>>, vector<1x2x32xf32>,
    %47 = vector.extract_strided_slice %10 {offsets = [2, 0], sizes = [2, 96], strides = [1, 1]} : vector<16x96xf32> to vector<2x96xf32>
    %cst_22 = arith.constant dense<0.000000e+00> : vector<2x96xf32>
    %48 = tpu.matmul %43, %11, %cst_22 {dimension_numbers = #tpu.dot_dimension_numbers<[1], [0], [0], [1], [0, 0, 1, 1], [], []>} : vector<2x32xf32>, vector<32x96xf32>, vector<2x96xf32> -> vector<2x96xf32>
    %49 = vector.broadcast %12 : vector<1x96xf32> to vector<2x96xf32>
    %50 = arith.addf %48, %49 : vector<2x96xf32>
    %51 = vector.extract_strided_slice %47 {offsets = [0, 0], sizes = [2, 32], strides = [1, 1]} : vector<2x96xf32> to vector<2x32xf32>
    %52 = vector.extract_strided_slice %50 {offsets = [0, 0], sizes = [2, 32], strides = [1, 1]} : vector<2x96xf32> to vector<2x32xf32>
    %53 = arith.addf %51, %52 : vector<2x32xf32>
    %54 = arith.negf %53 : vector<2x32xf32>
    %55 = math.exp %54 : vector<2x32xf32>
    %cst_23 = arith.constant 1.000000e+00 : f32
    %56 = vector.broadcast %cst_23 : f32 to vector<2x32xf32>
    %57 = arith.addf %56, %55 : vector<2x32xf32>
    %58 = arith.divf %56, %57 : vector<2x32xf32>
    %59 = vector.extract_strided_slice %47 {offsets = [0, 32], sizes = [2, 32], strides = [1, 1]} : vector<2x96xf32> to vector<2x32xf32>
    %60 = vector.extract_strided_slice %50 {offsets = [0, 32], sizes = [2, 32], strides = [1, 1]} : vector<2x96xf32> to vector<2x32xf32>
    %61 = arith.addf %59, %60 : vector<2x32xf32>
    %62 = arith.negf %61 : vector<2x32xf32>
    %63 = math.exp %62 : vector<2x32xf32>
    %cst_24 = arith.constant 1.000000e+00 : f32
    %64 = vector.broadcast %cst_24 : f32 to vector<2x32xf32>
    %65 = arith.addf %64, %63 : vector<2x32xf32>
    %66 = arith.divf %64, %65 : vector<2x32xf32>
    %67 = vector.extract_strided_slice %47 {offsets = [0, 64], sizes = [2, 32], strides = [1, 1]} : vector<2x96xf32> to vector<2x32xf32>
    %68 = vector.extract_strided_slice %50 {offsets = [0, 64], sizes = [2, 32], strides = [1, 1]} : vector<2x96xf32> to vector<2x32xf32>
    %69 = arith.mulf %58, %68 : vector<2x32xf32>
    %70 = arith.addf %67, %69 : vector<2x32xf32>
    %71 = math.tanh %70 : vector<2x32xf32>
    %cst_25 = arith.constant 1.000000e+00 : f32
    %72 = vector.broadcast %cst_25 : f32 to vector<2x32xf32>
    %73 = arith.subf %72, %66 : vector<2x32xf32>
    %74 = arith.mulf %73, %71 : vector<2x32xf32>
    %75 = arith.mulf %66, %43 : vector<2x32xf32>
    %76 = arith.addf %74, %75 : vector<2x32xf32>
    %c1 = arith.constant 1 : index
    %c0_26 = arith.constant 0 : index
    %c0_27 = arith.constant 0 : index
    %77 = vector.load %arg20[%c1, %c0_26, %c0_27] : memref<8x2x32xf32, #tpu.memory_space<vmem>>, vector<1x2x32xf32>
    %78 = vector.shape_cast %77 : vector<1x2x32xf32> to vector<2x32xf32>
    %79 = vector.shape_cast %76 : vector<2x32xf32> to vector<1x2x32xf32>
    tpu.vector_store %arg20[%c1, %c0_26, %c0_27], %79 {strides = array<i32>} : memref<8x2x32xf32, #tpu.memory_space<vmem>>, vector<1x2x32xf32>,
    %80 = vector.extract_strided_slice %10 {offsets = [4, 0], sizes = [2, 96], strides = [1, 1]} : vector<16x96xf32> to vector<2x96xf32>
    %cst_28 = arith.constant dense<0.000000e+00> : vector<2x96xf32>
    %81 = tpu.matmul %76, %11, %cst_28 {dimension_numbers = #tpu.dot_dimension_numbers<[1], [0], [0], [1], [0, 0, 1, 1], [], []>} : vector<2x32xf32>, vector<32x96xf32>, vector<2x96xf32> -> vector<2x96xf32>
    %82 = vector.broadcast %12 : vector<1x96xf32> to vector<2x96xf32>
    %83 = arith.addf %81, %82 : vector<2x96xf32>
    %84 = vector.extract_strided_slice %80 {offsets = [0, 0], sizes = [2, 32], strides = [1, 1]} : vector<2x96xf32> to vector<2x32xf32>
    %85 = vector.extract_strided_slice %83 {offsets = [0, 0], sizes = [2, 32], strides = [1, 1]} : vector<2x96xf32> to vector<2x32xf32>
    %86 = arith.addf %84, %85 : vector<2x32xf32>
    %87 = arith.negf %86 : vector<2x32xf32>
    %88 = math.exp %87 : vector<2x32xf32>
    %cst_29 = arith.constant 1.000000e+00 : f32
    %89 = vector.broadcast %cst_29 : f32 to vector<2x32xf32>
    %90 = arith.addf %89, %88 : vector<2x32xf32>
    %91 = arith.divf %89, %90 : vector<2x32xf32>
    %92 = vector.extract_strided_slice %80 {offsets = [0, 32], sizes = [2, 32], strides = [1, 1]} : vector<2x96xf32> to vector<2x32xf32>
    %93 = vector.extract_strided_slice %83 {offsets = [0, 32], sizes = [2, 32], strides = [1, 1]} : vector<2x96xf32> to vector<2x32xf32>
    %94 = arith.addf %92, %93 : vector<2x32xf32>
    %95 = arith.negf %94 : vector<2x32xf32>
    %96 = math.exp %95 : vector<2x32xf32>
    %cst_30 = arith.constant 1.000000e+00 : f32
    %97 = vector.broadcast %cst_30 : f32 to vector<2x32xf32>
    %98 = arith.addf %97, %96 : vector<2x32xf32>
    %99 = arith.divf %97, %98 : vector<2x32xf32>
    %100 = vector.extract_strided_slice %80 {offsets = [0, 64], sizes = [2, 32], strides = [1, 1]} : vector<2x96xf32> to vector<2x32xf32>
    %101 = vector.extract_strided_slice %83 {offsets = [0, 64], sizes = [2, 32], strides = [1, 1]} : vector<2x96xf32> to vector<2x32xf32>
    %102 = arith.mulf %91, %101 : vector<2x32xf32>
    %103 = arith.addf %100, %102 : vector<2x32xf32>
    %104 = math.tanh %103 : vector<2x32xf32>
    %cst_31 = arith.constant 1.000000e+00 : f32
    %105 = vector.broadcast %cst_31 : f32 to vector<2x32xf32>
    %106 = arith.subf %105, %99 : vector<2x32xf32>
    %107 = arith.mulf %106, %104 : vector<2x32xf32>
    %108 = arith.mulf %99, %76 : vector<2x32xf32>
    %109 = arith.addf %107, %108 : vector<2x32xf32>
    %c2 = arith.constant 2 : index
    %c0_32 = arith.constant 0 : index
    %c0_33 = arith.constant 0 : index
    %110 = vector.load %arg20[%c2, %c0_32, %c0_33] : memref<8x2x32xf32, #tpu.memory_space<vmem>>, vector<1x2x32xf32>
    %111 = vector.shape_cast %110 : vector<1x2x32xf32> to vector<2x32xf32>
    %112 = vector.shape_cast %109 : vector<2x32xf32> to vector<1x2x32xf32>
    tpu.vector_store %arg20[%c2, %c0_32, %c0_33], %112 {strides = array<i32>} : memref<8x2x32xf32, #tpu.memory_space<vmem>>, vector<1x2x32xf32>,
    %113 = vector.extract_strided_slice %10 {offsets = [6, 0], sizes = [2, 96], strides = [1, 1]} : vector<16x96xf32> to vector<2x96xf32>
    %cst_34 = arith.constant dense<0.000000e+00> : vector<2x96xf32>
    %114 = tpu.matmul %109, %11, %cst_34 {dimension_numbers = #tpu.dot_dimension_numbers<[1], [0], [0], [1], [0, 0, 1, 1], [], []>} : vector<2x32xf32>, vector<32x96xf32>, vector<2x96xf32> -> vector<2x96xf32>
    %115 = vector.broadcast %12 : vector<1x96xf32> to vector<2x96xf32>
    %116 = arith.addf %114, %115 : vector<2x96xf32>
    %117 = vector.extract_strided_slice %113 {offsets = [0, 0], sizes = [2, 32], strides = [1, 1]} : vector<2x96xf32> to vector<2x32xf32>
    %118 = vector.extract_strided_slice %116 {offsets = [0, 0], sizes = [2, 32], strides = [1, 1]} : vector<2x96xf32> to vector<2x32xf32>
    %119 = arith.addf %117, %118 : vector<2x32xf32>
    %120 = arith.negf %119 : vector<2x32xf32>
    %121 = math.exp %120 : vector<2x32xf32>
    %cst_35 = arith.constant 1.000000e+00 : f32
    %122 = vector.broadcast %cst_35 : f32 to vector<2x32xf32>
    %123 = arith.addf %122, %121 : vector<2x32xf32>
    %124 = arith.divf %122, %123 : vector<2x32xf32>
    %125 = vector.extract_strided_slice %113 {offsets = [0, 32], sizes = [2, 32], strides = [1, 1]} : vector<2x96xf32> to vector<2x32xf32>
    %126 = vector.extract_strided_slice %116 {offsets = [0, 32], sizes = [2, 32], strides = [1, 1]} : vector<2x96xf32> to vector<2x32xf32>
    %127 = arith.addf %125, %126 : vector<2x32xf32>
    %128 = arith.negf %127 : vector<2x32xf32>
    %129 = math.exp %128 : vector<2x32xf32>
    %cst_36 = arith.constant 1.000000e+00 : f32
    %130 = vector.broadcast %cst_36 : f32 to vector<2x32xf32>
    %131 = arith.addf %130, %129 : vector<2x32xf32>
    %132 = arith.divf %130, %131 : vector<2x32xf32>
    %133 = vector.extract_strided_slice %113 {offsets = [0, 64], sizes = [2, 32], strides = [1, 1]} : vector<2x96xf32> to vector<2x32xf32>
    %134 = vector.extract_strided_slice %116 {offsets = [0, 64], sizes = [2, 32], strides = [1, 1]} : vector<2x96xf32> to vector<2x32xf32>
    %135 = arith.mulf %124, %134 : vector<2x32xf32>
    %136 = arith.addf %133, %135 : vector<2x32xf32>
    %137 = math.tanh %136 : vector<2x32xf32>
    %cst_37 = arith.constant 1.000000e+00 : f32
    %138 = vector.broadcast %cst_37 : f32 to vector<2x32xf32>
    %139 = arith.subf %138, %132 : vector<2x32xf32>
    %140 = arith.mulf %139, %137 : vector<2x32xf32>
    %141 = arith.mulf %132, %109 : vector<2x32xf32>
    %142 = arith.addf %140, %141 : vector<2x32xf32>
    %c3 = arith.constant 3 : index
    %c0_38 = arith.constant 0 : index
    %c0_39 = arith.constant 0 : index
    %143 = vector.load %arg20[%c3, %c0_38, %c0_39] : memref<8x2x32xf32, #tpu.memory_space<vmem>>, vector<1x2x32xf32>
    %144 = vector.shape_cast %143 : vector<1x2x32xf32> to vector<2x32xf32>
    %145 = vector.shape_cast %142 : vector<2x32xf32> to vector<1x2x32xf32>
    tpu.vector_store %arg20[%c3, %c0_38, %c0_39], %145 {strides = array<i32>} : memref<8x2x32xf32, #tpu.memory_space<vmem>>, vector<1x2x32xf32>,
    %146 = vector.extract_strided_slice %10 {offsets = [8, 0], sizes = [2, 96], strides = [1, 1]} : vector<16x96xf32> to vector<2x96xf32>
    %cst_40 = arith.constant dense<0.000000e+00> : vector<2x96xf32>
    %147 = tpu.matmul %142, %11, %cst_40 {dimension_numbers = #tpu.dot_dimension_numbers<[1], [0], [0], [1], [0, 0, 1, 1], [], []>} : vector<2x32xf32>, vector<32x96xf32>, vector<2x96xf32> -> vector<2x96xf32>
    %148 = vector.broadcast %12 : vector<1x96xf32> to vector<2x96xf32>
    %149 = arith.addf %147, %148 : vector<2x96xf32>
    %150 = vector.extract_strided_slice %146 {offsets = [0, 0], sizes = [2, 32], strides = [1, 1]} : vector<2x96xf32> to vector<2x32xf32>
    %151 = vector.extract_strided_slice %149 {offsets = [0, 0], sizes = [2, 32], strides = [1, 1]} : vector<2x96xf32> to vector<2x32xf32>
    %152 = arith.addf %150, %151 : vector<2x32xf32>
    %153 = arith.negf %152 : vector<2x32xf32>
    %154 = math.exp %153 : vector<2x32xf32>
    %cst_41 = arith.constant 1.000000e+00 : f32
    %155 = vector.broadcast %cst_41 : f32 to vector<2x32xf32>
    %156 = arith.addf %155, %154 : vector<2x32xf32>
    %157 = arith.divf %155, %156 : vector<2x32xf32>
    %158 = vector.extract_strided_slice %146 {offsets = [0, 32], sizes = [2, 32], strides = [1, 1]} : vector<2x96xf32> to vector<2x32xf32>
    %159 = vector.extract_strided_slice %149 {offsets = [0, 32], sizes = [2, 32], strides = [1, 1]} : vector<2x96xf32> to vector<2x32xf32>
    %160 = arith.addf %158, %159 : vector<2x32xf32>
    %161 = arith.negf %160 : vector<2x32xf32>
    %162 = math.exp %161 : vector<2x32xf32>
    %cst_42 = arith.constant 1.000000e+00 : f32
    %163 = vector.broadcast %cst_42 : f32 to vector<2x32xf32>
    %164 = arith.addf %163, %162 : vector<2x32xf32>
    %165 = arith.divf %163, %164 : vector<2x32xf32>
    %166 = vector.extract_strided_slice %146 {offsets = [0, 64], sizes = [2, 32], strides = [1, 1]} : vector<2x96xf32> to vector<2x32xf32>
    %167 = vector.extract_strided_slice %149 {offsets = [0, 64], sizes = [2, 32], strides = [1, 1]} : vector<2x96xf32> to vector<2x32xf32>
    %168 = arith.mulf %157, %167 : vector<2x32xf32>
    %169 = arith.addf %166, %168 : vector<2x32xf32>
    %170 = math.tanh %169 : vector<2x32xf32>
    %cst_43 = arith.constant 1.000000e+00 : f32
    %171 = vector.broadcast %cst_43 : f32 to vector<2x32xf32>
    %172 = arith.subf %171, %165 : vector<2x32xf32>
    %173 = arith.mulf %172, %170 : vector<2x32xf32>
    %174 = arith.mulf %165, %142 : vector<2x32xf32>
    %175 = arith.addf %173, %174 : vector<2x32xf32>
    %c4 = arith.constant 4 : index
    %c0_44 = arith.constant 0 : index
    %c0_45 = arith.constant 0 : index
    %176 = vector.load %arg20[%c4, %c0_44, %c0_45] : memref<8x2x32xf32, #tpu.memory_space<vmem>>, vector<1x2x32xf32>
    %177 = vector.shape_cast %176 : vector<1x2x32xf32> to vector<2x32xf32>
    %178 = vector.shape_cast %175 : vector<2x32xf32> to vector<1x2x32xf32>
    tpu.vector_store %arg20[%c4, %c0_44, %c0_45], %178 {strides = array<i32>} : memref<8x2x32xf32, #tpu.memory_space<vmem>>, vector<1x2x32xf32>,
    %179 = vector.extract_strided_slice %10 {offsets = [10, 0], sizes = [2, 96], strides = [1, 1]} : vector<16x96xf32> to vector<2x96xf32>
    %cst_46 = arith.constant dense<0.000000e+00> : vector<2x96xf32>
    %180 = tpu.matmul %175, %11, %cst_46 {dimension_numbers = #tpu.dot_dimension_numbers<[1], [0], [0], [1], [0, 0, 1, 1], [], []>} : vector<2x32xf32>, vector<32x96xf32>, vector<2x96xf32> -> vector<2x96xf32>
    %181 = vector.broadcast %12 : vector<1x96xf32> to vector<2x96xf32>
    %182 = arith.addf %180, %181 : vector<2x96xf32>
    %183 = vector.extract_strided_slice %179 {offsets = [0, 0], sizes = [2, 32], strides = [1, 1]} : vector<2x96xf32> to vector<2x32xf32>
    %184 = vector.extract_strided_slice %182 {offsets = [0, 0], sizes = [2, 32], strides = [1, 1]} : vector<2x96xf32> to vector<2x32xf32>
    %185 = arith.addf %183, %184 : vector<2x32xf32>
    %186 = arith.negf %185 : vector<2x32xf32>
    %187 = math.exp %186 : vector<2x32xf32>
    %cst_47 = arith.constant 1.000000e+00 : f32
    %188 = vector.broadcast %cst_47 : f32 to vector<2x32xf32>
    %189 = arith.addf %188, %187 : vector<2x32xf32>
    %190 = arith.divf %188, %189 : vector<2x32xf32>
    %191 = vector.extract_strided_slice %179 {offsets = [0, 32], sizes = [2, 32], strides = [1, 1]} : vector<2x96xf32> to vector<2x32xf32>
    %192 = vector.extract_strided_slice %182 {offsets = [0, 32], sizes = [2, 32], strides = [1, 1]} : vector<2x96xf32> to vector<2x32xf32>
    %193 = arith.addf %191, %192 : vector<2x32xf32>
    %194 = arith.negf %193 : vector<2x32xf32>
    %195 = math.exp %194 : vector<2x32xf32>
    %cst_48 = arith.constant 1.000000e+00 : f32
    %196 = vector.broadcast %cst_48 : f32 to vector<2x32xf32>
    %197 = arith.addf %196, %195 : vector<2x32xf32>
    %198 = arith.divf %196, %197 : vector<2x32xf32>
    %199 = vector.extract_strided_slice %179 {offsets = [0, 64], sizes = [2, 32], strides = [1, 1]} : vector<2x96xf32> to vector<2x32xf32>
    %200 = vector.extract_strided_slice %182 {offsets = [0, 64], sizes = [2, 32], strides = [1, 1]} : vector<2x96xf32> to vector<2x32xf32>
    %201 = arith.mulf %190, %200 : vector<2x32xf32>
    %202 = arith.addf %199, %201 : vector<2x32xf32>
    %203 = math.tanh %202 : vector<2x32xf32>
    %cst_49 = arith.constant 1.000000e+00 : f32
    %204 = vector.broadcast %cst_49 : f32 to vector<2x32xf32>
    %205 = arith.subf %204, %198 : vector<2x32xf32>
    %206 = arith.mulf %205, %203 : vector<2x32xf32>
    %207 = arith.mulf %198, %175 : vector<2x32xf32>
    %208 = arith.addf %206, %207 : vector<2x32xf32>
    %c5 = arith.constant 5 : index
    %c0_50 = arith.constant 0 : index
    %c0_51 = arith.constant 0 : index
    %209 = vector.load %arg20[%c5, %c0_50, %c0_51] : memref<8x2x32xf32, #tpu.memory_space<vmem>>, vector<1x2x32xf32>
    %210 = vector.shape_cast %209 : vector<1x2x32xf32> to vector<2x32xf32>
    %211 = vector.shape_cast %208 : vector<2x32xf32> to vector<1x2x32xf32>
    tpu.vector_store %arg20[%c5, %c0_50, %c0_51], %211 {strides = array<i32>} : memref<8x2x32xf32, #tpu.memory_space<vmem>>, vector<1x2x32xf32>,
    %212 = vector.extract_strided_slice %10 {offsets = [12, 0], sizes = [2, 96], strides = [1, 1]} : vector<16x96xf32> to vector<2x96xf32>
    %cst_52 = arith.constant dense<0.000000e+00> : vector<2x96xf32>
    %213 = tpu.matmul %208, %11, %cst_52 {dimension_numbers = #tpu.dot_dimension_numbers<[1], [0], [0], [1], [0, 0, 1, 1], [], []>} : vector<2x32xf32>, vector<32x96xf32>, vector<2x96xf32> -> vector<2x96xf32>
    %214 = vector.broadcast %12 : vector<1x96xf32> to vector<2x96xf32>
    %215 = arith.addf %213, %214 : vector<2x96xf32>
    %216 = vector.extract_strided_slice %212 {offsets = [0, 0], sizes = [2, 32], strides = [1, 1]} : vector<2x96xf32> to vector<2x32xf32>
    %217 = vector.extract_strided_slice %215 {offsets = [0, 0], sizes = [2, 32], strides = [1, 1]} : vector<2x96xf32> to vector<2x32xf32>
    %218 = arith.addf %216, %217 : vector<2x32xf32>
    %219 = arith.negf %218 : vector<2x32xf32>
    %220 = math.exp %219 : vector<2x32xf32>
    %cst_53 = arith.constant 1.000000e+00 : f32
    %221 = vector.broadcast %cst_53 : f32 to vector<2x32xf32>
    %222 = arith.addf %221, %220 : vector<2x32xf32>
    %223 = arith.divf %221, %222 : vector<2x32xf32>
    %224 = vector.extract_strided_slice %212 {offsets = [0, 32], sizes = [2, 32], strides = [1, 1]} : vector<2x96xf32> to vector<2x32xf32>
    %225 = vector.extract_strided_slice %215 {offsets = [0, 32], sizes = [2, 32], strides = [1, 1]} : vector<2x96xf32> to vector<2x32xf32>
    %226 = arith.addf %224, %225 : vector<2x32xf32>
    %227 = arith.negf %226 : vector<2x32xf32>
    %228 = math.exp %227 : vector<2x32xf32>
    %cst_54 = arith.constant 1.000000e+00 : f32
    %229 = vector.broadcast %cst_54 : f32 to vector<2x32xf32>
    %230 = arith.addf %229, %228 : vector<2x32xf32>
    %231 = arith.divf %229, %230 : vector<2x32xf32>
    %232 = vector.extract_strided_slice %212 {offsets = [0, 64], sizes = [2, 32], strides = [1, 1]} : vector<2x96xf32> to vector<2x32xf32>
    %233 = vector.extract_strided_slice %215 {offsets = [0, 64], sizes = [2, 32], strides = [1, 1]} : vector<2x96xf32> to vector<2x32xf32>
    %234 = arith.mulf %223, %233 : vector<2x32xf32>
    %235 = arith.addf %232, %234 : vector<2x32xf32>
    %236 = math.tanh %235 : vector<2x32xf32>
    %cst_55 = arith.constant 1.000000e+00 : f32
    %237 = vector.broadcast %cst_55 : f32 to vector<2x32xf32>
    %238 = arith.subf %237, %231 : vector<2x32xf32>
    %239 = arith.mulf %238, %236 : vector<2x32xf32>
    %240 = arith.mulf %231, %208 : vector<2x32xf32>
    %241 = arith.addf %239, %240 : vector<2x32xf32>
    %c6 = arith.constant 6 : index
    %c0_56 = arith.constant 0 : index
    %c0_57 = arith.constant 0 : index
    %242 = vector.load %arg20[%c6, %c0_56, %c0_57] : memref<8x2x32xf32, #tpu.memory_space<vmem>>, vector<1x2x32xf32>
    %243 = vector.shape_cast %242 : vector<1x2x32xf32> to vector<2x32xf32>
    %244 = vector.shape_cast %241 : vector<2x32xf32> to vector<1x2x32xf32>
    tpu.vector_store %arg20[%c6, %c0_56, %c0_57], %244 {strides = array<i32>} : memref<8x2x32xf32, #tpu.memory_space<vmem>>, vector<1x2x32xf32>,
    %245 = vector.extract_strided_slice %10 {offsets = [14, 0], sizes = [2, 96], strides = [1, 1]} : vector<16x96xf32> to vector<2x96xf32>
    %cst_58 = arith.constant dense<0.000000e+00> : vector<2x96xf32>
    %246 = tpu.matmul %241, %11, %cst_58 {dimension_numbers = #tpu.dot_dimension_numbers<[1], [0], [0], [1], [0, 0, 1, 1], [], []>} : vector<2x32xf32>, vector<32x96xf32>, vector<2x96xf32> -> vector<2x96xf32>
    %247 = vector.broadcast %12 : vector<1x96xf32> to vector<2x96xf32>
    %248 = arith.addf %246, %247 : vector<2x96xf32>
    %249 = vector.extract_strided_slice %245 {offsets = [0, 0], sizes = [2, 32], strides = [1, 1]} : vector<2x96xf32> to vector<2x32xf32>
    %250 = vector.extract_strided_slice %248 {offsets = [0, 0], sizes = [2, 32], strides = [1, 1]} : vector<2x96xf32> to vector<2x32xf32>
    %251 = arith.addf %249, %250 : vector<2x32xf32>
    %252 = arith.negf %251 : vector<2x32xf32>
    %253 = math.exp %252 : vector<2x32xf32>
    %cst_59 = arith.constant 1.000000e+00 : f32
    %254 = vector.broadcast %cst_59 : f32 to vector<2x32xf32>
    %255 = arith.addf %254, %253 : vector<2x32xf32>
    %256 = arith.divf %254, %255 : vector<2x32xf32>
    %257 = vector.extract_strided_slice %245 {offsets = [0, 32], sizes = [2, 32], strides = [1, 1]} : vector<2x96xf32> to vector<2x32xf32>
    %258 = vector.extract_strided_slice %248 {offsets = [0, 32], sizes = [2, 32], strides = [1, 1]} : vector<2x96xf32> to vector<2x32xf32>
    %259 = arith.addf %257, %258 : vector<2x32xf32>
    %260 = arith.negf %259 : vector<2x32xf32>
    %261 = math.exp %260 : vector<2x32xf32>
    %cst_60 = arith.constant 1.000000e+00 : f32
    %262 = vector.broadcast %cst_60 : f32 to vector<2x32xf32>
    %263 = arith.addf %262, %261 : vector<2x32xf32>
    %264 = arith.divf %262, %263 : vector<2x32xf32>
    %265 = vector.extract_strided_slice %245 {offsets = [0, 64], sizes = [2, 32], strides = [1, 1]} : vector<2x96xf32> to vector<2x32xf32>
    %266 = vector.extract_strided_slice %248 {offsets = [0, 64], sizes = [2, 32], strides = [1, 1]} : vector<2x96xf32> to vector<2x32xf32>
    %267 = arith.mulf %256, %266 : vector<2x32xf32>
    %268 = arith.addf %265, %267 : vector<2x32xf32>
    %269 = math.tanh %268 : vector<2x32xf32>
    %cst_61 = arith.constant 1.000000e+00 : f32
    %270 = vector.broadcast %cst_61 : f32 to vector<2x32xf32>
    %271 = arith.subf %270, %264 : vector<2x32xf32>
    %272 = arith.mulf %271, %269 : vector<2x32xf32>
    %273 = arith.mulf %264, %241 : vector<2x32xf32>
    %274 = arith.addf %272, %273 : vector<2x32xf32>
    %c7 = arith.constant 7 : index
    %c0_62 = arith.constant 0 : index
    %c0_63 = arith.constant 0 : index
    %275 = vector.load %arg20[%c7, %c0_62, %c0_63] : memref<8x2x32xf32, #tpu.memory_space<vmem>>, vector<1x2x32xf32>
    %276 = vector.shape_cast %275 : vector<1x2x32xf32> to vector<2x32xf32>
    %277 = vector.shape_cast %274 : vector<2x32xf32> to vector<1x2x32xf32>
    tpu.vector_store %arg20[%c7, %c0_62, %c0_63], %277 {strides = array<i32>} : memref<8x2x32xf32, #tpu.memory_space<vmem>>, vector<1x2x32xf32>,
    %c0_64 = arith.constant 0 : index
    %c0_65 = arith.constant 0 : index
    %c0_66 = arith.constant 0 : index
    %278 = vector.load %arg20[%c0_64, %c0_65, %c0_66] : memref<8x2x32xf32, #tpu.memory_space<vmem>>, vector<8x2x32xf32>
    %c0_67 = arith.constant 0 : index
    %c0_68 = arith.constant 0 : index
    %c0_69 = arith.constant 0 : index
    %279 = vector.load %arg8[%c0_67, %c0_68, %c0_69] : memref<1x1x32xf32, #tpu.memory_space<vmem>>, vector<1x1x32xf32>
    %280 = vector.broadcast %279 : vector<1x1x32xf32> to vector<8x2x32xf32>
    %281 = arith.mulf %278, %280 : vector<8x2x32xf32>
    %cst_70 = arith.constant dense<0.000000e+00> : vector<8x2xf32>
    %282 = vector.multi_reduction <add>, %281, %cst_70 [2] : vector<8x2x32xf32> to vector<8x2xf32>
    %283 = vector.shape_cast %282 : vector<8x2xf32> to vector<8x2x1xf32>
    %c0_71 = arith.constant 0 : index
    %c0_72 = arith.constant 0 : index
    %284 = vector.load %arg7[%c0_71, %c0_72] : memref<40x32xf32, #tpu.memory_space<vmem>>, vector<40x32xf32>
    %c0_73 = arith.constant 0 : index
    %c0_74 = arith.constant 0 : index
    %285 = vector.load %arg9[%c0_73, %c0_74] : memref<1x32xf32, #tpu.memory_space<vmem>>, vector<1x32xf32>
    %c0_75 = arith.constant 0 : index
    %c0_76 = arith.constant 0 : index
    %286 = vector.load %arg10[%c0_75, %c0_76] : memref<1x1xf32, #tpu.memory_space<vmem>>, vector<1x1xf32>
    %c0_77 = arith.constant 0 : index
    %c0_78 = arith.constant 0 : index
    %287 = vector.load %arg11[%c0_77, %c0_78] : memref<32x96xf32, #tpu.memory_space<vmem>>, vector<32x96xf32>
    %c0_79 = arith.constant 0 : index
    %c0_80 = arith.constant 0 : index
    %288 = vector.load %arg12[%c0_79, %c0_80] : memref<32x96xf32, #tpu.memory_space<vmem>>, vector<32x96xf32>
    %c0_81 = arith.constant 0 : index
    %c0_82 = arith.constant 0 : index
    %289 = vector.load %arg13[%c0_81, %c0_82] : memref<1x96xf32, #tpu.memory_space<vmem>>, vector<1x96xf32>
    %c0_83 = arith.constant 0 : index
    %c0_84 = arith.constant 0 : index
    %290 = vector.load %arg14[%c0_83, %c0_84] : memref<32x96xf32, #tpu.memory_space<vmem>>, vector<32x96xf32>
    %c0_85 = arith.constant 0 : index
    %c0_86 = arith.constant 0 : index
    %291 = vector.load %arg15[%c0_85, %c0_86] : memref<1x96xf32, #tpu.memory_space<vmem>>, vector<1x96xf32>
    %c0_87 = arith.constant 0 : index
    %c0_88 = arith.constant 0 : index
    %292 = vector.load %arg16[%c0_87, %c0_88] : memref<32x128xf32, #tpu.memory_space<vmem>>, vector<32x128xf32>
    %c0_89 = arith.constant 0 : index
    %c0_90 = arith.constant 0 : index
    %293 = vector.load %arg17[%c0_89, %c0_90] : memref<1x128xf32, #tpu.memory_space<vmem>>, vector<1x128xf32>
    %294 = tpu.iota {dimensions = array<i32: 1>} : vector<2x40xi32>
    %c1_i32 = arith.constant 1 : i32
    %295 = vector.broadcast %c1_i32 : i32 to vector<2x1xi32>
    %296 = vector.broadcast %295 : vector<2x1xi32> to vector<2x40xi32>
    %297 = arith.cmpi eq, %294, %296 : vector<2x40xi32>
    %298 = arith.extui %297 : vector<2x40xi1> to vector<2x40xi32>
    %299 = arith.sitofp %298 : vector<2x40xi32> to vector<2x40xf32>
    %cst_91 = arith.constant dense<0.000000e+00> : vector<2x32xf32>
    %300 = tpu.matmul %299, %284, %cst_91 {dimension_numbers = #tpu.dot_dimension_numbers<[1], [0], [0], [1], [0, 0, 1, 1], [], []>} : vector<2x40xf32>, vector<40x32xf32>, vector<2x32xf32> -> vector<2x32xf32>
    %301 = vector.broadcast %285 : vector<1x32xf32> to vector<2x32xf32>
    %302 = arith.mulf %274, %301 : vector<2x32xf32>
    %cst_92 = arith.constant dense<0.000000e+00> : vector<2xf32>
    %303 = vector.multi_reduction <add>, %302, %cst_92 [1] : vector<2x32xf32> to vector<2xf32>
    %304 = vector.shape_cast %303 : vector<2xf32> to vector<2x1xf32>
    %305 = vector.broadcast %286 : vector<1x1xf32> to vector<2x1xf32>
    %306 = arith.addf %304, %305 : vector<2x1xf32>
    %307 = vector.shape_cast %306 : vector<2x1xf32> to vector<1x2x1xf32>
    %308 = vector.broadcast %307 : vector<1x2x1xf32> to vector<8x2x1xf32>
    %309 = arith.addf %283, %308 : vector<8x2x1xf32>
    %cst_93 = arith.constant dense<0xFF800000> : vector<2x1xf32>
    %310 = vector.multi_reduction <maximumf>, %309, %cst_93 [0] : vector<8x2x1xf32> to vector<2x1xf32>
    %311 = vector.shape_cast %310 : vector<2x1xf32> to vector<1x2x1xf32>
    %312 = vector.broadcast %311 : vector<1x2x1xf32> to vector<8x2x1xf32>
    %313 = arith.subf %309, %312 : vector<8x2x1xf32>
    %314 = math.exp %313 : vector<8x2x1xf32>
    %cst_94 = arith.constant dense<0.000000e+00> : vector<2x1xf32>
    %315 = vector.multi_reduction <add>, %314, %cst_94 [0] : vector<8x2x1xf32> to vector<2x1xf32>
    %316 = vector.shape_cast %315 : vector<2x1xf32> to vector<1x2x1xf32>
    %317 = tpu.reciprocal %316 {approx = true} : vector<1x2x1xf32> -> vector<1x2x1xf32>
    %318 = vector.broadcast %317 : vector<1x2x1xf32> to vector<8x2x1xf32>
    %319 = arith.mulf %314, %318 : vector<8x2x1xf32>
    %320 = vector.broadcast %319 : vector<8x2x1xf32> to vector<8x2x32xf32>
    %321 = arith.mulf %320, %278 : vector<8x2x32xf32>
    %cst_95 = arith.constant dense<0.000000e+00> : vector<2x32xf32>
    %322 = vector.multi_reduction <add>, %321, %cst_95 [0] : vector<8x2x32xf32> to vector<2x32xf32>
    %cst_96 = arith.constant dense<0.000000e+00> : vector<2x96xf32>
    %323 = tpu.matmul %300, %287, %cst_96 {dimension_numbers = #tpu.dot_dimension_numbers<[1], [0], [0], [1], [0, 0, 1, 1], [], []>} : vector<2x32xf32>, vector<32x96xf32>, vector<2x96xf32> -> vector<2x96xf32>
    %cst_97 = arith.constant dense<0.000000e+00> : vector<2x96xf32>
    %324 = tpu.matmul %322, %288, %cst_97 {dimension_numbers = #tpu.dot_dimension_numbers<[1], [0], [0], [1], [0, 0, 1, 1], [], []>} : vector<2x32xf32>, vector<32x96xf32>, vector<2x96xf32> -> vector<2x96xf32>
    %325 = arith.addf %323, %324 : vector<2x96xf32>
    %326 = vector.broadcast %289 : vector<1x96xf32> to vector<2x96xf32>
    %327 = arith.addf %325, %326 : vector<2x96xf32>
    %cst_98 = arith.constant dense<0.000000e+00> : vector<2x96xf32>
    %328 = tpu.matmul %274, %290, %cst_98 {dimension_numbers = #tpu.dot_dimension_numbers<[1], [0], [0], [1], [0, 0, 1, 1], [], []>} : vector<2x32xf32>, vector<32x96xf32>, vector<2x96xf32> -> vector<2x96xf32>
    %329 = vector.broadcast %291 : vector<1x96xf32> to vector<2x96xf32>
    %330 = arith.addf %328, %329 : vector<2x96xf32>
    %331 = vector.extract_strided_slice %327 {offsets = [0, 0], sizes = [2, 32], strides = [1, 1]} : vector<2x96xf32> to vector<2x32xf32>
    %332 = vector.extract_strided_slice %330 {offsets = [0, 0], sizes = [2, 32], strides = [1, 1]} : vector<2x96xf32> to vector<2x32xf32>
    %333 = arith.addf %331, %332 : vector<2x32xf32>
    %334 = arith.negf %333 : vector<2x32xf32>
    %335 = math.exp %334 : vector<2x32xf32>
    %cst_99 = arith.constant 1.000000e+00 : f32
    %336 = vector.broadcast %cst_99 : f32 to vector<2x32xf32>
    %337 = arith.addf %336, %335 : vector<2x32xf32>
    %338 = arith.divf %336, %337 : vector<2x32xf32>
    %339 = vector.extract_strided_slice %327 {offsets = [0, 32], sizes = [2, 32], strides = [1, 1]} : vector<2x96xf32> to vector<2x32xf32>
    %340 = vector.extract_strided_slice %330 {offsets = [0, 32], sizes = [2, 32], strides = [1, 1]} : vector<2x96xf32> to vector<2x32xf32>
    %341 = arith.addf %339, %340 : vector<2x32xf32>
    %342 = arith.negf %341 : vector<2x32xf32>
    %343 = math.exp %342 : vector<2x32xf32>
    %cst_100 = arith.constant 1.000000e+00 : f32
    %344 = vector.broadcast %cst_100 : f32 to vector<2x32xf32>
    %345 = arith.addf %344, %343 : vector<2x32xf32>
    %346 = arith.divf %344, %345 : vector<2x32xf32>
    %347 = vector.extract_strided_slice %327 {offsets = [0, 64], sizes = [2, 32], strides = [1, 1]} : vector<2x96xf32> to vector<2x32xf32>
    %348 = vector.extract_strided_slice %330 {offsets = [0, 64], sizes = [2, 32], strides = [1, 1]} : vector<2x96xf32> to vector<2x32xf32>
    %349 = arith.mulf %338, %348 : vector<2x32xf32>
    %350 = arith.addf %347, %349 : vector<2x32xf32>
    %351 = math.tanh %350 : vector<2x32xf32>
    %cst_101 = arith.constant 1.000000e+00 : f32
    %352 = vector.broadcast %cst_101 : f32 to vector<2x32xf32>
    %353 = arith.subf %352, %346 : vector<2x32xf32>
    %354 = arith.mulf %353, %351 : vector<2x32xf32>
    %355 = arith.mulf %346, %274 : vector<2x32xf32>
    %356 = arith.addf %354, %355 : vector<2x32xf32>
    %cst_102 = arith.constant dense<0.000000e+00> : vector<2x128xf32>
    %357 = tpu.matmul %356, %292, %cst_102 {dimension_numbers = #tpu.dot_dimension_numbers<[1], [0], [0], [1], [0, 0, 1, 1], [], []>} : vector<2x32xf32>, vector<32x128xf32>, vector<2x128xf32> -> vector<2x128xf32>
    %358 = vector.broadcast %293 : vector<1x128xf32> to vector<2x128xf32>
    %359 = arith.addf %357, %358 : vector<2x128xf32>
    %cst_103 = arith.constant dense<0xFF800000> : vector<2xf32>
    %360 = vector.multi_reduction <maximumf>, %359, %cst_103 [1] : vector<2x128xf32> to vector<2xf32>
    %361 = vector.shape_cast %360 : vector<2xf32> to vector<2x1xf32>
    %362 = vector.broadcast %361 : vector<2x1xf32> to vector<2x128xf32>
    %363 = arith.subf %359, %362 : vector<2x128xf32>
    %364 = math.exp %363 : vector<2x128xf32>
    %cst_104 = arith.constant dense<0.000000e+00> : vector<2xf32>
    %365 = vector.multi_reduction <add>, %364, %cst_104 [1] : vector<2x128xf32> to vector<2xf32>
    %366 = vector.shape_cast %365 : vector<2xf32> to vector<2x1xf32>
    %367 = math.log %366 : vector<2x1xf32>
    %368 = vector.broadcast %367 : vector<2x1xf32> to vector<2x128xf32>
    %369 = arith.subf %363, %368 : vector<2x128xf32>
    %c0_105 = arith.constant 0 : index
    %c0_106 = arith.constant 0 : index
    %c0_107 = arith.constant 0 : index
    %370 = vector.load %arg18[%c0_105, %c0_106, %c0_107] : memref<5x2x128xf32, #tpu.memory_space<vmem>>, vector<1x2x128xf32>
    %371 = vector.shape_cast %370 : vector<1x2x128xf32> to vector<2x128xf32>
    %372 = vector.shape_cast %369 : vector<2x128xf32> to vector<1x2x128xf32>
    tpu.vector_store %arg18[%c0_105, %c0_106, %c0_107], %372 {strides = array<i32>} : memref<5x2x128xf32, #tpu.memory_space<vmem>>, vector<1x2x128xf32>,
    %373 = tpu.iota {dimensions = array<i32: 1>} : vector<2x128xi32>
    %cst_108 = arith.constant dense<0xFF800000> : vector<2xf32>
    %374 = vector.multi_reduction <maximumf>, %369, %cst_108 [1] : vector<2x128xf32> to vector<2xf32>
    %375 = vector.shape_cast %374 : vector<2xf32> to vector<2x1xf32>
    %376 = vector.broadcast %375 : vector<2x1xf32> to vector<2x128xf32>
    %377 = arith.cmpf oeq, %369, %376 : vector<2x128xf32>
    %c128_i32 = arith.constant 128 : i32
    %378 = vector.broadcast %c128_i32 : i32 to vector<2x128xi32>
    %379 = arith.select %377, %373, %378 : vector<2x128xi1>, vector<2x128xi32>
    %cst_109 = arith.constant dense<2147483647> : vector<2xi32>
    %380 = vector.multi_reduction <minsi>, %379, %cst_109 [1] : vector<2x128xi32> to vector<2xi32>
    %381 = vector.shape_cast %380 : vector<2xi32> to vector<2x1xi32>
    %c0_110 = arith.constant 0 : index
    %c0_111 = arith.constant 0 : index
    %c0_112 = arith.constant 0 : index
    %382 = vector.load %arg19[%c0_110, %c0_111, %c0_112] : memref<5x2x1xi32, #tpu.memory_space<vmem>>, vector<1x2x1xi32>
    %383 = vector.shape_cast %382 : vector<1x2x1xi32> to vector<2x1xi32>
    %384 = vector.shape_cast %381 : vector<2x1xi32> to vector<1x2x1xi32>
    tpu.vector_store %arg19[%c0_110, %c0_111, %c0_112], %384 {strides = array<i32>} : memref<5x2x1xi32, #tpu.memory_space<vmem>>, vector<1x2x1xi32>,
    %385 = vector.broadcast %381 : vector<2x1xi32> to vector<2x40xi32>
    %386 = arith.cmpi eq, %294, %385 : vector<2x40xi32>
    %387 = arith.extui %386 : vector<2x40xi1> to vector<2x40xi32>
    %388 = arith.sitofp %387 : vector<2x40xi32> to vector<2x40xf32>
    %cst_113 = arith.constant dense<0.000000e+00> : vector<2x32xf32>
    %389 = tpu.matmul %388, %284, %cst_113 {dimension_numbers = #tpu.dot_dimension_numbers<[1], [0], [0], [1], [0, 0, 1, 1], [], []>} : vector<2x40xf32>, vector<40x32xf32>, vector<2x32xf32> -> vector<2x32xf32>
    %390 = vector.broadcast %285 : vector<1x32xf32> to vector<2x32xf32>
    %391 = arith.mulf %356, %390 : vector<2x32xf32>
    %cst_114 = arith.constant dense<0.000000e+00> : vector<2xf32>
    %392 = vector.multi_reduction <add>, %391, %cst_114 [1] : vector<2x32xf32> to vector<2xf32>
    %393 = vector.shape_cast %392 : vector<2xf32> to vector<2x1xf32>
    %394 = vector.broadcast %286 : vector<1x1xf32> to vector<2x1xf32>
    %395 = arith.addf %393, %394 : vector<2x1xf32>
    %396 = vector.shape_cast %395 : vector<2x1xf32> to vector<1x2x1xf32>
    %397 = vector.broadcast %396 : vector<1x2x1xf32> to vector<8x2x1xf32>
    %398 = arith.addf %283, %397 : vector<8x2x1xf32>
    %cst_115 = arith.constant dense<0xFF800000> : vector<2x1xf32>
    %399 = vector.multi_reduction <maximumf>, %398, %cst_115 [0] : vector<8x2x1xf32> to vector<2x1xf32>
    %400 = vector.shape_cast %399 : vector<2x1xf32> to vector<1x2x1xf32>
    %401 = vector.broadcast %400 : vector<1x2x1xf32> to vector<8x2x1xf32>
    %402 = arith.subf %398, %401 : vector<8x2x1xf32>
    %403 = math.exp %402 : vector<8x2x1xf32>
    %cst_116 = arith.constant dense<0.000000e+00> : vector<2x1xf32>
    %404 = vector.multi_reduction <add>, %403, %cst_116 [0] : vector<8x2x1xf32> to vector<2x1xf32>
    %405 = vector.shape_cast %404 : vector<2x1xf32> to vector<1x2x1xf32>
    %406 = tpu.reciprocal %405 {approx = true} : vector<1x2x1xf32> -> vector<1x2x1xf32>
    %407 = vector.broadcast %406 : vector<1x2x1xf32> to vector<8x2x1xf32>
    %408 = arith.mulf %403, %407 : vector<8x2x1xf32>
    %409 = vector.broadcast %408 : vector<8x2x1xf32> to vector<8x2x32xf32>
    %410 = arith.mulf %409, %278 : vector<8x2x32xf32>
    %cst_117 = arith.constant dense<0.000000e+00> : vector<2x32xf32>
    %411 = vector.multi_reduction <add>, %410, %cst_117 [0] : vector<8x2x32xf32> to vector<2x32xf32>
    %cst_118 = arith.constant dense<0.000000e+00> : vector<2x96xf32>
    %412 = tpu.matmul %389, %287, %cst_118 {dimension_numbers = #tpu.dot_dimension_numbers<[1], [0], [0], [1], [0, 0, 1, 1], [], []>} : vector<2x32xf32>, vector<32x96xf32>, vector<2x96xf32> -> vector<2x96xf32>
    %cst_119 = arith.constant dense<0.000000e+00> : vector<2x96xf32>
    %413 = tpu.matmul %411, %288, %cst_119 {dimension_numbers = #tpu.dot_dimension_numbers<[1], [0], [0], [1], [0, 0, 1, 1], [], []>} : vector<2x32xf32>, vector<32x96xf32>, vector<2x96xf32> -> vector<2x96xf32>
    %414 = arith.addf %412, %413 : vector<2x96xf32>
    %415 = vector.broadcast %289 : vector<1x96xf32> to vector<2x96xf32>
    %416 = arith.addf %414, %415 : vector<2x96xf32>
    %cst_120 = arith.constant dense<0.000000e+00> : vector<2x96xf32>
    %417 = tpu.matmul %356, %290, %cst_120 {dimension_numbers = #tpu.dot_dimension_numbers<[1], [0], [0], [1], [0, 0, 1, 1], [], []>} : vector<2x32xf32>, vector<32x96xf32>, vector<2x96xf32> -> vector<2x96xf32>
    %418 = vector.broadcast %291 : vector<1x96xf32> to vector<2x96xf32>
    %419 = arith.addf %417, %418 : vector<2x96xf32>
    %420 = vector.extract_strided_slice %416 {offsets = [0, 0], sizes = [2, 32], strides = [1, 1]} : vector<2x96xf32> to vector<2x32xf32>
    %421 = vector.extract_strided_slice %419 {offsets = [0, 0], sizes = [2, 32], strides = [1, 1]} : vector<2x96xf32> to vector<2x32xf32>
    %422 = arith.addf %420, %421 : vector<2x32xf32>
    %423 = arith.negf %422 : vector<2x32xf32>
    %424 = math.exp %423 : vector<2x32xf32>
    %cst_121 = arith.constant 1.000000e+00 : f32
    %425 = vector.broadcast %cst_121 : f32 to vector<2x32xf32>
    %426 = arith.addf %425, %424 : vector<2x32xf32>
    %427 = arith.divf %425, %426 : vector<2x32xf32>
    %428 = vector.extract_strided_slice %416 {offsets = [0, 32], sizes = [2, 32], strides = [1, 1]} : vector<2x96xf32> to vector<2x32xf32>
    %429 = vector.extract_strided_slice %419 {offsets = [0, 32], sizes = [2, 32], strides = [1, 1]} : vector<2x96xf32> to vector<2x32xf32>
    %430 = arith.addf %428, %429 : vector<2x32xf32>
    %431 = arith.negf %430 : vector<2x32xf32>
    %432 = math.exp %431 : vector<2x32xf32>
    %cst_122 = arith.constant 1.000000e+00 : f32
    %433 = vector.broadcast %cst_122 : f32 to vector<2x32xf32>
    %434 = arith.addf %433, %432 : vector<2x32xf32>
    %435 = arith.divf %433, %434 : vector<2x32xf32>
    %436 = vector.extract_strided_slice %416 {offsets = [0, 64], sizes = [2, 32], strides = [1, 1]} : vector<2x96xf32> to vector<2x32xf32>
    %437 = vector.extract_strided_slice %419 {offsets = [0, 64], sizes = [2, 32], strides = [1, 1]} : vector<2x96xf32> to vector<2x32xf32>
    %438 = arith.mulf %427, %437 : vector<2x32xf32>
    %439 = arith.addf %436, %438 : vector<2x32xf32>
    %440 = math.tanh %439 : vector<2x32xf32>
    %cst_123 = arith.constant 1.000000e+00 : f32
    %441 = vector.broadcast %cst_123 : f32 to vector<2x32xf32>
    %442 = arith.subf %441, %435 : vector<2x32xf32>
    %443 = arith.mulf %442, %440 : vector<2x32xf32>
    %444 = arith.mulf %435, %356 : vector<2x32xf32>
    %445 = arith.addf %443, %444 : vector<2x32xf32>
    %cst_124 = arith.constant dense<0.000000e+00> : vector<2x128xf32>
    %446 = tpu.matmul %445, %292, %cst_124 {dimension_numbers = #tpu.dot_dimension_numbers<[1], [0], [0], [1], [0, 0, 1, 1], [], []>} : vector<2x32xf32>, vector<32x128xf32>, vector<2x128xf32> -> vector<2x128xf32>
    %447 = vector.broadcast %293 : vector<1x128xf32> to vector<2x128xf32>
    %448 = arith.addf %446, %447 : vector<2x128xf32>
    %cst_125 = arith.constant dense<0xFF800000> : vector<2xf32>
    %449 = vector.multi_reduction <maximumf>, %448, %cst_125 [1] : vector<2x128xf32> to vector<2xf32>
    %450 = vector.shape_cast %449 : vector<2xf32> to vector<2x1xf32>
    %451 = vector.broadcast %450 : vector<2x1xf32> to vector<2x128xf32>
    %452 = arith.subf %448, %451 : vector<2x128xf32>
    %453 = math.exp %452 : vector<2x128xf32>
    %cst_126 = arith.constant dense<0.000000e+00> : vector<2xf32>
    %454 = vector.multi_reduction <add>, %453, %cst_126 [1] : vector<2x128xf32> to vector<2xf32>
    %455 = vector.shape_cast %454 : vector<2xf32> to vector<2x1xf32>
    %456 = math.log %455 : vector<2x1xf32>
    %457 = vector.broadcast %456 : vector<2x1xf32> to vector<2x128xf32>
    %458 = arith.subf %452, %457 : vector<2x128xf32>
    %c1_127 = arith.constant 1 : index
    %c0_128 = arith.constant 0 : index
    %c0_129 = arith.constant 0 : index
    %459 = vector.load %arg18[%c1_127, %c0_128, %c0_129] : memref<5x2x128xf32, #tpu.memory_space<vmem>>, vector<1x2x128xf32>
    %460 = vector.shape_cast %459 : vector<1x2x128xf32> to vector<2x128xf32>
    %461 = vector.shape_cast %458 : vector<2x128xf32> to vector<1x2x128xf32>
    tpu.vector_store %arg18[%c1_127, %c0_128, %c0_129], %461 {strides = array<i32>} : memref<5x2x128xf32, #tpu.memory_space<vmem>>, vector<1x2x128xf32>,
    %462 = tpu.iota {dimensions = array<i32: 1>} : vector<2x128xi32>
    %cst_130 = arith.constant dense<0xFF800000> : vector<2xf32>
    %463 = vector.multi_reduction <maximumf>, %458, %cst_130 [1] : vector<2x128xf32> to vector<2xf32>
    %464 = vector.shape_cast %463 : vector<2xf32> to vector<2x1xf32>
    %465 = vector.broadcast %464 : vector<2x1xf32> to vector<2x128xf32>
    %466 = arith.cmpf oeq, %458, %465 : vector<2x128xf32>
    %c128_i32_131 = arith.constant 128 : i32
    %467 = vector.broadcast %c128_i32_131 : i32 to vector<2x128xi32>
    %468 = arith.select %466, %462, %467 : vector<2x128xi1>, vector<2x128xi32>
    %cst_132 = arith.constant dense<2147483647> : vector<2xi32>
    %469 = vector.multi_reduction <minsi>, %468, %cst_132 [1] : vector<2x128xi32> to vector<2xi32>
    %470 = vector.shape_cast %469 : vector<2xi32> to vector<2x1xi32>
    %c1_133 = arith.constant 1 : index
    %c0_134 = arith.constant 0 : index
    %c0_135 = arith.constant 0 : index
    %471 = vector.load %arg19[%c1_133, %c0_134, %c0_135] : memref<5x2x1xi32, #tpu.memory_space<vmem>>, vector<1x2x1xi32>
    %472 = vector.shape_cast %471 : vector<1x2x1xi32> to vector<2x1xi32>
    %473 = vector.shape_cast %470 : vector<2x1xi32> to vector<1x2x1xi32>
    tpu.vector_store %arg19[%c1_133, %c0_134, %c0_135], %473 {strides = array<i32>} : memref<5x2x1xi32, #tpu.memory_space<vmem>>, vector<1x2x1xi32>,
    %474 = vector.broadcast %470 : vector<2x1xi32> to vector<2x40xi32>
    %475 = arith.cmpi eq, %294, %474 : vector<2x40xi32>
    %476 = arith.extui %475 : vector<2x40xi1> to vector<2x40xi32>
    %477 = arith.sitofp %476 : vector<2x40xi32> to vector<2x40xf32>
    %cst_136 = arith.constant dense<0.000000e+00> : vector<2x32xf32>
    %478 = tpu.matmul %477, %284, %cst_136 {dimension_numbers = #tpu.dot_dimension_numbers<[1], [0], [0], [1], [0, 0, 1, 1], [], []>} : vector<2x40xf32>, vector<40x32xf32>, vector<2x32xf32> -> vector<2x32xf32>
    %479 = vector.broadcast %285 : vector<1x32xf32> to vector<2x32xf32>
    %480 = arith.mulf %445, %479 : vector<2x32xf32>
    %cst_137 = arith.constant dense<0.000000e+00> : vector<2xf32>
    %481 = vector.multi_reduction <add>, %480, %cst_137 [1] : vector<2x32xf32> to vector<2xf32>
    %482 = vector.shape_cast %481 : vector<2xf32> to vector<2x1xf32>
    %483 = vector.broadcast %286 : vector<1x1xf32> to vector<2x1xf32>
    %484 = arith.addf %482, %483 : vector<2x1xf32>
    %485 = vector.shape_cast %484 : vector<2x1xf32> to vector<1x2x1xf32>
    %486 = vector.broadcast %485 : vector<1x2x1xf32> to vector<8x2x1xf32>
    %487 = arith.addf %283, %486 : vector<8x2x1xf32>
    %cst_138 = arith.constant dense<0xFF800000> : vector<2x1xf32>
    %488 = vector.multi_reduction <maximumf>, %487, %cst_138 [0] : vector<8x2x1xf32> to vector<2x1xf32>
    %489 = vector.shape_cast %488 : vector<2x1xf32> to vector<1x2x1xf32>
    %490 = vector.broadcast %489 : vector<1x2x1xf32> to vector<8x2x1xf32>
    %491 = arith.subf %487, %490 : vector<8x2x1xf32>
    %492 = math.exp %491 : vector<8x2x1xf32>
    %cst_139 = arith.constant dense<0.000000e+00> : vector<2x1xf32>
    %493 = vector.multi_reduction <add>, %492, %cst_139 [0] : vector<8x2x1xf32> to vector<2x1xf32>
    %494 = vector.shape_cast %493 : vector<2x1xf32> to vector<1x2x1xf32>
    %495 = tpu.reciprocal %494 {approx = true} : vector<1x2x1xf32> -> vector<1x2x1xf32>
    %496 = vector.broadcast %495 : vector<1x2x1xf32> to vector<8x2x1xf32>
    %497 = arith.mulf %492, %496 : vector<8x2x1xf32>
    %498 = vector.broadcast %497 : vector<8x2x1xf32> to vector<8x2x32xf32>
    %499 = arith.mulf %498, %278 : vector<8x2x32xf32>
    %cst_140 = arith.constant dense<0.000000e+00> : vector<2x32xf32>
    %500 = vector.multi_reduction <add>, %499, %cst_140 [0] : vector<8x2x32xf32> to vector<2x32xf32>
    %cst_141 = arith.constant dense<0.000000e+00> : vector<2x96xf32>
    %501 = tpu.matmul %478, %287, %cst_141 {dimension_numbers = #tpu.dot_dimension_numbers<[1], [0], [0], [1], [0, 0, 1, 1], [], []>} : vector<2x32xf32>, vector<32x96xf32>, vector<2x96xf32> -> vector<2x96xf32>
    %cst_142 = arith.constant dense<0.000000e+00> : vector<2x96xf32>
    %502 = tpu.matmul %500, %288, %cst_142 {dimension_numbers = #tpu.dot_dimension_numbers<[1], [0], [0], [1], [0, 0, 1, 1], [], []>} : vector<2x32xf32>, vector<32x96xf32>, vector<2x96xf32> -> vector<2x96xf32>
    %503 = arith.addf %501, %502 : vector<2x96xf32>
    %504 = vector.broadcast %289 : vector<1x96xf32> to vector<2x96xf32>
    %505 = arith.addf %503, %504 : vector<2x96xf32>
    %cst_143 = arith.constant dense<0.000000e+00> : vector<2x96xf32>
    %506 = tpu.matmul %445, %290, %cst_143 {dimension_numbers = #tpu.dot_dimension_numbers<[1], [0], [0], [1], [0, 0, 1, 1], [], []>} : vector<2x32xf32>, vector<32x96xf32>, vector<2x96xf32> -> vector<2x96xf32>
    %507 = vector.broadcast %291 : vector<1x96xf32> to vector<2x96xf32>
    %508 = arith.addf %506, %507 : vector<2x96xf32>
    %509 = vector.extract_strided_slice %505 {offsets = [0, 0], sizes = [2, 32], strides = [1, 1]} : vector<2x96xf32> to vector<2x32xf32>
    %510 = vector.extract_strided_slice %508 {offsets = [0, 0], sizes = [2, 32], strides = [1, 1]} : vector<2x96xf32> to vector<2x32xf32>
    %511 = arith.addf %509, %510 : vector<2x32xf32>
    %512 = arith.negf %511 : vector<2x32xf32>
    %513 = math.exp %512 : vector<2x32xf32>
    %cst_144 = arith.constant 1.000000e+00 : f32
    %514 = vector.broadcast %cst_144 : f32 to vector<2x32xf32>
    %515 = arith.addf %514, %513 : vector<2x32xf32>
    %516 = arith.divf %514, %515 : vector<2x32xf32>
    %517 = vector.extract_strided_slice %505 {offsets = [0, 32], sizes = [2, 32], strides = [1, 1]} : vector<2x96xf32> to vector<2x32xf32>
    %518 = vector.extract_strided_slice %508 {offsets = [0, 32], sizes = [2, 32], strides = [1, 1]} : vector<2x96xf32> to vector<2x32xf32>
    %519 = arith.addf %517, %518 : vector<2x32xf32>
    %520 = arith.negf %519 : vector<2x32xf32>
    %521 = math.exp %520 : vector<2x32xf32>
    %cst_145 = arith.constant 1.000000e+00 : f32
    %522 = vector.broadcast %cst_145 : f32 to vector<2x32xf32>
    %523 = arith.addf %522, %521 : vector<2x32xf32>
    %524 = arith.divf %522, %523 : vector<2x32xf32>
    %525 = vector.extract_strided_slice %505 {offsets = [0, 64], sizes = [2, 32], strides = [1, 1]} : vector<2x96xf32> to vector<2x32xf32>
    %526 = vector.extract_strided_slice %508 {offsets = [0, 64], sizes = [2, 32], strides = [1, 1]} : vector<2x96xf32> to vector<2x32xf32>
    %527 = arith.mulf %516, %526 : vector<2x32xf32>
    %528 = arith.addf %525, %527 : vector<2x32xf32>
    %529 = math.tanh %528 : vector<2x32xf32>
    %cst_146 = arith.constant 1.000000e+00 : f32
    %530 = vector.broadcast %cst_146 : f32 to vector<2x32xf32>
    %531 = arith.subf %530, %524 : vector<2x32xf32>
    %532 = arith.mulf %531, %529 : vector<2x32xf32>
    %533 = arith.mulf %524, %445 : vector<2x32xf32>
    %534 = arith.addf %532, %533 : vector<2x32xf32>
    %cst_147 = arith.constant dense<0.000000e+00> : vector<2x128xf32>
    %535 = tpu.matmul %534, %292, %cst_147 {dimension_numbers = #tpu.dot_dimension_numbers<[1], [0], [0], [1], [0, 0, 1, 1], [], []>} : vector<2x32xf32>, vector<32x128xf32>, vector<2x128xf32> -> vector<2x128xf32>
    %536 = vector.broadcast %293 : vector<1x128xf32> to vector<2x128xf32>
    %537 = arith.addf %535, %536 : vector<2x128xf32>
    %cst_148 = arith.constant dense<0xFF800000> : vector<2xf32>
    %538 = vector.multi_reduction <maximumf>, %537, %cst_148 [1] : vector<2x128xf32> to vector<2xf32>
    %539 = vector.shape_cast %538 : vector<2xf32> to vector<2x1xf32>
    %540 = vector.broadcast %539 : vector<2x1xf32> to vector<2x128xf32>
    %541 = arith.subf %537, %540 : vector<2x128xf32>
    %542 = math.exp %541 : vector<2x128xf32>
    %cst_149 = arith.constant dense<0.000000e+00> : vector<2xf32>
    %543 = vector.multi_reduction <add>, %542, %cst_149 [1] : vector<2x128xf32> to vector<2xf32>
    %544 = vector.shape_cast %543 : vector<2xf32> to vector<2x1xf32>
    %545 = math.log %544 : vector<2x1xf32>
    %546 = vector.broadcast %545 : vector<2x1xf32> to vector<2x128xf32>
    %547 = arith.subf %541, %546 : vector<2x128xf32>
    %c2_150 = arith.constant 2 : index
    %c0_151 = arith.constant 0 : index
    %c0_152 = arith.constant 0 : index
    %548 = vector.load %arg18[%c2_150, %c0_151, %c0_152] : memref<5x2x128xf32, #tpu.memory_space<vmem>>, vector<1x2x128xf32>
    %549 = vector.shape_cast %548 : vector<1x2x128xf32> to vector<2x128xf32>
    %550 = vector.shape_cast %547 : vector<2x128xf32> to vector<1x2x128xf32>
    tpu.vector_store %arg18[%c2_150, %c0_151, %c0_152], %550 {strides = array<i32>} : memref<5x2x128xf32, #tpu.memory_space<vmem>>, vector<1x2x128xf32>,
    %551 = tpu.iota {dimensions = array<i32: 1>} : vector<2x128xi32>
    %cst_153 = arith.constant dense<0xFF800000> : vector<2xf32>
    %552 = vector.multi_reduction <maximumf>, %547, %cst_153 [1] : vector<2x128xf32> to vector<2xf32>
    %553 = vector.shape_cast %552 : vector<2xf32> to vector<2x1xf32>
    %554 = vector.broadcast %553 : vector<2x1xf32> to vector<2x128xf32>
    %555 = arith.cmpf oeq, %547, %554 : vector<2x128xf32>
    %c128_i32_154 = arith.constant 128 : i32
    %556 = vector.broadcast %c128_i32_154 : i32 to vector<2x128xi32>
    %557 = arith.select %555, %551, %556 : vector<2x128xi1>, vector<2x128xi32>
    %cst_155 = arith.constant dense<2147483647> : vector<2xi32>
    %558 = vector.multi_reduction <minsi>, %557, %cst_155 [1] : vector<2x128xi32> to vector<2xi32>
    %559 = vector.shape_cast %558 : vector<2xi32> to vector<2x1xi32>
    %c2_156 = arith.constant 2 : index
    %c0_157 = arith.constant 0 : index
    %c0_158 = arith.constant 0 : index
    %560 = vector.load %arg19[%c2_156, %c0_157, %c0_158] : memref<5x2x1xi32, #tpu.memory_space<vmem>>, vector<1x2x1xi32>
    %561 = vector.shape_cast %560 : vector<1x2x1xi32> to vector<2x1xi32>
    %562 = vector.shape_cast %559 : vector<2x1xi32> to vector<1x2x1xi32>
    tpu.vector_store %arg19[%c2_156, %c0_157, %c0_158], %562 {strides = array<i32>} : memref<5x2x1xi32, #tpu.memory_space<vmem>>, vector<1x2x1xi32>,
    %563 = vector.broadcast %559 : vector<2x1xi32> to vector<2x40xi32>
    %564 = arith.cmpi eq, %294, %563 : vector<2x40xi32>
    %565 = arith.extui %564 : vector<2x40xi1> to vector<2x40xi32>
    %566 = arith.sitofp %565 : vector<2x40xi32> to vector<2x40xf32>
    %cst_159 = arith.constant dense<0.000000e+00> : vector<2x32xf32>
    %567 = tpu.matmul %566, %284, %cst_159 {dimension_numbers = #tpu.dot_dimension_numbers<[1], [0], [0], [1], [0, 0, 1, 1], [], []>} : vector<2x40xf32>, vector<40x32xf32>, vector<2x32xf32> -> vector<2x32xf32>
    %568 = vector.broadcast %285 : vector<1x32xf32> to vector<2x32xf32>
    %569 = arith.mulf %534, %568 : vector<2x32xf32>
    %cst_160 = arith.constant dense<0.000000e+00> : vector<2xf32>
    %570 = vector.multi_reduction <add>, %569, %cst_160 [1] : vector<2x32xf32> to vector<2xf32>
    %571 = vector.shape_cast %570 : vector<2xf32> to vector<2x1xf32>
    %572 = vector.broadcast %286 : vector<1x1xf32> to vector<2x1xf32>
    %573 = arith.addf %571, %572 : vector<2x1xf32>
    %574 = vector.shape_cast %573 : vector<2x1xf32> to vector<1x2x1xf32>
    %575 = vector.broadcast %574 : vector<1x2x1xf32> to vector<8x2x1xf32>
    %576 = arith.addf %283, %575 : vector<8x2x1xf32>
    %cst_161 = arith.constant dense<0xFF800000> : vector<2x1xf32>
    %577 = vector.multi_reduction <maximumf>, %576, %cst_161 [0] : vector<8x2x1xf32> to vector<2x1xf32>
    %578 = vector.shape_cast %577 : vector<2x1xf32> to vector<1x2x1xf32>
    %579 = vector.broadcast %578 : vector<1x2x1xf32> to vector<8x2x1xf32>
    %580 = arith.subf %576, %579 : vector<8x2x1xf32>
    %581 = math.exp %580 : vector<8x2x1xf32>
    %cst_162 = arith.constant dense<0.000000e+00> : vector<2x1xf32>
    %582 = vector.multi_reduction <add>, %581, %cst_162 [0] : vector<8x2x1xf32> to vector<2x1xf32>
    %583 = vector.shape_cast %582 : vector<2x1xf32> to vector<1x2x1xf32>
    %584 = tpu.reciprocal %583 {approx = true} : vector<1x2x1xf32> -> vector<1x2x1xf32>
    %585 = vector.broadcast %584 : vector<1x2x1xf32> to vector<8x2x1xf32>
    %586 = arith.mulf %581, %585 : vector<8x2x1xf32>
    %587 = vector.broadcast %586 : vector<8x2x1xf32> to vector<8x2x32xf32>
    %588 = arith.mulf %587, %278 : vector<8x2x32xf32>
    %cst_163 = arith.constant dense<0.000000e+00> : vector<2x32xf32>
    %589 = vector.multi_reduction <add>, %588, %cst_163 [0] : vector<8x2x32xf32> to vector<2x32xf32>
    %cst_164 = arith.constant dense<0.000000e+00> : vector<2x96xf32>
    %590 = tpu.matmul %567, %287, %cst_164 {dimension_numbers = #tpu.dot_dimension_numbers<[1], [0], [0], [1], [0, 0, 1, 1], [], []>} : vector<2x32xf32>, vector<32x96xf32>, vector<2x96xf32> -> vector<2x96xf32>
    %cst_165 = arith.constant dense<0.000000e+00> : vector<2x96xf32>
    %591 = tpu.matmul %589, %288, %cst_165 {dimension_numbers = #tpu.dot_dimension_numbers<[1], [0], [0], [1], [0, 0, 1, 1], [], []>} : vector<2x32xf32>, vector<32x96xf32>, vector<2x96xf32> -> vector<2x96xf32>
    %592 = arith.addf %590, %591 : vector<2x96xf32>
    %593 = vector.broadcast %289 : vector<1x96xf32> to vector<2x96xf32>
    %594 = arith.addf %592, %593 : vector<2x96xf32>
    %cst_166 = arith.constant dense<0.000000e+00> : vector<2x96xf32>
    %595 = tpu.matmul %534, %290, %cst_166 {dimension_numbers = #tpu.dot_dimension_numbers<[1], [0], [0], [1], [0, 0, 1, 1], [], []>} : vector<2x32xf32>, vector<32x96xf32>, vector<2x96xf32> -> vector<2x96xf32>
    %596 = vector.broadcast %291 : vector<1x96xf32> to vector<2x96xf32>
    %597 = arith.addf %595, %596 : vector<2x96xf32>
    %598 = vector.extract_strided_slice %594 {offsets = [0, 0], sizes = [2, 32], strides = [1, 1]} : vector<2x96xf32> to vector<2x32xf32>
    %599 = vector.extract_strided_slice %597 {offsets = [0, 0], sizes = [2, 32], strides = [1, 1]} : vector<2x96xf32> to vector<2x32xf32>
    %600 = arith.addf %598, %599 : vector<2x32xf32>
    %601 = arith.negf %600 : vector<2x32xf32>
    %602 = math.exp %601 : vector<2x32xf32>
    %cst_167 = arith.constant 1.000000e+00 : f32
    %603 = vector.broadcast %cst_167 : f32 to vector<2x32xf32>
    %604 = arith.addf %603, %602 : vector<2x32xf32>
    %605 = arith.divf %603, %604 : vector<2x32xf32>
    %606 = vector.extract_strided_slice %594 {offsets = [0, 32], sizes = [2, 32], strides = [1, 1]} : vector<2x96xf32> to vector<2x32xf32>
    %607 = vector.extract_strided_slice %597 {offsets = [0, 32], sizes = [2, 32], strides = [1, 1]} : vector<2x96xf32> to vector<2x32xf32>
    %608 = arith.addf %606, %607 : vector<2x32xf32>
    %609 = arith.negf %608 : vector<2x32xf32>
    %610 = math.exp %609 : vector<2x32xf32>
    %cst_168 = arith.constant 1.000000e+00 : f32
    %611 = vector.broadcast %cst_168 : f32 to vector<2x32xf32>
    %612 = arith.addf %611, %610 : vector<2x32xf32>
    %613 = arith.divf %611, %612 : vector<2x32xf32>
    %614 = vector.extract_strided_slice %594 {offsets = [0, 64], sizes = [2, 32], strides = [1, 1]} : vector<2x96xf32> to vector<2x32xf32>
    %615 = vector.extract_strided_slice %597 {offsets = [0, 64], sizes = [2, 32], strides = [1, 1]} : vector<2x96xf32> to vector<2x32xf32>
    %616 = arith.mulf %605, %615 : vector<2x32xf32>
    %617 = arith.addf %614, %616 : vector<2x32xf32>
    %618 = math.tanh %617 : vector<2x32xf32>
    %cst_169 = arith.constant 1.000000e+00 : f32
    %619 = vector.broadcast %cst_169 : f32 to vector<2x32xf32>
    %620 = arith.subf %619, %613 : vector<2x32xf32>
    %621 = arith.mulf %620, %618 : vector<2x32xf32>
    %622 = arith.mulf %613, %534 : vector<2x32xf32>
    %623 = arith.addf %621, %622 : vector<2x32xf32>
    %cst_170 = arith.constant dense<0.000000e+00> : vector<2x128xf32>
    %624 = tpu.matmul %623, %292, %cst_170 {dimension_numbers = #tpu.dot_dimension_numbers<[1], [0], [0], [1], [0, 0, 1, 1], [], []>} : vector<2x32xf32>, vector<32x128xf32>, vector<2x128xf32> -> vector<2x128xf32>
    %625 = vector.broadcast %293 : vector<1x128xf32> to vector<2x128xf32>
    %626 = arith.addf %624, %625 : vector<2x128xf32>
    %cst_171 = arith.constant dense<0xFF800000> : vector<2xf32>
    %627 = vector.multi_reduction <maximumf>, %626, %cst_171 [1] : vector<2x128xf32> to vector<2xf32>
    %628 = vector.shape_cast %627 : vector<2xf32> to vector<2x1xf32>
    %629 = vector.broadcast %628 : vector<2x1xf32> to vector<2x128xf32>
    %630 = arith.subf %626, %629 : vector<2x128xf32>
    %631 = math.exp %630 : vector<2x128xf32>
    %cst_172 = arith.constant dense<0.000000e+00> : vector<2xf32>
    %632 = vector.multi_reduction <add>, %631, %cst_172 [1] : vector<2x128xf32> to vector<2xf32>
    %633 = vector.shape_cast %632 : vector<2xf32> to vector<2x1xf32>
    %634 = math.log %633 : vector<2x1xf32>
    %635 = vector.broadcast %634 : vector<2x1xf32> to vector<2x128xf32>
    %636 = arith.subf %630, %635 : vector<2x128xf32>
    %c3_173 = arith.constant 3 : index
    %c0_174 = arith.constant 0 : index
    %c0_175 = arith.constant 0 : index
    %637 = vector.load %arg18[%c3_173, %c0_174, %c0_175] : memref<5x2x128xf32, #tpu.memory_space<vmem>>, vector<1x2x128xf32>
    %638 = vector.shape_cast %637 : vector<1x2x128xf32> to vector<2x128xf32>
    %639 = vector.shape_cast %636 : vector<2x128xf32> to vector<1x2x128xf32>
    tpu.vector_store %arg18[%c3_173, %c0_174, %c0_175], %639 {strides = array<i32>} : memref<5x2x128xf32, #tpu.memory_space<vmem>>, vector<1x2x128xf32>,
    %640 = tpu.iota {dimensions = array<i32: 1>} : vector<2x128xi32>
    %cst_176 = arith.constant dense<0xFF800000> : vector<2xf32>
    %641 = vector.multi_reduction <maximumf>, %636, %cst_176 [1] : vector<2x128xf32> to vector<2xf32>
    %642 = vector.shape_cast %641 : vector<2xf32> to vector<2x1xf32>
    %643 = vector.broadcast %642 : vector<2x1xf32> to vector<2x128xf32>
    %644 = arith.cmpf oeq, %636, %643 : vector<2x128xf32>
    %c128_i32_177 = arith.constant 128 : i32
    %645 = vector.broadcast %c128_i32_177 : i32 to vector<2x128xi32>
    %646 = arith.select %644, %640, %645 : vector<2x128xi1>, vector<2x128xi32>
    %cst_178 = arith.constant dense<2147483647> : vector<2xi32>
    %647 = vector.multi_reduction <minsi>, %646, %cst_178 [1] : vector<2x128xi32> to vector<2xi32>
    %648 = vector.shape_cast %647 : vector<2xi32> to vector<2x1xi32>
    %c3_179 = arith.constant 3 : index
    %c0_180 = arith.constant 0 : index
    %c0_181 = arith.constant 0 : index
    %649 = vector.load %arg19[%c3_179, %c0_180, %c0_181] : memref<5x2x1xi32, #tpu.memory_space<vmem>>, vector<1x2x1xi32>
    %650 = vector.shape_cast %649 : vector<1x2x1xi32> to vector<2x1xi32>
    %651 = vector.shape_cast %648 : vector<2x1xi32> to vector<1x2x1xi32>
    tpu.vector_store %arg19[%c3_179, %c0_180, %c0_181], %651 {strides = array<i32>} : memref<5x2x1xi32, #tpu.memory_space<vmem>>, vector<1x2x1xi32>,
    %652 = vector.broadcast %648 : vector<2x1xi32> to vector<2x40xi32>
    %653 = arith.cmpi eq, %294, %652 : vector<2x40xi32>
    %654 = arith.extui %653 : vector<2x40xi1> to vector<2x40xi32>
    %655 = arith.sitofp %654 : vector<2x40xi32> to vector<2x40xf32>
    %cst_182 = arith.constant dense<0.000000e+00> : vector<2x32xf32>
    %656 = tpu.matmul %655, %284, %cst_182 {dimension_numbers = #tpu.dot_dimension_numbers<[1], [0], [0], [1], [0, 0, 1, 1], [], []>} : vector<2x40xf32>, vector<40x32xf32>, vector<2x32xf32> -> vector<2x32xf32>
    %657 = vector.broadcast %285 : vector<1x32xf32> to vector<2x32xf32>
    %658 = arith.mulf %623, %657 : vector<2x32xf32>
    %cst_183 = arith.constant dense<0.000000e+00> : vector<2xf32>
    %659 = vector.multi_reduction <add>, %658, %cst_183 [1] : vector<2x32xf32> to vector<2xf32>
    %660 = vector.shape_cast %659 : vector<2xf32> to vector<2x1xf32>
    %661 = vector.broadcast %286 : vector<1x1xf32> to vector<2x1xf32>
    %662 = arith.addf %660, %661 : vector<2x1xf32>
    %663 = vector.shape_cast %662 : vector<2x1xf32> to vector<1x2x1xf32>
    %664 = vector.broadcast %663 : vector<1x2x1xf32> to vector<8x2x1xf32>
    %665 = arith.addf %283, %664 : vector<8x2x1xf32>
    %cst_184 = arith.constant dense<0xFF800000> : vector<2x1xf32>
    %666 = vector.multi_reduction <maximumf>, %665, %cst_184 [0] : vector<8x2x1xf32> to vector<2x1xf32>
    %667 = vector.shape_cast %666 : vector<2x1xf32> to vector<1x2x1xf32>
    %668 = vector.broadcast %667 : vector<1x2x1xf32> to vector<8x2x1xf32>
    %669 = arith.subf %665, %668 : vector<8x2x1xf32>
    %670 = math.exp %669 : vector<8x2x1xf32>
    %cst_185 = arith.constant dense<0.000000e+00> : vector<2x1xf32>
    %671 = vector.multi_reduction <add>, %670, %cst_185 [0] : vector<8x2x1xf32> to vector<2x1xf32>
    %672 = vector.shape_cast %671 : vector<2x1xf32> to vector<1x2x1xf32>
    %673 = tpu.reciprocal %672 {approx = true} : vector<1x2x1xf32> -> vector<1x2x1xf32>
    %674 = vector.broadcast %673 : vector<1x2x1xf32> to vector<8x2x1xf32>
    %675 = arith.mulf %670, %674 : vector<8x2x1xf32>
    %676 = vector.broadcast %675 : vector<8x2x1xf32> to vector<8x2x32xf32>
    %677 = arith.mulf %676, %278 : vector<8x2x32xf32>
    %cst_186 = arith.constant dense<0.000000e+00> : vector<2x32xf32>
    %678 = vector.multi_reduction <add>, %677, %cst_186 [0] : vector<8x2x32xf32> to vector<2x32xf32>
    %cst_187 = arith.constant dense<0.000000e+00> : vector<2x96xf32>
    %679 = tpu.matmul %656, %287, %cst_187 {dimension_numbers = #tpu.dot_dimension_numbers<[1], [0], [0], [1], [0, 0, 1, 1], [], []>} : vector<2x32xf32>, vector<32x96xf32>, vector<2x96xf32> -> vector<2x96xf32>
    %cst_188 = arith.constant dense<0.000000e+00> : vector<2x96xf32>
    %680 = tpu.matmul %678, %288, %cst_188 {dimension_numbers = #tpu.dot_dimension_numbers<[1], [0], [0], [1], [0, 0, 1, 1], [], []>} : vector<2x32xf32>, vector<32x96xf32>, vector<2x96xf32> -> vector<2x96xf32>
    %681 = arith.addf %679, %680 : vector<2x96xf32>
    %682 = vector.broadcast %289 : vector<1x96xf32> to vector<2x96xf32>
    %683 = arith.addf %681, %682 : vector<2x96xf32>
    %cst_189 = arith.constant dense<0.000000e+00> : vector<2x96xf32>
    %684 = tpu.matmul %623, %290, %cst_189 {dimension_numbers = #tpu.dot_dimension_numbers<[1], [0], [0], [1], [0, 0, 1, 1], [], []>} : vector<2x32xf32>, vector<32x96xf32>, vector<2x96xf32> -> vector<2x96xf32>
    %685 = vector.broadcast %291 : vector<1x96xf32> to vector<2x96xf32>
    %686 = arith.addf %684, %685 : vector<2x96xf32>
    %687 = vector.extract_strided_slice %683 {offsets = [0, 0], sizes = [2, 32], strides = [1, 1]} : vector<2x96xf32> to vector<2x32xf32>
    %688 = vector.extract_strided_slice %686 {offsets = [0, 0], sizes = [2, 32], strides = [1, 1]} : vector<2x96xf32> to vector<2x32xf32>
    %689 = arith.addf %687, %688 : vector<2x32xf32>
    %690 = arith.negf %689 : vector<2x32xf32>
    %691 = math.exp %690 : vector<2x32xf32>
    %cst_190 = arith.constant 1.000000e+00 : f32
    %692 = vector.broadcast %cst_190 : f32 to vector<2x32xf32>
    %693 = arith.addf %692, %691 : vector<2x32xf32>
    %694 = arith.divf %692, %693 : vector<2x32xf32>
    %695 = vector.extract_strided_slice %683 {offsets = [0, 32], sizes = [2, 32], strides = [1, 1]} : vector<2x96xf32> to vector<2x32xf32>
    %696 = vector.extract_strided_slice %686 {offsets = [0, 32], sizes = [2, 32], strides = [1, 1]} : vector<2x96xf32> to vector<2x32xf32>
    %697 = arith.addf %695, %696 : vector<2x32xf32>
    %698 = arith.negf %697 : vector<2x32xf32>
    %699 = math.exp %698 : vector<2x32xf32>
    %cst_191 = arith.constant 1.000000e+00 : f32
    %700 = vector.broadcast %cst_191 : f32 to vector<2x32xf32>
    %701 = arith.addf %700, %699 : vector<2x32xf32>
    %702 = arith.divf %700, %701 : vector<2x32xf32>
    %703 = vector.extract_strided_slice %683 {offsets = [0, 64], sizes = [2, 32], strides = [1, 1]} : vector<2x96xf32> to vector<2x32xf32>
    %704 = vector.extract_strided_slice %686 {offsets = [0, 64], sizes = [2, 32], strides = [1, 1]} : vector<2x96xf32> to vector<2x32xf32>
    %705 = arith.mulf %694, %704 : vector<2x32xf32>
    %706 = arith.addf %703, %705 : vector<2x32xf32>
    %707 = math.tanh %706 : vector<2x32xf32>
    %cst_192 = arith.constant 1.000000e+00 : f32
    %708 = vector.broadcast %cst_192 : f32 to vector<2x32xf32>
    %709 = arith.subf %708, %702 : vector<2x32xf32>
    %710 = arith.mulf %709, %707 : vector<2x32xf32>
    %711 = arith.mulf %702, %623 : vector<2x32xf32>
    %712 = arith.addf %710, %711 : vector<2x32xf32>
    %cst_193 = arith.constant dense<0.000000e+00> : vector<2x128xf32>
    %713 = tpu.matmul %712, %292, %cst_193 {dimension_numbers = #tpu.dot_dimension_numbers<[1], [0], [0], [1], [0, 0, 1, 1], [], []>} : vector<2x32xf32>, vector<32x128xf32>, vector<2x128xf32> -> vector<2x128xf32>
    %714 = vector.broadcast %293 : vector<1x128xf32> to vector<2x128xf32>
    %715 = arith.addf %713, %714 : vector<2x128xf32>
    %cst_194 = arith.constant dense<0xFF800000> : vector<2xf32>
    %716 = vector.multi_reduction <maximumf>, %715, %cst_194 [1] : vector<2x128xf32> to vector<2xf32>
    %717 = vector.shape_cast %716 : vector<2xf32> to vector<2x1xf32>
    %718 = vector.broadcast %717 : vector<2x1xf32> to vector<2x128xf32>
    %719 = arith.subf %715, %718 : vector<2x128xf32>
    %720 = math.exp %719 : vector<2x128xf32>
    %cst_195 = arith.constant dense<0.000000e+00> : vector<2xf32>
    %721 = vector.multi_reduction <add>, %720, %cst_195 [1] : vector<2x128xf32> to vector<2xf32>
    %722 = vector.shape_cast %721 : vector<2xf32> to vector<2x1xf32>
    %723 = math.log %722 : vector<2x1xf32>
    %724 = vector.broadcast %723 : vector<2x1xf32> to vector<2x128xf32>
    %725 = arith.subf %719, %724 : vector<2x128xf32>
    %c4_196 = arith.constant 4 : index
    %c0_197 = arith.constant 0 : index
    %c0_198 = arith.constant 0 : index
    %726 = vector.load %arg18[%c4_196, %c0_197, %c0_198] : memref<5x2x128xf32, #tpu.memory_space<vmem>>, vector<1x2x128xf32>
    %727 = vector.shape_cast %726 : vector<1x2x128xf32> to vector<2x128xf32>
    %728 = vector.shape_cast %725 : vector<2x128xf32> to vector<1x2x128xf32>
    tpu.vector_store %arg18[%c4_196, %c0_197, %c0_198], %728 {strides = array<i32>} : memref<5x2x128xf32, #tpu.memory_space<vmem>>, vector<1x2x128xf32>,
    %729 = tpu.iota {dimensions = array<i32: 1>} : vector<2x128xi32>
    %cst_199 = arith.constant dense<0xFF800000> : vector<2xf32>
    %730 = vector.multi_reduction <maximumf>, %725, %cst_199 [1] : vector<2x128xf32> to vector<2xf32>
    %731 = vector.shape_cast %730 : vector<2xf32> to vector<2x1xf32>
    %732 = vector.broadcast %731 : vector<2x1xf32> to vector<2x128xf32>
    %733 = arith.cmpf oeq, %725, %732 : vector<2x128xf32>
    %c128_i32_200 = arith.constant 128 : i32
    %734 = vector.broadcast %c128_i32_200 : i32 to vector<2x128xi32>
    %735 = arith.select %733, %729, %734 : vector<2x128xi1>, vector<2x128xi32>
    %cst_201 = arith.constant dense<2147483647> : vector<2xi32>
    %736 = vector.multi_reduction <minsi>, %735, %cst_201 [1] : vector<2x128xi32> to vector<2xi32>
    %737 = vector.shape_cast %736 : vector<2xi32> to vector<2x1xi32>
    %c4_202 = arith.constant 4 : index
    %c0_203 = arith.constant 0 : index
    %c0_204 = arith.constant 0 : index
    %738 = vector.load %arg19[%c4_202, %c0_203, %c0_204] : memref<5x2x1xi32, #tpu.memory_space<vmem>>, vector<1x2x1xi32>
    %739 = vector.shape_cast %738 : vector<1x2x1xi32> to vector<2x1xi32>
    %740 = vector.shape_cast %737 : vector<2x1xi32> to vector<1x2x1xi32>
    tpu.vector_store %arg19[%c4_202, %c0_203, %c0_204], %740 {strides = array<i32>} : memref<5x2x1xi32, #tpu.memory_space<vmem>>, vector<1x2x1xi32>,
    return
  }
}

</mosaic_0001>

<llo_original>
// kernel: models_forward.1
$region0: #{models_forward.1}
  #allocation0 [shape = 'u32[]', space=smem, size = 0x4, offset = 0x4, fixed_abs, tag = 'smem constant byte address 0x4 - core index']
  #allocation1 [shape = 'u32[144,128]{1,0:T(1,128)}', space=vmem, size = 0x12000, scoped, tag = 'internal scratch']
  #allocation2 [shape = 'f32[8,2,32]{2,1,0:T(2,128)}', space=vmem, size = 0x2000, scoped, tag = 'scratch operand']
  #allocation3 [shape = 'f32[1,1]{1,0:T(1,128)S(1)}', space=vmem, size = 0x200, scoped, tag = 'scoped memory for models_forward.1']
  %s0 = inlined_call_operand.vmem [shape: f32[16,64], index: 0, kind: input, shape index: {}]
  %s1 = inlined_call_operand.vmem [shape: f32[64,32], index: 1, kind: input, shape index: {}]
  %s2 = inlined_call_operand.vmem [shape: f32[1,32], index: 2, kind: input, shape index: {}]
  %s3 = inlined_call_operand.vmem [shape: f32[32,96], index: 3, kind: input, shape index: {}]
  %s4 = inlined_call_operand.vmem [shape: f32[1,96], index: 4, kind: input, shape index: {}]
  %s5 = inlined_call_operand.vmem [shape: f32[32,96], index: 5, kind: input, shape index: {}]
  %s6 = inlined_call_operand.hbm [shape: f32[1,96], index: 6, kind: input, shape index: {}]
  %s7 = inlined_call_operand.vmem [shape: f32[40,32], index: 7, kind: input, shape index: {}]
  %s8 = inlined_call_operand.hbm [shape: f32[1,1,32], index: 8, kind: input, shape index: {}]
  %s9 = inlined_call_operand.hbm [shape: f32[1,32], index: 9, kind: input, shape index: {}]
  %s10 = inlined_call_operand.<no memory space> [shape: f32[1,1], index: 10, kind: input, shape index: {}]
  %s11 = inlined_call_operand.vmem [shape: f32[32,96], index: 11, kind: input, shape index: {}]
  %s12 = inlined_call_operand.vmem [shape: f32[32,96], index: 12, kind: input, shape index: {}]
  %s13 = inlined_call_operand.hbm [shape: f32[1,96], index: 13, kind: input, shape index: {}]
  %s14 = inlined_call_operand.vmem [shape: f32[32,96], index: 14, kind: input, shape index: {}]
  %s15 = inlined_call_operand.hbm [shape: f32[1,96], index: 15, kind: input, shape index: {}]
  %s16 = inlined_call_operand.vmem [shape: f32[32,128], index: 16, kind: input, shape index: {}]
  %s17 = inlined_call_operand.vmem [shape: f32[1,128], index: 17, kind: input, shape index: {}]
  %s18 = inlined_call_operand.hbm [shape: f32[5,2,128], index: 18, kind: output, shape index: {0}]
  %s19 = inlined_call_operand.vmem [shape: s32[5,2,1], index: 19, kind: output, shape index: {1}]
  %20 = xla_tuple %s18, %s19
  %s21 = sld [smem:[#allocation0]]
  $region110: #{models_forward.1} parent=0
    _
  %s23 = ssub.s32 1, %s21
  %s24 = scalar_select 0, %s23, %s21
  %v25 = vstv %s10
  %26 = vst [vmem:[#allocation3] sm:$0x1] %v25
  $region1: #{models_forward.1} parent=0
    #allocation4 [shape = 'u8[512]{0}', space=vmem, size = 0x400, scoped, tag = 'input window, operand 6, single buffered']
    #allocation5 [shape = 's32[1]{0}', space=sflag, size = 0x4, scoped, tag = 'scoped memory for models_forward.1']
    #allocation6 [shape = 's32[1]{0}', space=sflag, size = 0x4, scoped, tag = 'scoped memory for models_forward.1']
    #allocation7 [shape = 'u8[512]{0}', space=vmem, size = 0x400, scoped, tag = 'input window, operand 8, single buffered']
    #allocation8 [shape = 's32[1]{0}', space=sflag, size = 0x4, scoped, tag = 'scoped memory for models_forward.1']
    #allocation9 [shape = 'u8[512]{0}', space=vmem, size = 0x400, scoped, tag = 'input window, operand 9, single buffered']
    #allocation10 [shape = 'u8[512]{0}', space=vmem, size = 0x400, scoped, tag = 'input window, operand 13, single buffered']
    #allocation11 [shape = 's32[1]{0}', space=sflag, size = 0x4, scoped, tag = 'scoped memory for models_forward.1']
    #allocation12 [shape = 'u8[512]{0}', space=vmem, size = 0x400, scoped, tag = 'input window, operand 15, single buffered']
    #allocation13 [shape = 'u8[5120]{0}', space=vmem, size = 0x1400, scoped, tag = 'output window, operand 0, single buffered']
    %27 = vsyncpa [#allocation5], 0
    %28 = vsyncpa [#allocation8], 0
    %29 = vsyncpa [#allocation11], 0
    %30 = vsyncpa [#allocation6], 0
    // Predicated region
    $region2: #{models_forward.1} parent=1 // pred_check
      _
    $region3: #{models_forward.1} parent=1 // pred_check_branch
      %32 = sbr.rel (0) target = $region5
    $region4: #{models_forward.1} parent=1 // pred_region
      _
    $region5: #{models_forward.1} parent=1 // pred_fallthru
      _
    // Predicated region
    $region6: #{models_forward.1} parent=1 // pred_check
      _
    $region7: #{models_forward.1} parent=1 // pred_check_branch
      %34 = sbr.rel (0) target = $region9
    $region8: #{models_forward.1} parent=1 // pred_region
      _
    $region9: #{models_forward.1} parent=1 // pred_fallthru
      _
    // Predicated region
    $region10: #{models_forward.1} parent=1 // pred_check
      _
    $region11: #{models_forward.1} parent=1 // pred_check_branch
      %36 = sbr.rel (0) target = $region13
    $region12: #{models_forward.1} parent=1 // pred_region
      _
    $region13: #{models_forward.1} parent=1 // pred_fallthru
      _
    // Predicated region
    $region14: #{models_forward.1} parent=1 // pred_check
      _
    $region15: #{models_forward.1} parent=1 // pred_check_branch
      %38 = sbr.rel (0) target = $region17
    $region16: #{models_forward.1} parent=1 // pred_region
      _
    $region17: #{models_forward.1} parent=1 // pred_fallthru
      _
    // Predicated region
    $region18: #{models_forward.1} parent=1 // pred_check
      _
    $region19: #{models_forward.1} parent=1 // pred_check_branch
      %40 = sbr.rel (0) target = $region21
    $region20: #{models_forward.1} parent=1 // pred_region
      _
    $region21: #{models_forward.1} parent=1 // pred_fallthru
      _
    // Predicated region
    $region22: #{models_forward.1} parent=1 // pred_check
      _
    $region23: #{models_forward.1} parent=1 // pred_check_branch
      %42 = sbr.rel (0) target = $region25
    $region24: #{models_forward.1} parent=1 // pred_region
      _
    $region25: #{models_forward.1} parent=1 // pred_fallthru
      _
    // Predicated region
    $region26: #{models_forward.1} parent=1 // pred_check
      _
    $region27: #{models_forward.1} parent=1 // pred_check_branch
      %44 = sbr.rel (0) target = $region29
    $region28: #{models_forward.1} parent=1 // pred_region
      %s46 = ssub.s32 16, 16
      %47 = vsyncadd [#allocation5], %s46
      %s49 = sshll.u32 [#allocation4], 4
      %s50 = int_to_ptr.vmem [resolvable:$true] %s49
      %52 = dma.hbm_to_vmem [thread:$0]  %s6, 16, %s50, [#allocation5]
    $region29: #{models_forward.1} parent=1 // pred_fallthru
      _
    // Predicated region
    $region30: #{models_forward.1} parent=1 // pred_check
      _
    $region31: #{models_forward.1} parent=1 // pred_check_branch
      %54 = sbr.rel (0) target = $region33
    $region32: #{models_forward.1} parent=1 // pred_region
      _
    $region33: #{models_forward.1} parent=1 // pred_fallthru
      _
    // Predicated region
    $region34: #{models_forward.1} parent=1 // pred_check
      _
    $region35: #{models_forward.1} parent=1 // pred_check_branch
      %56 = sbr.rel (0) target = $region37
    $region36: #{models_forward.1} parent=1 // pred_region
      %s58 = ssub.s32 16, 16
      %59 = vsyncadd [#allocation8], %s58
      %s61 = sshll.u32 [#allocation7], 4
      %s62 = int_to_ptr.vmem [resolvable:$true] %s61
      %64 = dma.hbm_to_vmem [thread:$0]  %s8, 16, %s62, [#allocation8]
    $region37: #{models_forward.1} parent=1 // pred_fallthru
      _
    // Predicated region
    $region38: #{models_forward.1} parent=1 // pred_check
      _
    $region39: #{models_forward.1} parent=1 // pred_check_branch
      %66 = sbr.rel (0) target = $region41
    $region40: #{models_forward.1} parent=1 // pred_region
      %s68 = ssub.s32 16, 16
      %69 = vsyncadd [#allocation8], %s68
      %s71 = sshll.u32 [#allocation9], 4
      %s72 = int_to_ptr.vmem [resolvable:$true] %s71
      %74 = dma.hbm_to_vmem [thread:$0]  %s9, 16, %s72, [#allocation8]
    $region41: #{models_forward.1} parent=1 // pred_fallthru
      _
    // Predicated region
    $region42: #{models_forward.1} parent=1 // pred_check
      _
    $region43: #{models_forward.1} parent=1 // pred_check_branch
      %76 = sbr.rel (0) target = $region45
    $region44: #{models_forward.1} parent=1 // pred_region
      _
    $region45: #{models_forward.1} parent=1 // pred_fallthru
      _
    // Predicated region
    $region46: #{models_forward.1} parent=1 // pred_check
      _
    $region47: #{models_forward.1} parent=1 // pred_check_branch
      %78 = sbr.rel (0) target = $region49
    $region48: #{models_forward.1} parent=1 // pred_region
      _
    $region49: #{models_forward.1} parent=1 // pred_fallthru
      _
    // Predicated region
    $region50: #{models_forward.1} parent=1 // pred_check
      _
    $region51: #{models_forward.1} parent=1 // pred_check_branch
      %80 = sbr.rel (0) target = $region53
    $region52: #{models_forward.1} parent=1 // pred_region
      _
    $region53: #{models_forward.1} parent=1 // pred_fallthru
      _
    // Predicated region
    $region54: #{models_forward.1} parent=1 // pred_check
      _
    $region55: #{models_forward.1} parent=1 // pred_check_branch
      %82 = sbr.rel (0) target = $region57
    $region56: #{models_forward.1} parent=1 // pred_region
      %s84 = ssub.s32 16, 16
      %85 = vsyncadd [#allocation11], %s84
      %s87 = sshll.u32 [#allocation10], 4
      %s88 = int_to_ptr.vmem [resolvable:$true] %s87
      %90 = dma.hbm_to_vmem [thread:$0]  %s13, 16, %s88, [#allocation11]
    $region57: #{models_forward.1} parent=1 // pred_fallthru
      _
    // Predicated region
    $region58: #{models_forward.1} parent=1 // pred_check
      _
    $region59: #{models_forward.1} parent=1 // pred_check_branch
      %92 = sbr.rel (0) target = $region61
    $region60: #{models_forward.1} parent=1 // pred_region
      _
    $region61: #{models_forward.1} parent=1 // pred_fallthru
      _
    // Predicated region
    $region62: #{models_forward.1} parent=1 // pred_check
      _
    $region63: #{models_forward.1} parent=1 // pred_check_branch
      %94 = sbr.rel (0) target = $region65
    $region64: #{models_forward.1} parent=1 // pred_region
      %s96 = ssub.s32 16, 16
      %97 = vsyncadd [#allocation11], %s96
      %s99 = sshll.u32 [#allocation12], 4
      %s100 = int_to_ptr.vmem [resolvable:$true] %s99
      %102 = dma.hbm_to_vmem [thread:$0]  %s15, 16, %s100, [#allocation11]
    $region65: #{models_forward.1} parent=1 // pred_fallthru
      _
    // Predicated region
    $region66: #{models_forward.1} parent=1 // pred_check
      _
    $region67: #{models_forward.1} parent=1 // pred_check_branch
      %104 = sbr.rel (0) target = $region69
    $region68: #{models_forward.1} parent=1 // pred_region
      _
    $region69: #{models_forward.1} parent=1 // pred_fallthru
      _
    // Predicated region
    $region70: #{models_forward.1} parent=1 // pred_check
      _
    $region71: #{models_forward.1} parent=1 // pred_check_branch
      %106 = sbr.rel (0) target = $region73
    $region72: #{models_forward.1} parent=1 // pred_region
      _
    $region73: #{models_forward.1} parent=1 // pred_fallthru
      _
    // Predicated region
    $region74: #{models_forward.1} parent=1 // pred_check
      _
    $region75: #{models_forward.1} parent=1 // pred_check_branch
      %108 = sbr.rel (0) target = $region77
    $region76: #{models_forward.1} parent=1 // pred_region
      %109 = dma.done [#allocation5], 16
    $region77: #{models_forward.1} parent=1 // pred_fallthru
      _
    // Predicated region
    $region78: #{models_forward.1} parent=1 // pred_check
      _
    $region79: #{models_forward.1} parent=1 // pred_check_branch
      %111 = sbr.rel (0) target = $region81
    $region80: #{models_forward.1} parent=1 // pred_region
      %112 = dma.done [#allocation8], 16
    $region81: #{models_forward.1} parent=1 // pred_fallthru
      _
    // Predicated region
    $region82: #{models_forward.1} parent=1 // pred_check
      _
    $region83: #{models_forward.1} parent=1 // pred_check_branch
      %114 = sbr.rel (0) target = $region85
    $region84: #{models_forward.1} parent=1 // pred_region
      %115 = dma.done [#allocation8], 16
    $region85: #{models_forward.1} parent=1 // pred_fallthru
      _
    // Predicated region
    $region86: #{models_forward.1} parent=1 // pred_check
      _
    $region87: #{models_forward.1} parent=1 // pred_check_branch
      %117 = sbr.rel (0) target = $region89
    $region88: #{models_forward.1} parent=1 // pred_region
      %118 = dma.done [#allocation11], 16
    $region89: #{models_forward.1} parent=1 // pred_fallthru
      _
    // Predicated region
    $region90: #{models_forward.1} parent=1 // pred_check
      _
    $region91: #{models_forward.1} parent=1 // pred_check_branch
      %120 = sbr.rel (0) target = $region93
    $region92: #{models_forward.1} parent=1 // pred_region
      %121 = dma.done [#allocation11], 16
    $region93: #{models_forward.1} parent=1 // pred_fallthru
      _
    %v122 = vld [vmem:[%s0] sm:$0xff]
    %v123 = vld [vmem:[%s0 + $0x8] sm:$0xff]
    %v124 = vld [vmem:[%s1] sm:$0xff]
    %v125 = vld [vmem:[%s1 + $0x8] sm:$0xff]
    %v126 = vld [vmem:[%s1 + $0x10] sm:$0xff]
    %v127 = vld [vmem:[%s1 + $0x18] sm:$0xff]
    %v128 = vld [vmem:[%s1 + $0x20] sm:$0xff]
    %v129 = vld [vmem:[%s1 + $0x28] sm:$0xff]
    %v130 = vld [vmem:[%s1 + $0x30] sm:$0xff]
    %v131 = vld [vmem:[%s1 + $0x38] sm:$0xff]
    %v132 = vld [vmem:[%s2] sm:$0x1]
    %v134 = vlaneseq
    %v135 = vshrl.u32 %v134, 7
    %v136 = vsub.s32 0, %v135
    %v137 = vrot.slane %v132, %v136
    %vm139 = vcmask 523264
    %v141 = vsel %vm139, %v122, 0
    %v144 = vsel %vm139, %v123, 0
    %146 = vmatprep.subr.mxu0 0.0
    %147 = vmatpush1.msra.mxu0 %v124
    %148 = vmatprep.subr.mxu0 0.0
    %149 = vmatpush1.msra.mxu0 %v125
    %150 = vmatprep.subr.mxu0 0.0
    %151 = vmatpush1.msra.mxu0 %v126
    %152 = vmatprep.subr.mxu0 0.0
    %153 = vmatpush1.msra.mxu0 %v127
    %154 = vmatprep.subr.mxu0 0.0
    %155 = vmatpush1.msra.mxu0 %v128
    %156 = vmatprep.subr.mxu0 0.0
    %157 = vmatpush1.msra.mxu0 %v129
    %158 = vmatprep.subr.mxu0 0.0
    %159 = vmatpush1.msra.mxu0 %v130
    %160 = vmatprep.subr.mxu0 0.0
    %161 = vmatpush1.msra.mxu0 %v131
    %162 = vmatprep.subr.mxu0 0.0
    %163 = vmatpush1.msra.mxu0 0.0
    %164 = vmatprep.subr.mxu0 0.0
    %165 = vmatpush1.msra.mxu0 0.0
    %166 = vmatprep.subr.mxu0 0.0
    %167 = vmatpush1.msra.mxu0 0.0
    %168 = vmatprep.subr.mxu0 0.0
    %169 = vmatpush1.msra.mxu0 0.0
    %170 = vmatprep.subr.mxu0 0.0
    %171 = vmatpush1.msra.mxu0 0.0
    %172 = vmatprep.subr.mxu0 0.0
    %173 = vmatpush1.msra.mxu0 0.0
    %174 = vmatprep.subr.mxu0 0.0
    %175 = vmatpush1.msra.mxu0 0.0
    %176 = vmatprep.subr.mxu0 0.0
    %177 = vmatpush1.msra.mxu0 0.0
    %178 = vmatprep.subr.mxu0 0.0
    %179 = vmatpush1.msra.mxu0 0.0
    %180 = vmatprep.subr.mxu0 0.0
    %181 = vmatpush1.msra.mxu0 0.0
    %182 = vmatprep.subr.mxu0 0.0
    %183 = vmatpush1.msra.mxu0 0.0
    %184 = vmatprep.subr.mxu0 0.0
    %185 = vmatpush1.msra.mxu0 0.0
    %186 = vmatprep.subr.mxu0 0.0
    %187 = vmatpush1.msra.mxu0 0.0
    %188 = vmatprep.subr.mxu0 0.0
    %189 = vmatpush1.msra.mxu0 0.0
    %190 = vmatprep.subr.mxu0 0.0
    %191 = vmatpush1.msra.mxu0 0.0
    %192 = vmatprep.subr.mxu0 0.0
    %193 = vmatpush1.msra.mxu0 0.0
    %194 = vmatprep.subr.mxu0 0.0
    %195 = vmatpush1.msra.mxu0 0.0
    %196 = vmatprep.subr.mxu0 0.0
    %197 = vmatpush1.msra.mxu0 0.0
    %198 = vmatprep.subr.mxu0 0.0
    %199 = vmatpush1.msra.mxu0 0.0
    %200 = vmatprep.subr.mxu0 0.0
    %201 = vmatpush1.msra.mxu0 0.0
    %202 = vmatprep.subr.mxu0 0.0
    %203 = vmatpush1.msra.mxu0 0.0
    %204 = vmatprep.subr.mxu0 0.0
    %205 = vmatpush1.msra.mxu0 0.0
    %206 = vmatprep.subr.mxu0 0.0
    %207 = vmatpush1.msra.mxu0 0.0
    %208 = vmatprep.subr.mxu0 0.0
    %209 = vmatpush1.msra.mxu0 0.0
    %210 = vmatprep.mubr.f32.mxu0 0.0
    %211 = vmatmul.mubr.f32.gmra.mrb[0].mxu0 %v141
    %v212 = vpop.f32.mrb[0].mxu0
    %v213 = vadd.f32 %v137, %v212
    %v214 = vpop.f32.mrb[0].mxu0
    %215 = vmatprep.mubr.f32.mxu0 0.0
    %216 = vmatmul.mubr.f32.gmra.mrb[0].mxu0 %v144
    %v217 = vpop.f32.mrb[0].mxu0
    %v218 = vadd.f32 %v137, %v217
    %v219 = vpop.f32.mrb[0].mxu0
    %220 = vdwg.mxu0
    %v221 = vld [vmem:[%s3] sm:$0xff]
    %v222 = vld [vmem:[%s3 + $0x8] sm:$0xff]
    %v223 = vld [vmem:[%s3 + $0x10] sm:$0xff]
    %v224 = vld [vmem:[%s3 + $0x18] sm:$0xff]
    %v225 = vld [vmem:[%s4] sm:$0x1]
    %v227 = vlaneseq
    %v228 = vshrl.u32 %v227, 7
    %v229 = vsub.s32 0, %v228
    %v230 = vrot.slane %v225, %v229
    %vm232 = vcmask 261120
    %v234 = vsel %vm232, %v213, 0
    %v237 = vsel %vm232, %v218, 0
    %239 = vmatprep.subr.mxu0 0.0
    %240 = vmatpush1.msra.mxu0 %v221
    %241 = vmatprep.subr.mxu0 0.0
    %242 = vmatpush1.msra.mxu0 %v222
    %243 = vmatprep.subr.mxu0 0.0
    %244 = vmatpush1.msra.mxu0 %v223
    %245 = vmatprep.subr.mxu0 0.0
    %246 = vmatpush1.msra.mxu0 %v224
    %247 = vmatprep.subr.mxu0 0.0
    %248 = vmatpush1.msra.mxu0 0.0
    %249 = vmatprep.subr.mxu0 0.0
    %250 = vmatpush1.msra.mxu0 0.0
    %251 = vmatprep.subr.mxu0 0.0
    %252 = vmatpush1.msra.mxu0 0.0
    %253 = vmatprep.subr.mxu0 0.0
    %254 = vmatpush1.msra.mxu0 0.0
    %255 = vmatprep.subr.mxu0 0.0
    %256 = vmatpush1.msra.mxu0 0.0
    %257 = vmatprep.subr.mxu0 0.0
    %258 = vmatpush1.msra.mxu0 0.0
    %259 = vmatprep.subr.mxu0 0.0
    %260 = vmatpush1.msra.mxu0 0.0
    %261 = vmatprep.subr.mxu0 0.0
    %262 = vmatpush1.msra.mxu0 0.0
    %263 = vmatprep.subr.mxu0 0.0
    %264 = vmatpush1.msra.mxu0 0.0
    %265 = vmatprep.subr.mxu0 0.0
    %266 = vmatpush1.msra.mxu0 0.0
    %267 = vmatprep.subr.mxu0 0.0
    %268 = vmatpush1.msra.mxu0 0.0
    %269 = vmatprep.subr.mxu0 0.0
    %270 = vmatpush1.msra.mxu0 0.0
    %271 = vmatprep.subr.mxu0 0.0
    %272 = vmatpush1.msra.mxu0 0.0
    %273 = vmatprep.subr.mxu0 0.0
    %274 = vmatpush1.msra.mxu0 0.0
    %275 = vmatprep.subr.mxu0 0.0
    %276 = vmatpush1.msra.mxu0 0.0
    %277 = vmatprep.subr.mxu0 0.0
    %278 = vmatpush1.msra.mxu0 0.0
    %279 = vmatprep.subr.mxu0 0.0
    %280 = vmatpush1.msra.mxu0 0.0
    %281 = vmatprep.subr.mxu0 0.0
    %282 = vmatpush1.msra.mxu0 0.0
    %283 = vmatprep.subr.mxu0 0.0
    %284 = vmatpush1.msra.mxu0 0.0
    %285 = vmatprep.subr.mxu0 0.0
    %286 = vmatpush1.msra.mxu0 0.0
    %287 = vmatprep.subr.mxu0 0.0
    %288 = vmatpush1.msra.mxu0 0.0
    %289 = vmatprep.subr.mxu0 0.0
    %290 = vmatpush1.msra.mxu0 0.0
    %291 = vmatprep.subr.mxu0 0.0
    %292 = vmatpush1.msra.mxu0 0.0
    %293 = vmatprep.subr.mxu0 0.0
    %294 = vmatpush1.msra.mxu0 0.0
    %295 = vmatprep.subr.mxu0 0.0
    %296 = vmatpush1.msra.mxu0 0.0
    %297 = vmatprep.subr.mxu0 0.0
    %298 = vmatpush1.msra.mxu0 0.0
    %299 = vmatprep.subr.mxu0 0.0
    %300 = vmatpush1.msra.mxu0 0.0
    %301 = vmatprep.subr.mxu0 0.0
    %302 = vmatpush1.msra.mxu0 0.0
    %303 = vmatprep.mubr.f32.mxu0 0.0
    %304 = vmatmul.mubr.f32.gmra.mrb[0].mxu0 %v234
    %v305 = vpop.f32.mrb[0].mxu0
    %v306 = vadd.f32 %v230, %v305
    %v307 = vpop.f32.mrb[0].mxu0
    %308 = vmatprep.mubr.f32.mxu0 0.0
    %309 = vmatmul.mubr.f32.gmra.mrb[0].mxu0 %v237
    %v310 = vpop.f32.mrb[0].mxu0
    %v311 = vadd.f32 %v230, %v310
    %v312 = vpop.f32.mrb[0].mxu0
    %313 = vdwg.mxu0
    %v314 = vld [vmem:[%s5] sm:$0xff]
    %v315 = vld [vmem:[%s5 + $0x8] sm:$0xff]
    %v316 = vld [vmem:[%s5 + $0x10] sm:$0xff]
    %v317 = vld [vmem:[%s5 + $0x18] sm:$0xff]
    %v318 = vld [vmem:[#allocation4] sm:$0x1]
    %v320 = vlaneseq
    %v321 = vshrl.u32 %v320, 7
    %v322 = vsub.s32 0, %v321
    %v323 = vrot.slane %v318, %v322
    %v326 = vsel %vm232, 0.0, 0
    %328 = vmatprep.subr.mxu0 0.0
    %329 = vmatpush1.msra.mxu0 %v314
    %330 = vmatprep.subr.mxu0 0.0
    %331 = vmatpush1.msra.mxu0 %v315
    %332 = vmatprep.subr.mxu0 0.0
    %333 = vmatpush1.msra.mxu0 %v316
    %334 = vmatprep.subr.mxu0 0.0
    %335 = vmatpush1.msra.mxu0 %v317
    %336 = vmatprep.subr.mxu0 0.0
    %337 = vmatpush1.msra.mxu0 0.0
    %338 = vmatprep.subr.mxu0 0.0
    %339 = vmatpush1.msra.mxu0 0.0
    %340 = vmatprep.subr.mxu0 0.0
    %341 = vmatpush1.msra.mxu0 0.0
    %342 = vmatprep.subr.mxu0 0.0
    %343 = vmatpush1.msra.mxu0 0.0
    %344 = vmatprep.subr.mxu0 0.0
    %345 = vmatpush1.msra.mxu0 0.0
    %346 = vmatprep.subr.mxu0 0.0
    %347 = vmatpush1.msra.mxu0 0.0
    %348 = vmatprep.subr.mxu0 0.0
    %349 = vmatpush1.msra.mxu0 0.0
    %350 = vmatprep.subr.mxu0 0.0
    %351 = vmatpush1.msra.mxu0 0.0
    %352 = vmatprep.subr.mxu0 0.0
    %353 = vmatpush1.msra.mxu0 0.0
    %354 = vmatprep.subr.mxu0 0.0
    %355 = vmatpush1.msra.mxu0 0.0
    %356 = vmatprep.subr.mxu0 0.0
    %357 = vmatpush1.msra.mxu0 0.0
    %358 = vmatprep.subr.mxu0 0.0
    %359 = vmatpush1.msra.mxu0 0.0
    %360 = vmatprep.subr.mxu0 0.0
    %361 = vmatpush1.msra.mxu0 0.0
    %362 = vmatprep.subr.mxu0 0.0
    %363 = vmatpush1.msra.mxu0 0.0
    %364 = vmatprep.subr.mxu0 0.0
    %365 = vmatpush1.msra.mxu0 0.0
    %366 = vmatprep.subr.mxu0 0.0
    %367 = vmatpush1.msra.mxu0 0.0
    %368 = vmatprep.subr.mxu0 0.0
    %369 = vmatpush1.msra.mxu0 0.0
    %370 = vmatprep.subr.mxu0 0.0
    %371 = vmatpush1.msra.mxu0 0.0
    %372 = vmatprep.subr.mxu0 0.0
    %373 = vmatpush1.msra.mxu0 0.0
    %374 = vmatprep.subr.mxu0 0.0
    %375 = vmatpush1.msra.mxu0 0.0
    %376 = vmatprep.subr.mxu0 0.0
    %377 = vmatpush1.msra.mxu0 0.0
    %378 = vmatprep.subr.mxu0 0.0
    %379 = vmatpush1.msra.mxu0 0.0
    %380 = vmatprep.subr.mxu0 0.0
    %381 = vmatpush1.msra.mxu0 0.0
    %382 = vmatprep.subr.mxu0 0.0
    %383 = vmatpush1.msra.mxu0 0.0
    %384 = vmatprep.subr.mxu0 0.0
    %385 = vmatpush1.msra.mxu0 0.0
    %386 = vmatprep.subr.mxu0 0.0
    %387 = vmatpush1.msra.mxu0 0.0
    %388 = vmatprep.subr.mxu0 0.0
    %389 = vmatpush1.msra.mxu0 0.0
    %390 = vmatprep.subr.mxu0 0.0
    %391 = vmatpush1.msra.mxu0 0.0
    %392 = vmatprep.mubr.f32.mxu0 0.0
    %393 = vmatmul.mubr.f32.gmra.mrb[0].mxu0 %v326
    %v394 = vpop.f32.mrb[0].mxu0
    %v395 = vadd.f32 %v323, %v394
    %v396 = vpop.f32.mrb[0].mxu0
    %397 = vdwg.mxu0
    %v398 = vadd.f32 %v306, %v395
    %v399 = vxor.u32 %v398, 2147483648
    %v400 = vmul.f32 %v399, 1.442695
    %v401 = vpow.pop %v400
    %v402 = vadd.f32 %v401, 1.0
    %v403 = vrcp.pop %v402
    %v404 = vmul.f32 1.0, %v403
    %406 = vrot.lane.b32.xlu0 %v395, 64
    %v407 = vpop.permute.xlu0 %406
    %v409 = vmul.f32 %v404, %v407
    %411 = vrot.lane.b32.xlu0 %v409, 64
    %v412 = vpop.permute.xlu0 %411
    %v414 = vadd.f32 %v306, %v412
    %v415 = vtanh.pop %v414
    %v416 = vsub.f32 1.0, %v404
    %418 = vrot.lane.b32.xlu0 %v415, 96
    %v419 = vpop.permute.xlu0 %418
    %v421 = vmul.f32 %v416, %v419
    %v422 = vmul.f32 %v404, 0.0
    %v423 = vadd.f32 %v421, %v422
    %425 = vrot.lane.b32.xlu0 %v423, 96
    %v426 = vpop.permute.xlu0 %425
    %vm428 = vcmask 254976
    %429 = vst.msk [vmem:[#allocation2] sm:$0x3] %vm428, %v426
    %v430 = vsel %vm232, %v426, 0
    %432 = vmatprep.subr.mxu0 0.0
    %433 = vmatpush1.msra.mxu0 %v314
    %434 = vmatprep.subr.mxu0 0.0
    %435 = vmatpush1.msra.mxu0 %v315
    %436 = vmatprep.subr.mxu0 0.0
    %437 = vmatpush1.msra.mxu0 %v316
    %438 = vmatprep.subr.mxu0 0.0
    %439 = vmatpush1.msra.mxu0 %v317
    %440 = vmatprep.subr.mxu0 0.0
    %441 = vmatpush1.msra.mxu0 0.0
    %442 = vmatprep.subr.mxu0 0.0
    %443 = vmatpush1.msra.mxu0 0.0
    %444 = vmatprep.subr.mxu0 0.0
    %445 = vmatpush1.msra.mxu0 0.0
    %446 = vmatprep.subr.mxu0 0.0
    %447 = vmatpush1.msra.mxu0 0.0
    %448 = vmatprep.subr.mxu0 0.0
    %449 = vmatpush1.msra.mxu0 0.0
    %450 = vmatprep.subr.mxu0 0.0
    %451 = vmatpush1.msra.mxu0 0.0
    %452 = vmatprep.subr.mxu0 0.0
    %453 = vmatpush1.msra.mxu0 0.0
    %454 = vmatprep.subr.mxu0 0.0
    %455 = vmatpush1.msra.mxu0 0.0
    %456 = vmatprep.subr.mxu0 0.0
    %457 = vmatpush1.msra.mxu0 0.0
    %458 = vmatprep.subr.mxu0 0.0
    %459 = vmatpush1.msra.mxu0 0.0
    %460 = vmatprep.subr.mxu0 0.0
    %461 = vmatpush1.msra.mxu0 0.0
    %462 = vmatprep.subr.mxu0 0.0
    %463 = vmatpush1.msra.mxu0 0.0
    %464 = vmatprep.subr.mxu0 0.0
    %465 = vmatpush1.msra.mxu0 0.0
    %466 = vmatprep.subr.mxu0 0.0
    %467 = vmatpush1.msra.mxu0 0.0
    %468 = vmatprep.subr.mxu0 0.0
    %469 = vmatpush1.msra.mxu0 0.0
    %470 = vmatprep.subr.mxu0 0.0
    %471 = vmatpush1.msra.mxu0 0.0
    %472 = vmatprep.subr.mxu0 0.0
    %473 = vmatpush1.msra.mxu0 0.0
    %474 = vmatprep.subr.mxu0 0.0
    %475 = vmatpush1.msra.mxu0 0.0
    %476 = vmatprep.subr.mxu0 0.0
    %477 = vmatpush1.msra.mxu0 0.0
    %478 = vmatprep.subr.mxu0 0.0
    %479 = vmatpush1.msra.mxu0 0.0
    %480 = vmatprep.subr.mxu0 0.0
    %481 = vmatpush1.msra.mxu0 0.0
    %482 = vmatprep.subr.mxu0 0.0
    %483 = vmatpush1.msra.mxu0 0.0
    %484 = vmatprep.subr.mxu0 0.0
    %485 = vmatpush1.msra.mxu0 0.0
    %486 = vmatprep.subr.mxu0 0.0
    %487 = vmatpush1.msra.mxu0 0.0
    %488 = vmatprep.subr.mxu0 0.0
    %489 = vmatpush1.msra.mxu0 0.0
    %490 = vmatprep.subr.mxu0 0.0
    %491 = vmatpush1.msra.mxu0 0.0
    %492 = vmatprep.subr.mxu0 0.0
    %493 = vmatpush1.msra.mxu0 0.0
    %494 = vmatprep.subr.mxu0 0.0
    %495 = vmatpush1.msra.mxu0 0.0
    %496 = vmatprep.mubr.f32.mxu0 0.0
    %497 = vmatmul.mubr.f32.gmra.mrb[0].mxu0 %v430
    %v498 = vpop.f32.mrb[0].mxu0
    %v499 = vadd.f32 %v323, %v498
    %v500 = vpop.f32.mrb[0].mxu0
    %501 = vdwg.mxu0
    %v503 = vrot.slane %v499, 6
    %v505 = vadd.f32 %v306, %v503
    %v506 = vxor.u32 %v505, 2147483648
    %v507 = vmul.f32 %v506, 1.442695
    %v508 = vpow.pop %v507
    %v509 = vadd.f32 %v508, 1.0
    %v510 = vrcp.pop %v509
    %v511 = vmul.f32 1.0, %v510
    %512 = vrot.lane.b32.xlu0 %v503, 64
    %v513 = vpop.permute.xlu0 %512
    %v515 = vmul.f32 %v511, %v513
    %517 = vrot.lane.b32.xlu0 %v515, 64
    %v518 = vpop.permute.xlu0 %517
    %v520 = vadd.f32 %v306, %v518
    %v521 = vtanh.pop %v520
    %v522 = vsub.f32 1.0, %v511
    %524 = vrot.lane.b32.xlu0 %v521, 96
    %v525 = vpop.permute.xlu0 %524
    %v527 = vmul.f32 %v522, %v525
    %v528 = vrot.slane %v423, 6
    %v530 = vmul.f32 %v511, %v528
    %v531 = vadd.f32 %v527, %v530
    %533 = vrot.lane.b32.xlu0 %v531, 96
    %v534 = vpop.permute.xlu0 %533
    %s536 = scalar_lea.vmem [#allocation2], 2
    %vm537 = vcmask 257026
    %538 = vst.msk [vmem:[%s536 - $0x2] sm:$0xc] %vm537, %v534
    %v539 = vrot.slane %v531, 2
    %540 = vrot.lane.b32.xlu0 %v539, 96
    %v541 = vpop.permute.xlu0 %540
    %v542 = vsel %vm232, %v541, 0
    %544 = vmatprep.subr.mxu0 0.0
    %545 = vmatpush1.msra.mxu0 %v314
    %546 = vmatprep.subr.mxu0 0.0
    %547 = vmatpush1.msra.mxu0 %v315
    %548 = vmatprep.subr.mxu0 0.0
    %549 = vmatpush1.msra.mxu0 %v316
    %550 = vmatprep.subr.mxu0 0.0
    %551 = vmatpush1.msra.mxu0 %v317
    %552 = vmatprep.subr.mxu0 0.0
    %553 = vmatpush1.msra.mxu0 0.0
    %554 = vmatprep.subr.mxu0 0.0
    %555 = vmatpush1.msra.mxu0 0.0
    %556 = vmatprep.subr.mxu0 0.0
    %557 = vmatpush1.msra.mxu0 0.0
    %558 = vmatprep.subr.mxu0 0.0
    %559 = vmatpush1.msra.mxu0 0.0
    %560 = vmatprep.subr.mxu0 0.0
    %561 = vmatpush1.msra.mxu0 0.0
    %562 = vmatprep.subr.mxu0 0.0
    %563 = vmatpush1.msra.mxu0 0.0
    %564 = vmatprep.subr.mxu0 0.0
    %565 = vmatpush1.msra.mxu0 0.0
    %566 = vmatprep.subr.mxu0 0.0
    %567 = vmatpush1.msra.mxu0 0.0
    %568 = vmatprep.subr.mxu0 0.0
    %569 = vmatpush1.msra.mxu0 0.0
    %570 = vmatprep.subr.mxu0 0.0
    %571 = vmatpush1.msra.mxu0 0.0
    %572 = vmatprep.subr.mxu0 0.0
    %573 = vmatpush1.msra.mxu0 0.0
    %574 = vmatprep.subr.mxu0 0.0
    %575 = vmatpush1.msra.mxu0 0.0
    %576 = vmatprep.subr.mxu0 0.0
    %577 = vmatpush1.msra.mxu0 0.0
    %578 = vmatprep.subr.mxu0 0.0
    %579 = vmatpush1.msra.mxu0 0.0
    %580 = vmatprep.subr.mxu0 0.0
    %581 = vmatpush1.msra.mxu0 0.0
    %582 = vmatprep.subr.mxu0 0.0
    %583 = vmatpush1.msra.mxu0 0.0
    %584 = vmatprep.subr.mxu0 0.0
    %585 = vmatpush1.msra.mxu0 0.0
    %586 = vmatprep.subr.mxu0 0.0
    %587 = vmatpush1.msra.mxu0 0.0
    %588 = vmatprep.subr.mxu0 0.0
    %589 = vmatpush1.msra.mxu0 0.0
    %590 = vmatprep.subr.mxu0 0.0
    %591 = vmatpush1.msra.mxu0 0.0
    %592 = vmatprep.subr.mxu0 0.0
    %593 = vmatpush1.msra.mxu0 0.0
    %594 = vmatprep.subr.mxu0 0.0
    %595 = vmatpush1.msra.mxu0 0.0
    %596 = vmatprep.subr.mxu0 0.0
    %597 = vmatpush1.msra.mxu0 0.0
    %598 = vmatprep.subr.mxu0 0.0
    %599 = vmatpush1.msra.mxu0 0.0
    %600 = vmatprep.subr.mxu0 0.0
    %601 = vmatpush1.msra.mxu0 0.0
    %602 = vmatprep.subr.mxu0 0.0
    %603 = vmatpush1.msra.mxu0 0.0
    %604 = vmatprep.subr.mxu0 0.0
    %605 = vmatpush1.msra.mxu0 0.0
    %606 = vmatprep.subr.mxu0 0.0
    %607 = vmatpush1.msra.mxu0 0.0
    %608 = vmatprep.mubr.f32.mxu0 0.0
    %609 = vmatmul.mubr.f32.gmra.mrb[0].mxu0 %v542
    %v610 = vpop.f32.mrb[0].mxu0
    %v611 = vadd.f32 %v323, %v610
    %v612 = vpop.f32.mrb[0].mxu0
    %613 = vdwg.mxu0
    %v615 = vrot.slane %v611, 4
    %v617 = vadd.f32 %v306, %v615
    %v618 = vxor.u32 %v617, 2147483648
    %v619 = vmul.f32 %v618, 1.442695
    %v620 = vpow.pop %v619
    %v621 = vadd.f32 %v620, 1.0
    %v622 = vrcp.pop %v621
    %v623 = vmul.f32 1.0, %v622
    %624 = vrot.lane.b32.xlu0 %v615, 64
    %v625 = vpop.permute.xlu0 %624
    %v627 = vmul.f32 %v623, %v625
    %629 = vrot.lane.b32.xlu0 %v627, 64
    %v630 = vpop.permute.xlu0 %629
    %v632 = vadd.f32 %v306, %v630
    %v633 = vtanh.pop %v632
    %v634 = vsub.f32 1.0, %v623
    %636 = vrot.lane.b32.xlu0 %v633, 96
    %v637 = vpop.permute.xlu0 %636
    %v639 = vmul.f32 %v634, %v637
    %v640 = vrot.slane %v531, 6
    %v642 = vmul.f32 %v623, %v640
    %v643 = vadd.f32 %v639, %v642
    %645 = vrot.lane.b32.xlu0 %v643, 96
    %v646 = vpop.permute.xlu0 %645
    %s648 = scalar_lea.vmem [#allocation2], 4
    %vm649 = vcmask 259076
    %650 = vst.msk [vmem:[%s648 - $0x4] sm:$0x30] %vm649, %v646
    %v651 = vrot.slane %v643, 4
    %652 = vrot.lane.b32.xlu0 %v651, 96
    %v653 = vpop.permute.xlu0 %652
    %v654 = vsel %vm232, %v653, 0
    %656 = vmatprep.subr.mxu0 0.0
    %657 = vmatpush1.msra.mxu0 %v314
    %658 = vmatprep.subr.mxu0 0.0
    %659 = vmatpush1.msra.mxu0 %v315
    %660 = vmatprep.subr.mxu0 0.0
    %661 = vmatpush1.msra.mxu0 %v316
    %662 = vmatprep.subr.mxu0 0.0
    %663 = vmatpush1.msra.mxu0 %v317
    %664 = vmatprep.subr.mxu0 0.0
    %665 = vmatpush1.msra.mxu0 0.0
    %666 = vmatprep.subr.mxu0 0.0
    %667 = vmatpush1.msra.mxu0 0.0
    %668 = vmatprep.subr.mxu0 0.0
    %669 = vmatpush1.msra.mxu0 0.0
    %670 = vmatprep.subr.mxu0 0.0
    %671 = vmatpush1.msra.mxu0 0.0
    %672 = vmatprep.subr.mxu0 0.0
    %673 = vmatpush1.msra.mxu0 0.0
    %674 = vmatprep.subr.mxu0 0.0
    %675 = vmatpush1.msra.mxu0 0.0
    %676 = vmatprep.subr.mxu0 0.0
    %677 = vmatpush1.msra.mxu0 0.0
    %678 = vmatprep.subr.mxu0 0.0
    %679 = vmatpush1.msra.mxu0 0.0
    %680 = vmatprep.subr.mxu0 0.0
    %681 = vmatpush1.msra.mxu0 0.0
    %682 = vmatprep.subr.mxu0 0.0
    %683 = vmatpush1.msra.mxu0 0.0
    %684 = vmatprep.subr.mxu0 0.0
    %685 = vmatpush1.msra.mxu0 0.0
    %686 = vmatprep.subr.mxu0 0.0
    %687 = vmatpush1.msra.mxu0 0.0
    %688 = vmatprep.subr.mxu0 0.0
    %689 = vmatpush1.msra.mxu0 0.0
    %690 = vmatprep.subr.mxu0 0.0
    %691 = vmatpush1.msra.mxu0 0.0
    %692 = vmatprep.subr.mxu0 0.0
    %693 = vmatpush1.msra.mxu0 0.0
    %694 = vmatprep.subr.mxu0 0.0
    %695 = vmatpush1.msra.mxu0 0.0
    %696 = vmatprep.subr.mxu0 0.0
    %697 = vmatpush1.msra.mxu0 0.0
    %698 = vmatprep.subr.mxu0 0.0
    %699 = vmatpush1.msra.mxu0 0.0
    %700 = vmatprep.subr.mxu0 0.0
    %701 = vmatpush1.msra.mxu0 0.0
    %702 = vmatprep.subr.mxu0 0.0
    %703 = vmatpush1.msra.mxu0 0.0
    %704 = vmatprep.subr.mxu0 0.0
    %705 = vmatpush1.msra.mxu0 0.0
    %706 = vmatprep.subr.mxu0 0.0
    %707 = vmatpush1.msra.mxu0 0.0
    %708 = vmatprep.subr.mxu0 0.0
    %709 = vmatpush1.msra.mxu0 0.0
    %710 = vmatprep.subr.mxu0 0.0
    %711 = vmatpush1.msra.mxu0 0.0
    %712 = vmatprep.subr.mxu0 0.0
    %713 = vmatpush1.msra.mxu0 0.0
    %714 = vmatprep.subr.mxu0 0.0
    %715 = vmatpush1.msra.mxu0 0.0
    %716 = vmatprep.subr.mxu0 0.0
    %717 = vmatpush1.msra.mxu0 0.0
    %718 = vmatprep.subr.mxu0 0.0
    %719 = vmatpush1.msra.mxu0 0.0
    %720 = vmatprep.mubr.f32.mxu0 0.0
    %721 = vmatmul.mubr.f32.gmra.mrb[0].mxu0 %v654
    %v722 = vpop.f32.mrb[0].mxu0
    %v723 = vadd.f32 %v323, %v722
    %v724 = vpop.f32.mrb[0].mxu0
    %725 = vdwg.mxu0
    %v727 = vrot.slane %v723, 2
    %v729 = vadd.f32 %v306, %v727
    %v730 = vxor.u32 %v729, 2147483648
    %v731 = vmul.f32 %v730, 1.442695
    %v732 = vpow.pop %v731
    %v733 = vadd.f32 %v732, 1.0
    %v734 = vrcp.pop %v733
    %v735 = vmul.f32 1.0, %v734
    %736 = vrot.lane.b32.xlu0 %v727, 64
    %v737 = vpop.permute.xlu0 %736
    %v739 = vmul.f32 %v735, %v737
    %741 = vrot.lane.b32.xlu0 %v739, 64
    %v742 = vpop.permute.xlu0 %741
    %v744 = vadd.f32 %v306, %v742
    %v745 = vtanh.pop %v744
    %v746 = vsub.f32 1.0, %v735
    %748 = vrot.lane.b32.xlu0 %v745, 96
    %v749 = vpop.permute.xlu0 %748
    %v751 = vmul.f32 %v746, %v749
    %v752 = vrot.slane %v643, 6
    %v754 = vmul.f32 %v735, %v752
    %v755 = vadd.f32 %v751, %v754
    %757 = vrot.lane.b32.xlu0 %v755, 96
    %v758 = vpop.permute.xlu0 %757
    %s760 = scalar_lea.vmem [#allocation2], 6
    %vm761 = vcmask 261126
    %762 = vst.msk [vmem:[%s760 - $0x6] sm:$0xc0] %vm761, %v758
    %v763 = vrot.slane %v755, 6
    %764 = vrot.lane.b32.xlu0 %v763, 96
    %v765 = vpop.permute.xlu0 %764
    %v766 = vsel %vm232, %v765, 0
    %768 = vmatprep.subr.mxu0 0.0
    %769 = vmatpush1.msra.mxu0 %v314
    %770 = vmatprep.subr.mxu0 0.0
    %771 = vmatpush1.msra.mxu0 %v315
    %772 = vmatprep.subr.mxu0 0.0
    %773 = vmatpush1.msra.mxu0 %v316
    %774 = vmatprep.subr.mxu0 0.0
    %775 = vmatpush1.msra.mxu0 %v317
    %776 = vmatprep.subr.mxu0 0.0
    %777 = vmatpush1.msra.mxu0 0.0
    %778 = vmatprep.subr.mxu0 0.0
    %779 = vmatpush1.msra.mxu0 0.0
    %780 = vmatprep.subr.mxu0 0.0
    %781 = vmatpush1.msra.mxu0 0.0
    %782 = vmatprep.subr.mxu0 0.0
    %783 = vmatpush1.msra.mxu0 0.0
    %784 = vmatprep.subr.mxu0 0.0
    %785 = vmatpush1.msra.mxu0 0.0
    %786 = vmatprep.subr.mxu0 0.0
    %787 = vmatpush1.msra.mxu0 0.0
    %788 = vmatprep.subr.mxu0 0.0
    %789 = vmatpush1.msra.mxu0 0.0
    %790 = vmatprep.subr.mxu0 0.0
    %791 = vmatpush1.msra.mxu0 0.0
    %792 = vmatprep.subr.mxu0 0.0
    %793 = vmatpush1.msra.mxu0 0.0
    %794 = vmatprep.subr.mxu0 0.0
    %795 = vmatpush1.msra.mxu0 0.0
    %796 = vmatprep.subr.mxu0 0.0
    %797 = vmatpush1.msra.mxu0 0.0
    %798 = vmatprep.subr.mxu0 0.0
    %799 = vmatpush1.msra.mxu0 0.0
    %800 = vmatprep.subr.mxu0 0.0
    %801 = vmatpush1.msra.mxu0 0.0
    %802 = vmatprep.subr.mxu0 0.0
    %803 = vmatpush1.msra.mxu0 0.0
    %804 = vmatprep.subr.mxu0 0.0
    %805 = vmatpush1.msra.mxu0 0.0
    %806 = vmatprep.subr.mxu0 0.0
    %807 = vmatpush1.msra.mxu0 0.0
    %808 = vmatprep.subr.mxu0 0.0
    %809 = vmatpush1.msra.mxu0 0.0
    %810 = vmatprep.subr.mxu0 0.0
    %811 = vmatpush1.msra.mxu0 0.0
    %812 = vmatprep.subr.mxu0 0.0
    %813 = vmatpush1.msra.mxu0 0.0
    %814 = vmatprep.subr.mxu0 0.0
    %815 = vmatpush1.msra.mxu0 0.0
    %816 = vmatprep.subr.mxu0 0.0
    %817 = vmatpush1.msra.mxu0 0.0
    %818 = vmatprep.subr.mxu0 0.0
    %819 = vmatpush1.msra.mxu0 0.0
    %820 = vmatprep.subr.mxu0 0.0
    %821 = vmatpush1.msra.mxu0 0.0
    %822 = vmatprep.subr.mxu0 0.0
    %823 = vmatpush1.msra.mxu0 0.0
    %824 = vmatprep.subr.mxu0 0.0
    %825 = vmatpush1.msra.mxu0 0.0
    %826 = vmatprep.subr.mxu0 0.0
    %827 = vmatpush1.msra.mxu0 0.0
    %828 = vmatprep.subr.mxu0 0.0
    %829 = vmatpush1.msra.mxu0 0.0
    %830 = vmatprep.subr.mxu0 0.0
    %831 = vmatpush1.msra.mxu0 0.0
    %832 = vmatprep.mubr.f32.mxu0 0.0
    %833 = vmatmul.mubr.f32.gmra.mrb[0].mxu0 %v766
    %v834 = vpop.f32.mrb[0].mxu0
    %v835 = vadd.f32 %v323, %v834
    %v836 = vpop.f32.mrb[0].mxu0
    %837 = vdwg.mxu0
    %v838 = vadd.f32 %v311, %v835
    %v839 = vxor.u32 %v838, 2147483648
    %v840 = vmul.f32 %v839, 1.442695
    %v841 = vpow.pop %v840
    %v842 = vadd.f32 %v841, 1.0
    %v843 = vrcp.pop %v842
    %v844 = vmul.f32 1.0, %v843
    %846 = vrot.lane.b32.xlu0 %v835, 64
    %v847 = vpop.permute.xlu0 %846
    %v849 = vmul.f32 %v844, %v847
    %851 = vrot.lane.b32.xlu0 %v849, 64
    %v852 = vpop.permute.xlu0 %851
    %v854 = vadd.f32 %v311, %v852
    %v855 = vtanh.pop %v854
    %v856 = vsub.f32 1.0, %v844
    %858 = vrot.lane.b32.xlu0 %v855, 96
    %v859 = vpop.permute.xlu0 %858
    %v861 = vmul.f32 %v856, %v859
    %v863 = vmul.f32 %v844, %v763
    %v864 = vadd.f32 %v861, %v863
    %866 = vrot.lane.b32.xlu0 %v864, 96
    %v867 = vpop.permute.xlu0 %866
    %s869 = scalar_lea.vmem [#allocation2], 8
    %870 = vst.msk [vmem:[%s869] sm:$0x3] %vm428, %v867
    %v871 = vsel %vm232, %v867, 0
    %873 = vmatprep.subr.mxu0 0.0
    %874 = vmatpush1.msra.mxu0 %v314
    %875 = vmatprep.subr.mxu0 0.0
    %876 = vmatpush1.msra.mxu0 %v315
    %877 = vmatprep.subr.mxu0 0.0
    %878 = vmatpush1.msra.mxu0 %v316
    %879 = vmatprep.subr.mxu0 0.0
    %880 = vmatpush1.msra.mxu0 %v317
    %881 = vmatprep.subr.mxu0 0.0
    %882 = vmatpush1.msra.mxu0 0.0
    %883 = vmatprep.subr.mxu0 0.0
    %884 = vmatpush1.msra.mxu0 0.0
    %885 = vmatprep.subr.mxu0 0.0
    %886 = vmatpush1.msra.mxu0 0.0
    %887 = vmatprep.subr.mxu0 0.0
    %888 = vmatpush1.msra.mxu0 0.0
    %889 = vmatprep.subr.mxu0 0.0
    %890 = vmatpush1.msra.mxu0 0.0
    %891 = vmatprep.subr.mxu0 0.0
    %892 = vmatpush1.msra.mxu0 0.0
    %893 = vmatprep.subr.mxu0 0.0
    %894 = vmatpush1.msra.mxu0 0.0
    %895 = vmatprep.subr.mxu0 0.0
    %896 = vmatpush1.msra.mxu0 0.0
    %897 = vmatprep.subr.mxu0 0.0
    %898 = vmatpush1.msra.mxu0 0.0
    %899 = vmatprep.subr.mxu0 0.0
    %900 = vmatpush1.msra.mxu0 0.0
    %901 = vmatprep.subr.mxu0 0.0
    %902 = vmatpush1.msra.mxu0 0.0
    %903 = vmatprep.subr.mxu0 0.0
    %904 = vmatpush1.msra.mxu0 0.0
    %905 = vmatprep.subr.mxu0 0.0
    %906 = vmatpush1.msra.mxu0 0.0
    %907 = vmatprep.subr.mxu0 0.0
    %908 = vmatpush1.msra.mxu0 0.0
    %909 = vmatprep.subr.mxu0 0.0
    %910 = vmatpush1.msra.mxu0 0.0
    %911 = vmatprep.subr.mxu0 0.0
    %912 = vmatpush1.msra.mxu0 0.0
    %913 = vmatprep.subr.mxu0 0.0
    %914 = vmatpush1.msra.mxu0 0.0
    %915 = vmatprep.subr.mxu0 0.0
    %916 = vmatpush1.msra.mxu0 0.0
    %917 = vmatprep.subr.mxu0 0.0
    %918 = vmatpush1.msra.mxu0 0.0
    %919 = vmatprep.subr.mxu0 0.0
    %920 = vmatpush1.msra.mxu0 0.0
    %921 = vmatprep.subr.mxu0 0.0
    %922 = vmatpush1.msra.mxu0 0.0
    %923 = vmatprep.subr.mxu0 0.0
    %924 = vmatpush1.msra.mxu0 0.0
    %925 = vmatprep.subr.mxu0 0.0
    %926 = vmatpush1.msra.mxu0 0.0
    %927 = vmatprep.subr.mxu0 0.0
    %928 = vmatpush1.msra.mxu0 0.0
    %929 = vmatprep.subr.mxu0 0.0
    %930 = vmatpush1.msra.mxu0 0.0
    %931 = vmatprep.subr.mxu0 0.0
    %932 = vmatpush1.msra.mxu0 0.0
    %933 = vmatprep.subr.mxu0 0.0
    %934 = vmatpush1.msra.mxu0 0.0
    %935 = vmatprep.subr.mxu0 0.0
    %936 = vmatpush1.msra.mxu0 0.0
    %937 = vmatprep.mubr.f32.mxu0 0.0
    %938 = vmatmul.mubr.f32.gmra.mrb[0].mxu0 %v871
    %v939 = vpop.f32.mrb[0].mxu0
    %v940 = vadd.f32 %v323, %v939
    %v941 = vpop.f32.mrb[0].mxu0
    %942 = vdwg.mxu0
    %v944 = vrot.slane %v940, 6
    %v946 = vadd.f32 %v311, %v944
    %v947 = vxor.u32 %v946, 2147483648
    %v948 = vmul.f32 %v947, 1.442695
    %v949 = vpow.pop %v948
    %v950 = vadd.f32 %v949, 1.0
    %v951 = vrcp.pop %v950
    %v952 = vmul.f32 1.0, %v951
    %953 = vrot.lane.b32.xlu0 %v944, 64
    %v954 = vpop.permute.xlu0 %953
    %v956 = vmul.f32 %v952, %v954
    %958 = vrot.lane.b32.xlu0 %v956, 64
    %v959 = vpop.permute.xlu0 %958
    %v961 = vadd.f32 %v311, %v959
    %v962 = vtanh.pop %v961
    %v963 = vsub.f32 1.0, %v952
    %965 = vrot.lane.b32.xlu0 %v962, 96
    %v966 = vpop.permute.xlu0 %965
    %v968 = vmul.f32 %v963, %v966
    %v969 = vrot.slane %v864, 6
    %v971 = vmul.f32 %v952, %v969
    %v972 = vadd.f32 %v968, %v971
    %974 = vrot.lane.b32.xlu0 %v972, 96
    %v975 = vpop.permute.xlu0 %974
    %s977 = scalar_lea.vmem [#allocation2], 10
    %978 = vst.msk [vmem:[%s977 - $0x2] sm:$0xc] %vm537, %v975
    %v979 = vrot.slane %v972, 2
    %980 = vrot.lane.b32.xlu0 %v979, 96
    %v981 = vpop.permute.xlu0 %980
    %v982 = vsel %vm232, %v981, 0
    %984 = vmatprep.subr.mxu0 0.0
    %985 = vmatpush1.msra.mxu0 %v314
    %986 = vmatprep.subr.mxu0 0.0
    %987 = vmatpush1.msra.mxu0 %v315
    %988 = vmatprep.subr.mxu0 0.0
    %989 = vmatpush1.msra.mxu0 %v316
    %990 = vmatprep.subr.mxu0 0.0
    %991 = vmatpush1.msra.mxu0 %v317
    %992 = vmatprep.subr.mxu0 0.0
    %993 = vmatpush1.msra.mxu0 0.0
    %994 = vmatprep.subr.mxu0 0.0
    %995 = vmatpush1.msra.mxu0 0.0
    %996 = vmatprep.subr.mxu0 0.0
    %997 = vmatpush1.msra.mxu0 0.0
    %998 = vmatprep.subr.mxu0 0.0
    %999 = vmatpush1.msra.mxu0 0.0
    %1000 = vmatprep.subr.mxu0 0.0
    %1001 = vmatpush1.msra.mxu0 0.0
    %1002 = vmatprep.subr.mxu0 0.0
    %1003 = vmatpush1.msra.mxu0 0.0
    %1004 = vmatprep.subr.mxu0 0.0
    %1005 = vmatpush1.msra.mxu0 0.0
    %1006 = vmatprep.subr.mxu0 0.0
    %1007 = vmatpush1.msra.mxu0 0.0
    %1008 = vmatprep.subr.mxu0 0.0
    %1009 = vmatpush1.msra.mxu0 0.0
    %1010 = vmatprep.subr.mxu0 0.0
    %1011 = vmatpush1.msra.mxu0 0.0
    %1012 = vmatprep.subr.mxu0 0.0
    %1013 = vmatpush1.msra.mxu0 0.0
    %1014 = vmatprep.subr.mxu0 0.0
    %1015 = vmatpush1.msra.mxu0 0.0
    %1016 = vmatprep.subr.mxu0 0.0
    %1017 = vmatpush1.msra.mxu0 0.0
    %1018 = vmatprep.subr.mxu0 0.0
    %1019 = vmatpush1.msra.mxu0 0.0
    %1020 = vmatprep.subr.mxu0 0.0
    %1021 = vmatpush1.msra.mxu0 0.0
    %1022 = vmatprep.subr.mxu0 0.0
    %1023 = vmatpush1.msra.mxu0 0.0
    %1024 = vmatprep.subr.mxu0 0.0
    %1025 = vmatpush1.msra.mxu0 0.0
    %1026 = vmatprep.subr.mxu0 0.0
    %1027 = vmatpush1.msra.mxu0 0.0
    %1028 = vmatprep.subr.mxu0 0.0
    %1029 = vmatpush1.msra.mxu0 0.0
    %1030 = vmatprep.subr.mxu0 0.0
    %1031 = vmatpush1.msra.mxu0 0.0
    %1032 = vmatprep.subr.mxu0 0.0
    %1033 = vmatpush1.msra.mxu0 0.0
    %1034 = vmatprep.subr.mxu0 0.0
    %1035 = vmatpush1.msra.mxu0 0.0
    %1036 = vmatprep.subr.mxu0 0.0
    %1037 = vmatpush1.msra.mxu0 0.0
    %1038 = vmatprep.subr.mxu0 0.0
    %1039 = vmatpush1.msra.mxu0 0.0
    %1040 = vmatprep.subr.mxu0 0.0
    %1041 = vmatpush1.msra.mxu0 0.0
    %1042 = vmatprep.subr.mxu0 0.0
    %1043 = vmatpush1.msra.mxu0 0.0
    %1044 = vmatprep.subr.mxu0 0.0
    %1045 = vmatpush1.msra.mxu0 0.0
    %1046 = vmatprep.subr.mxu0 0.0
    %1047 = vmatpush1.msra.mxu0 0.0
    %1048 = vmatprep.mubr.f32.mxu0 0.0
    %1049 = vmatmul.mubr.f32.gmra.mrb[0].mxu0 %v982
    %v1050 = vpop.f32.mrb[0].mxu0
    %v1051 = vadd.f32 %v323, %v1050
    %v1052 = vpop.f32.mrb[0].mxu0
    %1053 = vdwg.mxu0
    %v1055 = vrot.slane %v1051, 4
    %v1057 = vadd.f32 %v311, %v1055
    %v1058 = vxor.u32 %v1057, 2147483648
    %v1059 = vmul.f32 %v1058, 1.442695
    %v1060 = vpow.pop %v1059
    %v1061 = vadd.f32 %v1060, 1.0
    %v1062 = vrcp.pop %v1061
    %v1063 = vmul.f32 1.0, %v1062
    %1064 = vrot.lane.b32.xlu0 %v1055, 64
    %v1065 = vpop.permute.xlu0 %1064
    %v1067 = vmul.f32 %v1063, %v1065
    %1069 = vrot.lane.b32.xlu0 %v1067, 64
    %v1070 = vpop.permute.xlu0 %1069
    %v1072 = vadd.f32 %v311, %v1070
    %v1073 = vtanh.pop %v1072
    %v1074 = vsub.f32 1.0, %v1063
    %1076 = vrot.lane.b32.xlu0 %v1073, 96
    %v1077 = vpop.permute.xlu0 %1076
    %v1079 = vmul.f32 %v1074, %v1077
    %v1080 = vrot.slane %v972, 6
    %v1082 = vmul.f32 %v1063, %v1080
    %v1083 = vadd.f32 %v1079, %v1082
    %1085 = vrot.lane.b32.xlu0 %v1083, 96
    %v1086 = vpop.permute.xlu0 %1085
    %s1088 = scalar_lea.vmem [#allocation2], 12
    %1089 = vst.msk [vmem:[%s1088 - $0x4] sm:$0x30] %vm649, %v1086
    %v1090 = vrot.slane %v1083, 4
    %1091 = vrot.lane.b32.xlu0 %v1090, 96
    %v1092 = vpop.permute.xlu0 %1091
    %v1093 = vsel %vm232, %v1092, 0
    %1095 = vmatprep.subr.mxu0 0.0
    %1096 = vmatpush1.msra.mxu0 %v314
    %1097 = vmatprep.subr.mxu0 0.0
    %1098 = vmatpush1.msra.mxu0 %v315
    %1099 = vmatprep.subr.mxu0 0.0
    %1100 = vmatpush1.msra.mxu0 %v316
    %1101 = vmatprep.subr.mxu0 0.0
    %1102 = vmatpush1.msra.mxu0 %v317
    %1103 = vmatprep.subr.mxu0 0.0
    %1104 = vmatpush1.msra.mxu0 0.0
    %1105 = vmatprep.subr.mxu0 0.0
    %1106 = vmatpush1.msra.mxu0 0.0
    %1107 = vmatprep.subr.mxu0 0.0
    %1108 = vmatpush1.msra.mxu0 0.0
    %1109 = vmatprep.subr.mxu0 0.0
    %1110 = vmatpush1.msra.mxu0 0.0
    %1111 = vmatprep.subr.mxu0 0.0
    %1112 = vmatpush1.msra.mxu0 0.0
    %1113 = vmatprep.subr.mxu0 0.0
    %1114 = vmatpush1.msra.mxu0 0.0
    %1115 = vmatprep.subr.mxu0 0.0
    %1116 = vmatpush1.msra.mxu0 0.0
    %1117 = vmatprep.subr.mxu0 0.0
    %1118 = vmatpush1.msra.mxu0 0.0
    %1119 = vmatprep.subr.mxu0 0.0
    %1120 = vmatpush1.msra.mxu0 0.0
    %1121 = vmatprep.subr.mxu0 0.0
    %1122 = vmatpush1.msra.mxu0 0.0
    %1123 = vmatprep.subr.mxu0 0.0
    %1124 = vmatpush1.msra.mxu0 0.0
    %1125 = vmatprep.subr.mxu0 0.0
    %1126 = vmatpush1.msra.mxu0 0.0
    %1127 = vmatprep.subr.mxu0 0.0
    %1128 = vmatpush1.msra.mxu0 0.0
    %1129 = vmatprep.subr.mxu0 0.0
    %1130 = vmatpush1.msra.mxu0 0.0
    %1131 = vmatprep.subr.mxu0 0.0
    %1132 = vmatpush1.msra.mxu0 0.0
    %1133 = vmatprep.subr.mxu0 0.0
    %1134 = vmatpush1.msra.mxu0 0.0
    %1135 = vmatprep.subr.mxu0 0.0
    %1136 = vmatpush1.msra.mxu0 0.0
    %1137 = vmatprep.subr.mxu0 0.0
    %1138 = vmatpush1.msra.mxu0 0.0
    %1139 = vmatprep.subr.mxu0 0.0
    %1140 = vmatpush1.msra.mxu0 0.0
    %1141 = vmatprep.subr.mxu0 0.0
    %1142 = vmatpush1.msra.mxu0 0.0
    %1143 = vmatprep.subr.mxu0 0.0
    %1144 = vmatpush1.msra.mxu0 0.0
    %1145 = vmatprep.subr.mxu0 0.0
    %1146 = vmatpush1.msra.mxu0 0.0
    %1147 = vmatprep.subr.mxu0 0.0
    %1148 = vmatpush1.msra.mxu0 0.0
    %1149 = vmatprep.subr.mxu0 0.0
    %1150 = vmatpush1.msra.mxu0 0.0
    %1151 = vmatprep.subr.mxu0 0.0
    %1152 = vmatpush1.msra.mxu0 0.0
    %1153 = vmatprep.subr.mxu0 0.0
    %1154 = vmatpush1.msra.mxu0 0.0
    %1155 = vmatprep.subr.mxu0 0.0
    %1156 = vmatpush1.msra.mxu0 0.0
    %1157 = vmatprep.subr.mxu0 0.0
    %1158 = vmatpush1.msra.mxu0 0.0
    %1159 = vmatprep.mubr.f32.mxu0 0.0
    %1160 = vmatmul.mubr.f32.gmra.mrb[0].mxu0 %v1093
    %v1161 = vpop.f32.mrb[0].mxu0
    %v1162 = vadd.f32 %v323, %v1161
    %v1163 = vpop.f32.mrb[0].mxu0
    %1164 = vdwg.mxu0
    %v1166 = vrot.slane %v1162, 2
    %v1168 = vadd.f32 %v311, %v1166
    %v1169 = vxor.u32 %v1168, 2147483648
    %v1170 = vmul.f32 %v1169, 1.442695
    %v1171 = vpow.pop %v1170
    %v1172 = vadd.f32 %v1171, 1.0
    %v1173 = vrcp.pop %v1172
    %v1174 = vmul.f32 1.0, %v1173
    %1175 = vrot.lane.b32.xlu0 %v1166, 64
    %v1176 = vpop.permute.xlu0 %1175
    %v1178 = vmul.f32 %v1174, %v1176
    %1180 = vrot.lane.b32.xlu0 %v1178, 64
    %v1181 = vpop.permute.xlu0 %1180
    %v1183 = vadd.f32 %v311, %v1181
    %v1184 = vtanh.pop %v1183
    %v1185 = vsub.f32 1.0, %v1174
    %1187 = vrot.lane.b32.xlu0 %v1184, 96
    %v1188 = vpop.permute.xlu0 %1187
    %v1190 = vmul.f32 %v1185, %v1188
    %v1191 = vrot.slane %v1083, 6
    %v1193 = vmul.f32 %v1174, %v1191
    %v1194 = vadd.f32 %v1190, %v1193
    %1196 = vrot.lane.b32.xlu0 %v1194, 96
    %v1197 = vpop.permute.xlu0 %1196
    %s1199 = scalar_lea.vmem [#allocation2], 14
    %1200 = vst.msk [vmem:[%s1199 - $0x6] sm:$0xc0] %vm761, %v1197
    %v1201 = vld [vmem:[#allocation2] sm:$0x3]
    %v1202 = vld [vmem:[#allocation2 + $0x2] sm:$0x3]
    %v1203 = vld [vmem:[#allocation2 + $0x4] sm:$0x3]
    %v1204 = vld [vmem:[#allocation2 + $0x6] sm:$0x3]
    %v1205 = vld [vmem:[#allocation2 + $0x8] sm:$0x3]
    %v1206 = vld [vmem:[#allocation2 + $0xa] sm:$0x3]
    %v1207 = vld [vmem:[#allocation2 + $0xc] sm:$0x3]
    %v1208 = vld [vmem:[#allocation2 + $0xe] sm:$0x3]
    %v1209 = vld [vmem:[#allocation7] sm:$0x1]
    %v1211 = vlaneseq
    %v1212 = vshrl.u32 %v1211, 7
    %v1213 = vsub.s32 0, %v1212
    %v1214 = vrot.slane %v1209, %v1213
    %v1216 = vmul.f32 %v1201, %v1214
    %v1217 = vmul.f32 %v1202, %v1214
    %v1218 = vmul.f32 %v1203, %v1214
    %v1219 = vmul.f32 %v1204, %v1214
    %v1220 = vmul.f32 %v1205, %v1214
    %v1221 = vmul.f32 %v1206, %v1214
    %v1222 = vmul.f32 %v1207, %v1214
    %v1223 = vmul.f32 %v1208, %v1214
    %v1224 = vsel %vm428, %v1216, 0.0
    %1225 = vadd.xlane.f32.xlu0 %v1224
    %v1226 = vpop.xlane.xlu0 %1225
    %v1227 = vsel %vm428, %v1217, 0.0
    %1228 = vadd.xlane.f32.xlu0 %v1227
    %v1229 = vpop.xlane.xlu0 %1228
    %v1230 = vsel %vm428, %v1218, 0.0
    %1231 = vadd.xlane.f32.xlu0 %v1230
    %v1232 = vpop.xlane.xlu0 %1231
    %v1233 = vsel %vm428, %v1219, 0.0
    %1234 = vadd.xlane.f32.xlu0 %v1233
    %v1235 = vpop.xlane.xlu0 %1234
    %v1236 = vsel %vm428, %v1220, 0.0
    %1237 = vadd.xlane.f32.xlu0 %v1236
    %v1238 = vpop.xlane.xlu0 %1237
    %v1239 = vsel %vm428, %v1221, 0.0
    %1240 = vadd.xlane.f32.xlu0 %v1239
    %v1241 = vpop.xlane.xlu0 %1240
    %v1242 = vsel %vm428, %v1222, 0.0
    %1243 = vadd.xlane.f32.xlu0 %v1242
    %v1244 = vpop.xlane.xlu0 %1243
    %v1245 = vsel %vm428, %v1223, 0.0
    %1246 = vadd.xlane.f32.xlu0 %v1245
    %v1247 = vpop.xlane.xlu0 %1246
    %v1248 = vld [vmem:[%s7] sm:$0xff]
    %v1249 = vld [vmem:[%s7 + $0x8] sm:$0xff]
    %v1250 = vld [vmem:[%s7 + $0x10] sm:$0xff]
    %v1251 = vld [vmem:[%s7 + $0x18] sm:$0xff]
    %v1252 = vld [vmem:[%s7 + $0x20] sm:$0xff]
    %v1253 = vld [vmem:[#allocation9] sm:$0x1]
    %v1254 = vld [vmem:[#allocation3] sm:$0x1]
    %v1255 = vld [vmem:[%s11] sm:$0xff]
    %v1256 = vld [vmem:[%s11 + $0x8] sm:$0xff]
    %v1257 = vld [vmem:[%s11 + $0x10] sm:$0xff]
    %v1258 = vld [vmem:[%s11 + $0x18] sm:$0xff]
    %v1259 = vld [vmem:[%s12] sm:$0xff]
    %v1260 = vld [vmem:[%s12 + $0x8] sm:$0xff]
    %v1261 = vld [vmem:[%s12 + $0x10] sm:$0xff]
    %v1262 = vld [vmem:[%s12 + $0x18] sm:$0xff]
    %v1263 = vld [vmem:[#allocation10] sm:$0x1]
    %v1264 = vld [vmem:[%s14] sm:$0xff]
    %v1265 = vld [vmem:[%s14 + $0x8] sm:$0xff]
    %v1266 = vld [vmem:[%s14 + $0x10] sm:$0xff]
    %v1267 = vld [vmem:[%s14 + $0x18] sm:$0xff]
    %v1268 = vld [vmem:[#allocation12] sm:$0x1]
    %v1269 = vld [vmem:[%s16] sm:$0xff]
    %v1270 = vld [vmem:[%s16 + $0x8] sm:$0xff]
    %v1271 = vld [vmem:[%s16 + $0x10] sm:$0xff]
    %v1272 = vld [vmem:[%s16 + $0x18] sm:$0xff]
    %v1273 = vld [vmem:[%s17] sm:$0x1]
    %v1274 = vlaneseq
    %v1275 = vand.u32 %v1274, 127
    %vm1276 = vcmp.eq.s32.totalorder %v1275, 1
    %v1277 = vsel %vm1276, 1, 0
    %v1278 = vcvt.s32.f32 %v1277
    %vm1279 = vcmask 326656
    %v1281 = vsel %vm1279, %v1278, 0
    %1283 = vmatprep.subr.mxu0 0.0
    %1284 = vmatpush1.msra.mxu0 %v1248
    %1285 = vmatprep.subr.mxu0 0.0
    %1286 = vmatpush1.msra.mxu0 %v1249
    %1287 = vmatprep.subr.mxu0 0.0
    %1288 = vmatpush1.msra.mxu0 %v1250
    %1289 = vmatprep.subr.mxu0 0.0
    %1290 = vmatpush1.msra.mxu0 %v1251
    %1291 = vmatprep.subr.mxu0 0.0
    %1292 = vmatpush1.msra.mxu0 %v1252
    %1293 = vmatprep.subr.mxu0 0.0
    %1294 = vmatpush1.msra.mxu0 0.0
    %1295 = vmatprep.subr.mxu0 0.0
    %1296 = vmatpush1.msra.mxu0 0.0
    %1297 = vmatprep.subr.mxu0 0.0
    %1298 = vmatpush1.msra.mxu0 0.0
    %1299 = vmatprep.subr.mxu0 0.0
    %1300 = vmatpush1.msra.mxu0 0.0
    %1301 = vmatprep.subr.mxu0 0.0
    %1302 = vmatpush1.msra.mxu0 0.0
    %1303 = vmatprep.subr.mxu0 0.0
    %1304 = vmatpush1.msra.mxu0 0.0
    %1305 = vmatprep.subr.mxu0 0.0
    %1306 = vmatpush1.msra.mxu0 0.0
    %1307 = vmatprep.subr.mxu0 0.0
    %1308 = vmatpush1.msra.mxu0 0.0
    %1309 = vmatprep.subr.mxu0 0.0
    %1310 = vmatpush1.msra.mxu0 0.0
    %1311 = vmatprep.subr.mxu0 0.0
    %1312 = vmatpush1.msra.mxu0 0.0
    %1313 = vmatprep.subr.mxu0 0.0
    %1314 = vmatpush1.msra.mxu0 0.0
    %1315 = vmatprep.subr.mxu0 0.0
    %1316 = vmatpush1.msra.mxu0 0.0
    %1317 = vmatprep.subr.mxu0 0.0
    %1318 = vmatpush1.msra.mxu0 0.0
    %1319 = vmatprep.subr.mxu0 0.0
    %1320 = vmatpush1.msra.mxu0 0.0
    %1321 = vmatprep.subr.mxu0 0.0
    %1322 = vmatpush1.msra.mxu0 0.0
    %1323 = vmatprep.subr.mxu0 0.0
    %1324 = vmatpush1.msra.mxu0 0.0
    %1325 = vmatprep.subr.mxu0 0.0
    %1326 = vmatpush1.msra.mxu0 0.0
    %1327 = vmatprep.subr.mxu0 0.0
    %1328 = vmatpush1.msra.mxu0 0.0
    %1329 = vmatprep.subr.mxu0 0.0
    %1330 = vmatpush1.msra.mxu0 0.0
    %1331 = vmatprep.subr.mxu0 0.0
    %1332 = vmatpush1.msra.mxu0 0.0
    %1333 = vmatprep.subr.mxu0 0.0
    %1334 = vmatpush1.msra.mxu0 0.0
    %1335 = vmatprep.subr.mxu0 0.0
    %1336 = vmatpush1.msra.mxu0 0.0
    %1337 = vmatprep.subr.mxu0 0.0
    %1338 = vmatpush1.msra.mxu0 0.0
    %1339 = vmatprep.subr.mxu0 0.0
    %1340 = vmatpush1.msra.mxu0 0.0
    %1341 = vmatprep.subr.mxu0 0.0
    %1342 = vmatpush1.msra.mxu0 0.0
    %1343 = vmatprep.subr.mxu0 0.0
    %1344 = vmatpush1.msra.mxu0 0.0
    %1345 = vmatprep.subr.mxu0 0.0
    %1346 = vmatpush1.msra.mxu0 0.0
    %1347 = vmatprep.mubr.f32.mxu0 0.0
    %1348 = vmatmul.mubr.f32.gmra.mrb[0].mxu0 %v1281
    %v1349 = vpop.f32.mrb[0].mxu0
    %v1350 = vadd.f32 0.0, %v1349
    %v1351 = vpop.f32.mrb[0].mxu0
    %1352 = vdwg.mxu0
    %v1354 = vlaneseq
    %v1355 = vshrl.u32 %v1354, 7
    %v1356 = vsub.s32 0, %v1355
    %v1357 = vrot.slane %v1253, %v1356
    %1358 = vrot.lane.b32.xlu0 %v1357, 32
    %v1359 = vpop.permute.xlu0 %1358
    %v1361 = vmul.f32 %v1194, %v1359
    %1363 = vrot.lane.b32.xlu0 %v1361, 96
    %v1364 = vpop.permute.xlu0 %1363
    %v1366 = vsel %vm761, %v1364, 0.0
    %1367 = vadd.xlane.f32.xlu0 %v1366
    %v1368 = vpop.xlane.xlu0 %1367
    %v1370 = vlaneseq
    %v1371 = vshrl.u32 %v1370, 7
    %v1372 = vsub.s32 0, %v1371
    %v1373 = vrot.slane %v1254, %v1372
    %v1375 = vadd.f32 %v1368, %v1373
    %v1377 = vrot.slane %v1375, 6
    %v1379 = vadd.f32 %v1226, %v1377
    %v1380 = vadd.f32 %v1229, %v1377
    %v1381 = vadd.f32 %v1232, %v1377
    %v1382 = vadd.f32 %v1235, %v1377
    %v1383 = vadd.f32 %v1238, %v1377
    %v1384 = vadd.f32 %v1241, %v1377
    %v1385 = vadd.f32 %v1244, %v1377
    %v1386 = vadd.f32 %v1247, %v1377
    %vm1387 = vcmask 1024
    %v1388 = vsel %vm1387, %v1379, -inf
    %v1389 = vsel %vm1387, %v1380, -inf
    %v1390 = vsel %vm1387, %v1381, -inf
    %v1391 = vsel %vm1387, %v1382, -inf
    %v1392 = vsel %vm1387, %v1383, -inf
    %v1393 = vmax.f32 %v1388, %v1392
    %v1394 = vsel %vm1387, %v1384, -inf
    %v1395 = vmax.f32 %v1389, %v1394
    %v1396 = vsel %vm1387, %v1385, -inf
    %v1397 = vmax.f32 %v1390, %v1396
    %v1398 = vsel %vm1387, %v1386, -inf
    %v1399 = vmax.f32 %v1391, %v1398
    %v1400 = vmax.f32 %v1393, %v1395
    %v1401 = vmax.f32 %v1397, %v1399
    %v1402 = vmax.f32 %v1400, %v1401
    %v1403 = vsub.f32 %v1379, %v1402
    %v1404 = vsub.f32 %v1380, %v1402
    %v1405 = vsub.f32 %v1381, %v1402
    %v1406 = vsub.f32 %v1382, %v1402
    %v1407 = vsub.f32 %v1383, %v1402
    %v1408 = vsub.f32 %v1384, %v1402
    %v1409 = vsub.f32 %v1385, %v1402
    %v1410 = vsub.f32 %v1386, %v1402
    %v1411 = vmul.f32 %v1403, 1.442695
    %v1412 = vpow.pop %v1411
    %v1413 = vmul.f32 %v1404, 1.442695
    %v1414 = vpow.pop %v1413
    %v1415 = vmul.f32 %v1405, 1.442695
    %v1416 = vpow.pop %v1415
    %v1417 = vmul.f32 %v1406, 1.442695
    %v1418 = vpow.pop %v1417
    %v1419 = vmul.f32 %v1407, 1.442695
    %v1420 = vpow.pop %v1419
    %v1421 = vmul.f32 %v1408, 1.442695
    %v1422 = vpow.pop %v1421
    %v1423 = vmul.f32 %v1409, 1.442695
    %v1424 = vpow.pop %v1423
    %v1425 = vmul.f32 %v1410, 1.442695
    %v1426 = vpow.pop %v1425
    %v1427 = vsel %vm1387, %v1412, 0.0
    %v1428 = vsel %vm1387, %v1414, 0.0
    %v1429 = vadd.f32 %v1427, %v1428
    %v1430 = vsel %vm1387, %v1416, 0.0
    %v1431 = vadd.f32 %v1429, %v1430
    %v1432 = vsel %vm1387, %v1418, 0.0
    %v1433 = vadd.f32 %v1431, %v1432
    %v1434 = vsel %vm1387, %v1420, 0.0
    %v1435 = vadd.f32 %v1433, %v1434
    %v1436 = vsel %vm1387, %v1422, 0.0
    %v1437 = vadd.f32 %v1435, %v1436
    %v1438 = vsel %vm1387, %v1424, 0.0
    %v1439 = vadd.f32 %v1437, %v1438
    %v1440 = vsel %vm1387, %v1426, 0.0
    %v1441 = vadd.f32 %v1439, %v1440
    %v1442 = vrcp.pop %v1441
    %v1443 = vmul.f32 %v1412, %v1442
    %v1444 = vmul.f32 %v1414, %v1442
    %v1445 = vmul.f32 %v1416, %v1442
    %v1446 = vmul.f32 %v1418, %v1442
    %v1447 = vmul.f32 %v1420, %v1442
    %v1448 = vmul.f32 %v1422, %v1442
    %v1449 = vmul.f32 %v1424, %v1442
    %v1450 = vmul.f32 %v1426, %v1442
    %1452 = vset.pattern.permute.xlu0 0
    %1453 = vperm.xlu0 %1452, %v1443
    %v1454 = vpop.permute.xlu0 %1453
    %1457 = vset.pattern.permute.xlu0 0
    %1458 = vperm.xlu0 %1457, %v1444
    %v1459 = vpop.permute.xlu0 %1458
    %1462 = vset.pattern.permute.xlu0 0
    %1463 = vperm.xlu0 %1462, %v1445
    %v1464 = vpop.permute.xlu0 %1463
    %1467 = vset.pattern.permute.xlu0 0
    %1468 = vperm.xlu0 %1467, %v1446
    %v1469 = vpop.permute.xlu0 %1468
    %1472 = vset.pattern.permute.xlu0 0
    %1473 = vperm.xlu0 %1472, %v1447
    %v1474 = vpop.permute.xlu0 %1473
    %1477 = vset.pattern.permute.xlu0 0
    %1478 = vperm.xlu0 %1477, %v1448
    %v1479 = vpop.permute.xlu0 %1478
    %1482 = vset.pattern.permute.xlu0 0
    %1483 = vperm.xlu0 %1482, %v1449
    %v1484 = vpop.permute.xlu0 %1483
    %1487 = vset.pattern.permute.xlu0 0
    %1488 = vperm.xlu0 %1487, %v1450
    %v1489 = vpop.permute.xlu0 %1488
    %v1491 = vmul.f32 %v1454, %v1201
    %v1492 = vmul.f32 %v1459, %v1202
    %v1493 = vmul.f32 %v1464, %v1203
    %v1494 = vmul.f32 %v1469, %v1204
    %v1495 = vmul.f32 %v1474, %v1205
    %v1496 = vmul.f32 %v1479, %v1206
    %v1497 = vmul.f32 %v1484, %v1207
    %v1498 = vmul.f32 %v1489, %v1208
    %v1499 = vsel %vm428, %v1491, 0.0
    %v1500 = vsel %vm428, %v1492, 0.0
    %v1501 = vadd.f32 %v1499, %v1500
    %v1502 = vsel %vm428, %v1493, 0.0
    %v1503 = vadd.f32 %v1501, %v1502
    %v1504 = vsel %vm428, %v1494, 0.0
    %v1505 = vadd.f32 %v1503, %v1504
    %v1506 = vsel %vm428, %v1495, 0.0
    %v1507 = vadd.f32 %v1505, %v1506
    %v1508 = vsel %vm428, %v1496, 0.0
    %v1509 = vadd.f32 %v1507, %v1508
    %v1510 = vsel %vm428, %v1497, 0.0
    %v1511 = vadd.f32 %v1509, %v1510
    %v1512 = vsel %vm428, %v1498, 0.0
    %v1513 = vadd.f32 %v1511, %v1512
    %v1515 = vsel %vm232, %v1513, 0
    %1517 = vmatprep.subr.mxu0 0.0
    %1518 = vmatpush1.msra.mxu0 %v1259
    %1519 = vmatprep.subr.mxu0 0.0
    %1520 = vmatpush1.msra.mxu0 %v1260
    %1521 = vmatprep.subr.mxu0 0.0
    %1522 = vmatpush1.msra.mxu0 %v1261
    %1523 = vmatprep.subr.mxu0 0.0
    %1524 = vmatpush1.msra.mxu0 %v1262
    %1525 = vmatprep.subr.mxu0 0.0
    %1526 = vmatpush1.msra.mxu0 0.0
    %1527 = vmatprep.subr.mxu0 0.0
    %1528 = vmatpush1.msra.mxu0 0.0
    %1529 = vmatprep.subr.mxu0 0.0
    %1530 = vmatpush1.msra.mxu0 0.0
    %1531 = vmatprep.subr.mxu0 0.0
    %1532 = vmatpush1.msra.mxu0 0.0
    %1533 = vmatprep.subr.mxu0 0.0
    %1534 = vmatpush1.msra.mxu0 0.0
    %1535 = vmatprep.subr.mxu0 0.0
    %1536 = vmatpush1.msra.mxu0 0.0
    %1537 = vmatprep.subr.mxu0 0.0
    %1538 = vmatpush1.msra.mxu0 0.0
    %1539 = vmatprep.subr.mxu0 0.0
    %1540 = vmatpush1.msra.mxu0 0.0
    %1541 = vmatprep.subr.mxu0 0.0
    %1542 = vmatpush1.msra.mxu0 0.0
    %1543 = vmatprep.subr.mxu0 0.0
    %1544 = vmatpush1.msra.mxu0 0.0
    %1545 = vmatprep.subr.mxu0 0.0
    %1546 = vmatpush1.msra.mxu0 0.0
    %1547 = vmatprep.subr.mxu0 0.0
    %1548 = vmatpush1.msra.mxu0 0.0
    %1549 = vmatprep.subr.mxu0 0.0
    %1550 = vmatpush1.msra.mxu0 0.0
    %1551 = vmatprep.subr.mxu0 0.0
    %1552 = vmatpush1.msra.mxu0 0.0
    %1553 = vmatprep.subr.mxu0 0.0
    %1554 = vmatpush1.msra.mxu0 0.0
    %1555 = vmatprep.subr.mxu0 0.0
    %1556 = vmatpush1.msra.mxu0 0.0
    %1557 = vmatprep.subr.mxu0 0.0
    %1558 = vmatpush1.msra.mxu0 0.0
    %1559 = vmatprep.subr.mxu0 0.0
    %1560 = vmatpush1.msra.mxu0 0.0
    %1561 = vmatprep.subr.mxu0 0.0
    %1562 = vmatpush1.msra.mxu0 0.0
    %1563 = vmatprep.subr.mxu0 0.0
    %1564 = vmatpush1.msra.mxu0 0.0
    %1565 = vmatprep.subr.mxu0 0.0
    %1566 = vmatpush1.msra.mxu0 0.0
    %1567 = vmatprep.subr.mxu0 0.0
    %1568 = vmatpush1.msra.mxu0 0.0
    %1569 = vmatprep.subr.mxu0 0.0
    %1570 = vmatpush1.msra.mxu0 0.0
    %1571 = vmatprep.subr.mxu0 0.0
    %1572 = vmatpush1.msra.mxu0 0.0
    %1573 = vmatprep.subr.mxu0 0.0
    %1574 = vmatpush1.msra.mxu0 0.0
    %1575 = vmatprep.subr.mxu0 0.0
    %1576 = vmatpush1.msra.mxu0 0.0
    %1577 = vmatprep.subr.mxu0 0.0
    %1578 = vmatpush1.msra.mxu0 0.0
    %1579 = vmatprep.subr.mxu0 0.0
    %1580 = vmatpush1.msra.mxu0 0.0
    %1581 = vmatprep.mubr.f32.mxu0 0.0
    %1582 = vmatmul.mubr.f32.gmra.mrb[0].mxu0 %v1515
    %v1583 = vpop.f32.mrb[0].mxu0
    %v1584 = vadd.f32 0.0, %v1583
    %v1585 = vpop.f32.mrb[0].mxu0
    %1586 = vdwg.mxu0
    %v1588 = vsel %vm232, %v1350, 0
    %1590 = vmatprep.subr.mxu0 0.0
    %1591 = vmatpush1.msra.mxu0 %v1255
    %1592 = vmatprep.subr.mxu0 0.0
    %1593 = vmatpush1.msra.mxu0 %v1256
    %1594 = vmatprep.subr.mxu0 0.0
    %1595 = vmatpush1.msra.mxu0 %v1257
    %1596 = vmatprep.subr.mxu0 0.0
    %1597 = vmatpush1.msra.mxu0 %v1258
    %1598 = vmatprep.subr.mxu0 0.0
    %1599 = vmatpush1.msra.mxu0 0.0
    %1600 = vmatprep.subr.mxu0 0.0
    %1601 = vmatpush1.msra.mxu0 0.0
    %1602 = vmatprep.subr.mxu0 0.0
    %1603 = vmatpush1.msra.mxu0 0.0
    %1604 = vmatprep.subr.mxu0 0.0
    %1605 = vmatpush1.msra.mxu0 0.0
    %1606 = vmatprep.subr.mxu0 0.0
    %1607 = vmatpush1.msra.mxu0 0.0
    %1608 = vmatprep.subr.mxu0 0.0
    %1609 = vmatpush1.msra.mxu0 0.0
    %1610 = vmatprep.subr.mxu0 0.0
    %1611 = vmatpush1.msra.mxu0 0.0
    %1612 = vmatprep.subr.mxu0 0.0
    %1613 = vmatpush1.msra.mxu0 0.0
    %1614 = vmatprep.subr.mxu0 0.0
    %1615 = vmatpush1.msra.mxu0 0.0
    %1616 = vmatprep.subr.mxu0 0.0
    %1617 = vmatpush1.msra.mxu0 0.0
    %1618 = vmatprep.subr.mxu0 0.0
    %1619 = vmatpush1.msra.mxu0 0.0
    %1620 = vmatprep.subr.mxu0 0.0
    %1621 = vmatpush1.msra.mxu0 0.0
    %1622 = vmatprep.subr.mxu0 0.0
    %1623 = vmatpush1.msra.mxu0 0.0
    %1624 = vmatprep.subr.mxu0 0.0
    %1625 = vmatpush1.msra.mxu0 0.0
    %1626 = vmatprep.subr.mxu0 0.0
    %1627 = vmatpush1.msra.mxu0 0.0
    %1628 = vmatprep.subr.mxu0 0.0
    %1629 = vmatpush1.msra.mxu0 0.0
    %1630 = vmatprep.subr.mxu0 0.0
    %1631 = vmatpush1.msra.mxu0 0.0
    %1632 = vmatprep.subr.mxu0 0.0
    %1633 = vmatpush1.msra.mxu0 0.0
    %1634 = vmatprep.subr.mxu0 0.0
    %1635 = vmatpush1.msra.mxu0 0.0
    %1636 = vmatprep.subr.mxu0 0.0
    %1637 = vmatpush1.msra.mxu0 0.0
    %1638 = vmatprep.subr.mxu0 0.0
    %1639 = vmatpush1.msra.mxu0 0.0
    %1640 = vmatprep.subr.mxu0 0.0
    %1641 = vmatpush1.msra.mxu0 0.0
    %1642 = vmatprep.subr.mxu0 0.0
    %1643 = vmatpush1.msra.mxu0 0.0
    %1644 = vmatprep.subr.mxu0 0.0
    %1645 = vmatpush1.msra.mxu0 0.0
    %1646 = vmatprep.subr.mxu0 0.0
    %1647 = vmatpush1.msra.mxu0 0.0
    %1648 = vmatprep.subr.mxu0 0.0
    %1649 = vmatpush1.msra.mxu0 0.0
    %1650 = vmatprep.subr.mxu0 0.0
    %1651 = vmatpush1.msra.mxu0 0.0
    %1652 = vmatprep.subr.mxu0 0.0
    %1653 = vmatpush1.msra.mxu0 0.0
    %1654 = vmatprep.mubr.f32.mxu0 0.0
    %1655 = vmatmul.mubr.f32.gmra.mrb[0].mxu0 %v1588
    %v1656 = vpop.f32.mrb[0].mxu0
    %v1657 = vadd.f32 %v1584, %v1656
    %v1658 = vpop.f32.mrb[0].mxu0
    %1659 = vdwg.mxu0
    %v1661 = vlaneseq
    %v1662 = vshrl.u32 %v1661, 7
    %v1663 = vsub.s32 0, %v1662
    %v1664 = vrot.slane %v1263, %v1663
    %v1666 = vadd.f32 %v1657, %v1664
    %v1668 = vlaneseq
    %v1669 = vshrl.u32 %v1668, 7
    %v1670 = vsub.s32 0, %v1669
    %v1671 = vrot.slane %v1268, %v1670
    %v1673 = vrot.slane %v1194, 6
    %1674 = vrot.lane.b32.xlu0 %v1673, 96
    %v1675 = vpop.permute.xlu0 %1674
    %v1676 = vsel %vm232, %v1675, 0
    %1678 = vmatprep.subr.mxu0 0.0
    %1679 = vmatpush1.msra.mxu0 %v1264
    %1680 = vmatprep.subr.mxu0 0.0
    %1681 = vmatpush1.msra.mxu0 %v1265
    %1682 = vmatprep.subr.mxu0 0.0
    %1683 = vmatpush1.msra.mxu0 %v1266
    %1684 = vmatprep.subr.mxu0 0.0
    %1685 = vmatpush1.msra.mxu0 %v1267
    %1686 = vmatprep.subr.mxu0 0.0
    %1687 = vmatpush1.msra.mxu0 0.0
    %1688 = vmatprep.subr.mxu0 0.0
    %1689 = vmatpush1.msra.mxu0 0.0
    %1690 = vmatprep.subr.mxu0 0.0
    %1691 = vmatpush1.msra.mxu0 0.0
    %1692 = vmatprep.subr.mxu0 0.0
    %1693 = vmatpush1.msra.mxu0 0.0
    %1694 = vmatprep.subr.mxu0 0.0
    %1695 = vmatpush1.msra.mxu0 0.0
    %1696 = vmatprep.subr.mxu0 0.0
    %1697 = vmatpush1.msra.mxu0 0.0
    %1698 = vmatprep.subr.mxu0 0.0
    %1699 = vmatpush1.msra.mxu0 0.0
    %1700 = vmatprep.subr.mxu0 0.0
    %1701 = vmatpush1.msra.mxu0 0.0
    %1702 = vmatprep.subr.mxu0 0.0
    %1703 = vmatpush1.msra.mxu0 0.0
    %1704 = vmatprep.subr.mxu0 0.0
    %1705 = vmatpush1.msra.mxu0 0.0
    %1706 = vmatprep.subr.mxu0 0.0
    %1707 = vmatpush1.msra.mxu0 0.0
    %1708 = vmatprep.subr.mxu0 0.0
    %1709 = vmatpush1.msra.mxu0 0.0
    %1710 = vmatprep.subr.mxu0 0.0
    %1711 = vmatpush1.msra.mxu0 0.0
    %1712 = vmatprep.subr.mxu0 0.0
    %1713 = vmatpush1.msra.mxu0 0.0
    %1714 = vmatprep.subr.mxu0 0.0
    %1715 = vmatpush1.msra.mxu0 0.0
    %1716 = vmatprep.subr.mxu0 0.0
    %1717 = vmatpush1.msra.mxu0 0.0
    %1718 = vmatprep.subr.mxu0 0.0
    %1719 = vmatpush1.msra.mxu0 0.0
    %1720 = vmatprep.subr.mxu0 0.0
    %1721 = vmatpush1.msra.mxu0 0.0
    %1722 = vmatprep.subr.mxu0 0.0
    %1723 = vmatpush1.msra.mxu0 0.0
    %1724 = vmatprep.subr.mxu0 0.0
    %1725 = vmatpush1.msra.mxu0 0.0
    %1726 = vmatprep.subr.mxu0 0.0
    %1727 = vmatpush1.msra.mxu0 0.0
    %1728 = vmatprep.subr.mxu0 0.0
    %1729 = vmatpush1.msra.mxu0 0.0
    %1730 = vmatprep.subr.mxu0 0.0
    %1731 = vmatpush1.msra.mxu0 0.0
    %1732 = vmatprep.subr.mxu0 0.0
    %1733 = vmatpush1.msra.mxu0 0.0
    %1734 = vmatprep.subr.mxu0 0.0
    %1735 = vmatpush1.msra.mxu0 0.0
    %1736 = vmatprep.subr.mxu0 0.0
    %1737 = vmatpush1.msra.mxu0 0.0
    %1738 = vmatprep.subr.mxu0 0.0
    %1739 = vmatpush1.msra.mxu0 0.0
    %1740 = vmatprep.subr.mxu0 0.0
    %1741 = vmatpush1.msra.mxu0 0.0
    %1742 = vmatprep.mubr.f32.mxu0 0.0
    %1743 = vmatmul.mubr.f32.gmra.mrb[0].mxu0 %v1676
    %v1744 = vpop.f32.mrb[0].mxu0
    %v1745 = vadd.f32 %v1671, %v1744
    %v1746 = vpop.f32.mrb[0].mxu0
    %1747 = vdwg.mxu0
    %v1748 = vadd.f32 %v1666, %v1745
    %v1749 = vxor.u32 %v1748, 2147483648
    %v1750 = vmul.f32 %v1749, 1.442695
    %v1751 = vpow.pop %v1750
    %v1752 = vadd.f32 %v1751, 1.0
    %v1753 = vrcp.pop %v1752
    %v1754 = vmul.f32 1.0, %v1753
    %1756 = vrot.lane.b32.xlu0 %v1745, 64
    %v1757 = vpop.permute.xlu0 %1756
    %v1759 = vmul.f32 %v1754, %v1757
    %1761 = vrot.lane.b32.xlu0 %v1759, 64
    %v1762 = vpop.permute.xlu0 %1761
    %v1764 = vadd.f32 %v1666, %v1762
    %v1765 = vtanh.pop %v1764
    %v1766 = vsub.f32 1.0, %v1754
    %1768 = vrot.lane.b32.xlu0 %v1765, 96
    %v1769 = vpop.permute.xlu0 %1768
    %v1771 = vmul.f32 %v1766, %v1769
    %v1773 = vmul.f32 %v1754, %v1673
    %v1774 = vadd.f32 %v1771, %v1773
    %v1776 = vlaneseq
    %v1777 = vshrl.u32 %v1776, 7
    %v1778 = vsub.s32 0, %v1777
    %v1779 = vrot.slane %v1273, %v1778
    %1782 = vrot.lane.b32.xlu0 %v1774, 96
    %v1783 = vpop.permute.xlu0 %1782
    %v1784 = vsel %vm232, %v1783, 0
    %1786 = vmatprep.subr.mxu0 0.0
    %1787 = vmatpush1.msra.mxu0 %v1269
    %1788 = vmatprep.subr.mxu0 0.0
    %1789 = vmatpush1.msra.mxu0 %v1270
    %1790 = vmatprep.subr.mxu0 0.0
    %1791 = vmatpush1.msra.mxu0 %v1271
    %1792 = vmatprep.subr.mxu0 0.0
    %1793 = vmatpush1.msra.mxu0 %v1272
    %1794 = vmatprep.subr.mxu0 0.0
    %1795 = vmatpush1.msra.mxu0 0.0
    %1796 = vmatprep.subr.mxu0 0.0
    %1797 = vmatpush1.msra.mxu0 0.0
    %1798 = vmatprep.subr.mxu0 0.0
    %1799 = vmatpush1.msra.mxu0 0.0
    %1800 = vmatprep.subr.mxu0 0.0
    %1801 = vmatpush1.msra.mxu0 0.0
    %1802 = vmatprep.subr.mxu0 0.0
    %1803 = vmatpush1.msra.mxu0 0.0
    %1804 = vmatprep.subr.mxu0 0.0
    %1805 = vmatpush1.msra.mxu0 0.0
    %1806 = vmatprep.subr.mxu0 0.0
    %1807 = vmatpush1.msra.mxu0 0.0
    %1808 = vmatprep.subr.mxu0 0.0
    %1809 = vmatpush1.msra.mxu0 0.0
    %1810 = vmatprep.subr.mxu0 0.0
    %1811 = vmatpush1.msra.mxu0 0.0
    %1812 = vmatprep.subr.mxu0 0.0
    %1813 = vmatpush1.msra.mxu0 0.0
    %1814 = vmatprep.subr.mxu0 0.0
    %1815 = vmatpush1.msra.mxu0 0.0
    %1816 = vmatprep.subr.mxu0 0.0
    %1817 = vmatpush1.msra.mxu0 0.0
    %1818 = vmatprep.subr.mxu0 0.0
    %1819 = vmatpush1.msra.mxu0 0.0
    %1820 = vmatprep.subr.mxu0 0.0
    %1821 = vmatpush1.msra.mxu0 0.0
    %1822 = vmatprep.subr.mxu0 0.0
    %1823 = vmatpush1.msra.mxu0 0.0
    %1824 = vmatprep.subr.mxu0 0.0
    %1825 = vmatpush1.msra.mxu0 0.0
    %1826 = vmatprep.subr.mxu0 0.0
    %1827 = vmatpush1.msra.mxu0 0.0
    %1828 = vmatprep.subr.mxu0 0.0
    %1829 = vmatpush1.msra.mxu0 0.0
    %1830 = vmatprep.subr.mxu0 0.0
    %1831 = vmatpush1.msra.mxu0 0.0
    %1832 = vmatprep.subr.mxu0 0.0
    %1833 = vmatpush1.msra.mxu0 0.0
    %1834 = vmatprep.subr.mxu0 0.0
    %1835 = vmatpush1.msra.mxu0 0.0
    %1836 = vmatprep.subr.mxu0 0.0
    %1837 = vmatpush1.msra.mxu0 0.0
    %1838 = vmatprep.subr.mxu0 0.0
    %1839 = vmatpush1.msra.mxu0 0.0
    %1840 = vmatprep.subr.mxu0 0.0
    %1841 = vmatpush1.msra.mxu0 0.0
    %1842 = vmatprep.subr.mxu0 0.0
    %1843 = vmatpush1.msra.mxu0 0.0
    %1844 = vmatprep.subr.mxu0 0.0
    %1845 = vmatpush1.msra.mxu0 0.0
    %1846 = vmatprep.subr.mxu0 0.0
    %1847 = vmatpush1.msra.mxu0 0.0
    %1848 = vmatprep.subr.mxu0 0.0
    %1849 = vmatpush1.msra.mxu0 0.0
    %1850 = vmatprep.mubr.f32.mxu0 0.0
    %1851 = vmatmul.mubr.f32.gmra.mrb[0].mxu0 %v1784
    %v1852 = vpop.f32.mrb[0].mxu0
    %v1853 = vadd.f32 %v1779, %v1852
    %v1854 = vpop.f32.mrb[0].mxu0
    %1855 = vdwg.mxu0
    %vm1856 = vcmask 1041408
    %v1857 = vsel %vm1856, %v1853, -inf
    %1858 = vmax.xlane.f32.xlu0 %v1857
    %v1859 = vpop.xlane.xlu0 %1858
    %v1860 = vsub.f32 %v1853, %v1859
    %v1861 = vmul.f32 %v1860, 1.442695
    %v1862 = vpow.pop %v1861
    %v1863 = vsel %vm1856, %v1862, 0.0
    %1864 = vadd.xlane.f32.xlu0 %v1863
    %v1865 = vpop.xlane.xlu0 %1864
    %v1866 = vlog2.pop %v1865
    %v1867 = vmul.f32 %v1866, 0.6931472
    %v1868 = vsub.f32 %v1860, %v1867
    %1869 = vst [vmem:[#allocation13] sm:$0x3] %v1868
    %v1870 = vsel %vm1856, %v1868, -inf
    %1871 = vmax.xlane.f32.xlu0 %v1870
    %v1872 = vpop.xlane.xlu0 %1871
    %vm1873 = vcmp.eq.f32.partialorder %v1868, %v1872
    %v1874 = vsel %vm1873, %v1275, 128
    %v1875 = vsel %vm1856, %v1874, 2147483647
    %v1876 = vand.u32 %v1875, 65535
    %v1877 = vshra.s32 %v1875, 16
    %v1878 = vcvt.s32.f32 %v1876
    %v1879 = vcvt.s32.f32 %v1877
    %1880 = vmin.xlane.f32.xlu0 %v1879
    %v1881 = vpop.xlane.xlu0 %1880
    %vm1882 = vcmp.eq.f32.partialorder %v1879, %v1881
    %v1883 = vsel %vm1882, %v1878, inf
    %1884 = vmin.xlane.f32.xlu0 %v1883
    %v1885 = vpop.xlane.xlu0 %1884
    %v1886 = vcvt.f32.s32 %v1885
    %v1887 = vcvt.f32.s32 %v1881
    %v1888 = vshll.u32 %v1887, 16
    %v1889 = vadd.s32 %v1888, %v1886
    %1890 = vst.msk [vmem:[%s19] sm:$0x3] %vm1387, %v1889
    %vm1891 = vcmp.eq.s32.totalorder %v1275, %v1889
    %v1892 = vsel %vm1891, 1, 0
    %v1893 = vcvt.s32.f32 %v1892
    %v1895 = vsel %vm1279, %v1893, 0
    %1897 = vmatprep.subr.mxu0 0.0
    %1898 = vmatpush1.msra.mxu0 %v1248
    %1899 = vmatprep.subr.mxu0 0.0
    %1900 = vmatpush1.msra.mxu0 %v1249
    %1901 = vmatprep.subr.mxu0 0.0
    %1902 = vmatpush1.msra.mxu0 %v1250
    %1903 = vmatprep.subr.mxu0 0.0
    %1904 = vmatpush1.msra.mxu0 %v1251
    %1905 = vmatprep.subr.mxu0 0.0
    %1906 = vmatpush1.msra.mxu0 %v1252
    %1907 = vmatprep.subr.mxu0 0.0
    %1908 = vmatpush1.msra.mxu0 0.0
    %1909 = vmatprep.subr.mxu0 0.0
    %1910 = vmatpush1.msra.mxu0 0.0
    %1911 = vmatprep.subr.mxu0 0.0
    %1912 = vmatpush1.msra.mxu0 0.0
    %1913 = vmatprep.subr.mxu0 0.0
    %1914 = vmatpush1.msra.mxu0 0.0
    %1915 = vmatprep.subr.mxu0 0.0
    %1916 = vmatpush1.msra.mxu0 0.0
    %1917 = vmatprep.subr.mxu0 0.0
    %1918 = vmatpush1.msra.mxu0 0.0
    %1919 = vmatprep.subr.mxu0 0.0
    %1920 = vmatpush1.msra.mxu0 0.0
    %1921 = vmatprep.subr.mxu0 0.0
    %1922 = vmatpush1.msra.mxu0 0.0
    %1923 = vmatprep.subr.mxu0 0.0
    %1924 = vmatpush1.msra.mxu0 0.0
    %1925 = vmatprep.subr.mxu0 0.0
    %1926 = vmatpush1.msra.mxu0 0.0
    %1927 = vmatprep.subr.mxu0 0.0
    %1928 = vmatpush1.msra.mxu0 0.0
    %1929 = vmatprep.subr.mxu0 0.0
    %1930 = vmatpush1.msra.mxu0 0.0
    %1931 = vmatprep.subr.mxu0 0.0
    %1932 = vmatpush1.msra.mxu0 0.0
    %1933 = vmatprep.subr.mxu0 0.0
    %1934 = vmatpush1.msra.mxu0 0.0
    %1935 = vmatprep.subr.mxu0 0.0
    %1936 = vmatpush1.msra.mxu0 0.0
    %1937 = vmatprep.subr.mxu0 0.0
    %1938 = vmatpush1.msra.mxu0 0.0
    %1939 = vmatprep.subr.mxu0 0.0
    %1940 = vmatpush1.msra.mxu0 0.0
    %1941 = vmatprep.subr.mxu0 0.0
    %1942 = vmatpush1.msra.mxu0 0.0
    %1943 = vmatprep.subr.mxu0 0.0
    %1944 = vmatpush1.msra.mxu0 0.0
    %1945 = vmatprep.subr.mxu0 0.0
    %1946 = vmatpush1.msra.mxu0 0.0
    %1947 = vmatprep.subr.mxu0 0.0
    %1948 = vmatpush1.msra.mxu0 0.0
    %1949 = vmatprep.subr.mxu0 0.0
    %1950 = vmatpush1.msra.mxu0 0.0
    %1951 = vmatprep.subr.mxu0 0.0
    %1952 = vmatpush1.msra.mxu0 0.0
    %1953 = vmatprep.subr.mxu0 0.0
    %1954 = vmatpush1.msra.mxu0 0.0
    %1955 = vmatprep.subr.mxu0 0.0
    %1956 = vmatpush1.msra.mxu0 0.0
    %1957 = vmatprep.subr.mxu0 0.0
    %1958 = vmatpush1.msra.mxu0 0.0
    %1959 = vmatprep.subr.mxu0 0.0
    %1960 = vmatpush1.msra.mxu0 0.0
    %1961 = vmatprep.mubr.f32.mxu0 0.0
    %1962 = vmatmul.mubr.f32.gmra.mrb[0].mxu0 %v1895
    %v1963 = vpop.f32.mrb[0].mxu0
    %v1964 = vadd.f32 0.0, %v1963
    %v1965 = vpop.f32.mrb[0].mxu0
    %1966 = vdwg.mxu0
    %v1967 = vmul.f32 %v1774, %v1359
    %1969 = vrot.lane.b32.xlu0 %v1967, 96
    %v1970 = vpop.permute.xlu0 %1969
    %v1972 = vsel %vm428, %v1970, 0.0
    %1973 = vadd.xlane.f32.xlu0 %v1972
    %v1974 = vpop.xlane.xlu0 %1973
    %v1975 = vadd.f32 %v1974, %v1373
    %v1976 = vadd.f32 %v1226, %v1975
    %v1977 = vadd.f32 %v1229, %v1975
    %v1978 = vadd.f32 %v1232, %v1975
    %v1979 = vadd.f32 %v1235, %v1975
    %v1980 = vadd.f32 %v1238, %v1975
    %v1981 = vadd.f32 %v1241, %v1975
    %v1982 = vadd.f32 %v1244, %v1975
    %v1983 = vadd.f32 %v1247, %v1975
    %v1984 = vsel %vm1387, %v1976, -inf
    %v1985 = vsel %vm1387, %v1977, -inf
    %v1986 = vsel %vm1387, %v1978, -inf
    %v1987 = vsel %vm1387, %v1979, -inf
    %v1988 = vsel %vm1387, %v1980, -inf
    %v1989 = vmax.f32 %v1984, %v1988
    %v1990 = vsel %vm1387, %v1981, -inf
    %v1991 = vmax.f32 %v1985, %v1990
    %v1992 = vsel %vm1387, %v1982, -inf
    %v1993 = vmax.f32 %v1986, %v1992
    %v1994 = vsel %vm1387, %v1983, -inf
    %v1995 = vmax.f32 %v1987, %v1994
    %v1996 = vmax.f32 %v1989, %v1991
    %v1997 = vmax.f32 %v1993, %v1995
    %v1998 = vmax.f32 %v1996, %v1997
    %v1999 = vsub.f32 %v1976, %v1998
    %v2000 = vsub.f32 %v1977, %v1998
    %v2001 = vsub.f32 %v1978, %v1998
    %v2002 = vsub.f32 %v1979, %v1998
    %v2003 = vsub.f32 %v1980, %v1998
    %v2004 = vsub.f32 %v1981, %v1998
    %v2005 = vsub.f32 %v1982, %v1998
    %v2006 = vsub.f32 %v1983, %v1998
    %v2007 = vmul.f32 %v1999, 1.442695
    %v2008 = vpow.pop %v2007
    %v2009 = vmul.f32 %v2000, 1.442695
    %v2010 = vpow.pop %v2009
    %v2011 = vmul.f32 %v2001, 1.442695
    %v2012 = vpow.pop %v2011
    %v2013 = vmul.f32 %v2002, 1.442695
    %v2014 = vpow.pop %v2013
    %v2015 = vmul.f32 %v2003, 1.442695
    %v2016 = vpow.pop %v2015
    %v2017 = vmul.f32 %v2004, 1.442695
    %v2018 = vpow.pop %v2017
    %v2019 = vmul.f32 %v2005, 1.442695
    %v2020 = vpow.pop %v2019
    %v2021 = vmul.f32 %v2006, 1.442695
    %v2022 = vpow.pop %v2021
    %v2023 = vsel %vm1387, %v2008, 0.0
    %v2024 = vsel %vm1387, %v2010, 0.0
    %v2025 = vadd.f32 %v2023, %v2024
    %v2026 = vsel %vm1387, %v2012, 0.0
    %v2027 = vadd.f32 %v2025, %v2026
    %v2028 = vsel %vm1387, %v2014, 0.0
    %v2029 = vadd.f32 %v2027, %v2028
    %v2030 = vsel %vm1387, %v2016, 0.0
    %v2031 = vadd.f32 %v2029, %v2030
    %v2032 = vsel %vm1387, %v2018, 0.0
    %v2033 = vadd.f32 %v2031, %v2032
    %v2034 = vsel %vm1387, %v2020, 0.0
    %v2035 = vadd.f32 %v2033, %v2034
    %v2036 = vsel %vm1387, %v2022, 0.0
    %v2037 = vadd.f32 %v2035, %v2036
    %v2038 = vrcp.pop %v2037
    %v2039 = vmul.f32 %v2008, %v2038
    %v2040 = vmul.f32 %v2010, %v2038
    %v2041 = vmul.f32 %v2012, %v2038
    %v2042 = vmul.f32 %v2014, %v2038
    %v2043 = vmul.f32 %v2016, %v2038
    %v2044 = vmul.f32 %v2018, %v2038
    %v2045 = vmul.f32 %v2020, %v2038
    %v2046 = vmul.f32 %v2022, %v2038
    %2048 = vset.pattern.permute.xlu0 0
    %2049 = vperm.xlu0 %2048, %v2039
    %v2050 = vpop.permute.xlu0 %2049
    %2053 = vset.pattern.permute.xlu0 0
    %2054 = vperm.xlu0 %2053, %v2040
    %v2055 = vpop.permute.xlu0 %2054
    %2058 = vset.pattern.permute.xlu0 0
    %2059 = vperm.xlu0 %2058, %v2041
    %v2060 = vpop.permute.xlu0 %2059
    %2063 = vset.pattern.permute.xlu0 0
    %2064 = vperm.xlu0 %2063, %v2042
    %v2065 = vpop.permute.xlu0 %2064
    %2068 = vset.pattern.permute.xlu0 0
    %2069 = vperm.xlu0 %2068, %v2043
    %v2070 = vpop.permute.xlu0 %2069
    %2073 = vset.pattern.permute.xlu0 0
    %2074 = vperm.xlu0 %2073, %v2044
    %v2075 = vpop.permute.xlu0 %2074
    %2078 = vset.pattern.permute.xlu0 0
    %2079 = vperm.xlu0 %2078, %v2045
    %v2080 = vpop.permute.xlu0 %2079
    %2083 = vset.pattern.permute.xlu0 0
    %2084 = vperm.xlu0 %2083, %v2046
    %v2085 = vpop.permute.xlu0 %2084
    %v2087 = vmul.f32 %v2050, %v1201
    %v2088 = vmul.f32 %v2055, %v1202
    %v2089 = vmul.f32 %v2060, %v1203
    %v2090 = vmul.f32 %v2065, %v1204
    %v2091 = vmul.f32 %v2070, %v1205
    %v2092 = vmul.f32 %v2075, %v1206
    %v2093 = vmul.f32 %v2080, %v1207
    %v2094 = vmul.f32 %v2085, %v1208
    %v2095 = vsel %vm428, %v2087, 0.0
    %v2096 = vsel %vm428, %v2088, 0.0
    %v2097 = vadd.f32 %v2095, %v2096
    %v2098 = vsel %vm428, %v2089, 0.0
    %v2099 = vadd.f32 %v2097, %v2098
    %v2100 = vsel %vm428, %v2090, 0.0
    %v2101 = vadd.f32 %v2099, %v2100
    %v2102 = vsel %vm428, %v2091, 0.0
    %v2103 = vadd.f32 %v2101, %v2102
    %v2104 = vsel %vm428, %v2092, 0.0
    %v2105 = vadd.f32 %v2103, %v2104
    %v2106 = vsel %vm428, %v2093, 0.0
    %v2107 = vadd.f32 %v2105, %v2106
    %v2108 = vsel %vm428, %v2094, 0.0
    %v2109 = vadd.f32 %v2107, %v2108
    %v2111 = vsel %vm232, %v2109, 0
    %2113 = vmatprep.subr.mxu0 0.0
    %2114 = vmatpush1.msra.mxu0 %v1259
    %2115 = vmatprep.subr.mxu0 0.0
    %2116 = vmatpush1.msra.mxu0 %v1260
    %2117 = vmatprep.subr.mxu0 0.0
    %2118 = vmatpush1.msra.mxu0 %v1261
    %2119 = vmatprep.subr.mxu0 0.0
    %2120 = vmatpush1.msra.mxu0 %v1262
    %2121 = vmatprep.subr.mxu0 0.0
    %2122 = vmatpush1.msra.mxu0 0.0
    %2123 = vmatprep.subr.mxu0 0.0
    %2124 = vmatpush1.msra.mxu0 0.0
    %2125 = vmatprep.subr.mxu0 0.0
    %2126 = vmatpush1.msra.mxu0 0.0
    %2127 = vmatprep.subr.mxu0 0.0
    %2128 = vmatpush1.msra.mxu0 0.0
    %2129 = vmatprep.subr.mxu0 0.0
    %2130 = vmatpush1.msra.mxu0 0.0
    %2131 = vmatprep.subr.mxu0 0.0
    %2132 = vmatpush1.msra.mxu0 0.0
    %2133 = vmatprep.subr.mxu0 0.0
    %2134 = vmatpush1.msra.mxu0 0.0
    %2135 = vmatprep.subr.mxu0 0.0
    %2136 = vmatpush1.msra.mxu0 0.0
    %2137 = vmatprep.subr.mxu0 0.0
    %2138 = vmatpush1.msra.mxu0 0.0
    %2139 = vmatprep.subr.mxu0 0.0
    %2140 = vmatpush1.msra.mxu0 0.0
    %2141 = vmatprep.subr.mxu0 0.0
    %2142 = vmatpush1.msra.mxu0 0.0
    %2143 = vmatprep.subr.mxu0 0.0
    %2144 = vmatpush1.msra.mxu0 0.0
    %2145 = vmatprep.subr.mxu0 0.0
    %2146 = vmatpush1.msra.mxu0 0.0
    %2147 = vmatprep.subr.mxu0 0.0
    %2148 = vmatpush1.msra.mxu0 0.0
    %2149 = vmatprep.subr.mxu0 0.0
    %2150 = vmatpush1.msra.mxu0 0.0
    %2151 = vmatprep.subr.mxu0 0.0
    %2152 = vmatpush1.msra.mxu0 0.0
    %2153 = vmatprep.subr.mxu0 0.0
    %2154 = vmatpush1.msra.mxu0 0.0
    %2155 = vmatprep.subr.mxu0 0.0
    %2156 = vmatpush1.msra.mxu0 0.0
    %2157 = vmatprep.subr.mxu0 0.0
    %2158 = vmatpush1.msra.mxu0 0.0
    %2159 = vmatprep.subr.mxu0 0.0
    %2160 = vmatpush1.msra.mxu0 0.0
    %2161 = vmatprep.subr.mxu0 0.0
    %2162 = vmatpush1.msra.mxu0 0.0
    %2163 = vmatprep.subr.mxu0 0.0
    %2164 = vmatpush1.msra.mxu0 0.0
    %2165 = vmatprep.subr.mxu0 0.0
    %2166 = vmatpush1.msra.mxu0 0.0
    %2167 = vmatprep.subr.mxu0 0.0
    %2168 = vmatpush1.msra.mxu0 0.0
    %2169 = vmatprep.subr.mxu0 0.0
    %2170 = vmatpush1.msra.mxu0 0.0
    %2171 = vmatprep.subr.mxu0 0.0
    %2172 = vmatpush1.msra.mxu0 0.0
    %2173 = vmatprep.subr.mxu0 0.0
    %2174 = vmatpush1.msra.mxu0 0.0
    %2175 = vmatprep.subr.mxu0 0.0
    %2176 = vmatpush1.msra.mxu0 0.0
    %2177 = vmatprep.mubr.f32.mxu0 0.0
    %2178 = vmatmul.mubr.f32.gmra.mrb[0].mxu0 %v2111
    %v2179 = vpop.f32.mrb[0].mxu0
    %v2180 = vadd.f32 0.0, %v2179
    %v2181 = vpop.f32.mrb[0].mxu0
    %2182 = vdwg.mxu0
    %v2184 = vsel %vm232, %v1964, 0
    %2186 = vmatprep.subr.mxu0 0.0
    %2187 = vmatpush1.msra.mxu0 %v1255
    %2188 = vmatprep.subr.mxu0 0.0
    %2189 = vmatpush1.msra.mxu0 %v1256
    %2190 = vmatprep.subr.mxu0 0.0
    %2191 = vmatpush1.msra.mxu0 %v1257
    %2192 = vmatprep.subr.mxu0 0.0
    %2193 = vmatpush1.msra.mxu0 %v1258
    %2194 = vmatprep.subr.mxu0 0.0
    %2195 = vmatpush1.msra.mxu0 0.0
    %2196 = vmatprep.subr.mxu0 0.0
    %2197 = vmatpush1.msra.mxu0 0.0
    %2198 = vmatprep.subr.mxu0 0.0
    %2199 = vmatpush1.msra.mxu0 0.0
    %2200 = vmatprep.subr.mxu0 0.0
    %2201 = vmatpush1.msra.mxu0 0.0
    %2202 = vmatprep.subr.mxu0 0.0
    %2203 = vmatpush1.msra.mxu0 0.0
    %2204 = vmatprep.subr.mxu0 0.0
    %2205 = vmatpush1.msra.mxu0 0.0
    %2206 = vmatprep.subr.mxu0 0.0
    %2207 = vmatpush1.msra.mxu0 0.0
    %2208 = vmatprep.subr.mxu0 0.0
    %2209 = vmatpush1.msra.mxu0 0.0
    %2210 = vmatprep.subr.mxu0 0.0
    %2211 = vmatpush1.msra.mxu0 0.0
    %2212 = vmatprep.subr.mxu0 0.0
    %2213 = vmatpush1.msra.mxu0 0.0
    %2214 = vmatprep.subr.mxu0 0.0
    %2215 = vmatpush1.msra.mxu0 0.0
    %2216 = vmatprep.subr.mxu0 0.0
    %2217 = vmatpush1.msra.mxu0 0.0
    %2218 = vmatprep.subr.mxu0 0.0
    %2219 = vmatpush1.msra.mxu0 0.0
    %2220 = vmatprep.subr.mxu0 0.0
    %2221 = vmatpush1.msra.mxu0 0.0
    %2222 = vmatprep.subr.mxu0 0.0
    %2223 = vmatpush1.msra.mxu0 0.0
    %2224 = vmatprep.subr.mxu0 0.0
    %2225 = vmatpush1.msra.mxu0 0.0
    %2226 = vmatprep.subr.mxu0 0.0
    %2227 = vmatpush1.msra.mxu0 0.0
    %2228 = vmatprep.subr.mxu0 0.0
    %2229 = vmatpush1.msra.mxu0 0.0
    %2230 = vmatprep.subr.mxu0 0.0
    %2231 = vmatpush1.msra.mxu0 0.0
    %2232 = vmatprep.subr.mxu0 0.0
    %2233 = vmatpush1.msra.mxu0 0.0
    %2234 = vmatprep.subr.mxu0 0.0
    %2235 = vmatpush1.msra.mxu0 0.0
    %2236 = vmatprep.subr.mxu0 0.0
    %2237 = vmatpush1.msra.mxu0 0.0
    %2238 = vmatprep.subr.mxu0 0.0
    %2239 = vmatpush1.msra.mxu0 0.0
    %2240 = vmatprep.subr.mxu0 0.0
    %2241 = vmatpush1.msra.mxu0 0.0
    %2242 = vmatprep.subr.mxu0 0.0
    %2243 = vmatpush1.msra.mxu0 0.0
    %2244 = vmatprep.subr.mxu0 0.0
    %2245 = vmatpush1.msra.mxu0 0.0
    %2246 = vmatprep.subr.mxu0 0.0
    %2247 = vmatpush1.msra.mxu0 0.0
    %2248 = vmatprep.subr.mxu0 0.0
    %2249 = vmatpush1.msra.mxu0 0.0
    %2250 = vmatprep.mubr.f32.mxu0 0.0
    %2251 = vmatmul.mubr.f32.gmra.mrb[0].mxu0 %v2184
    %v2252 = vpop.f32.mrb[0].mxu0
    %v2253 = vadd.f32 %v2180, %v2252
    %v2254 = vpop.f32.mrb[0].mxu0
    %2255 = vdwg.mxu0
    %v2256 = vadd.f32 %v2253, %v1664
    %2257 = vmatprep.subr.mxu0 0.0
    %2258 = vmatpush1.msra.mxu0 %v1264
    %2259 = vmatprep.subr.mxu0 0.0
    %2260 = vmatpush1.msra.mxu0 %v1265
    %2261 = vmatprep.subr.mxu0 0.0
    %2262 = vmatpush1.msra.mxu0 %v1266
    %2263 = vmatprep.subr.mxu0 0.0
    %2264 = vmatpush1.msra.mxu0 %v1267
    %2265 = vmatprep.subr.mxu0 0.0
    %2266 = vmatpush1.msra.mxu0 0.0
    %2267 = vmatprep.subr.mxu0 0.0
    %2268 = vmatpush1.msra.mxu0 0.0
    %2269 = vmatprep.subr.mxu0 0.0
    %2270 = vmatpush1.msra.mxu0 0.0
    %2271 = vmatprep.subr.mxu0 0.0
    %2272 = vmatpush1.msra.mxu0 0.0
    %2273 = vmatprep.subr.mxu0 0.0
    %2274 = vmatpush1.msra.mxu0 0.0
    %2275 = vmatprep.subr.mxu0 0.0
    %2276 = vmatpush1.msra.mxu0 0.0
    %2277 = vmatprep.subr.mxu0 0.0
    %2278 = vmatpush1.msra.mxu0 0.0
    %2279 = vmatprep.subr.mxu0 0.0
    %2280 = vmatpush1.msra.mxu0 0.0
    %2281 = vmatprep.subr.mxu0 0.0
    %2282 = vmatpush1.msra.mxu0 0.0
    %2283 = vmatprep.subr.mxu0 0.0
    %2284 = vmatpush1.msra.mxu0 0.0
    %2285 = vmatprep.subr.mxu0 0.0
    %2286 = vmatpush1.msra.mxu0 0.0
    %2287 = vmatprep.subr.mxu0 0.0
    %2288 = vmatpush1.msra.mxu0 0.0
    %2289 = vmatprep.subr.mxu0 0.0
    %2290 = vmatpush1.msra.mxu0 0.0
    %2291 = vmatprep.subr.mxu0 0.0
    %2292 = vmatpush1.msra.mxu0 0.0
    %2293 = vmatprep.subr.mxu0 0.0
    %2294 = vmatpush1.msra.mxu0 0.0
    %2295 = vmatprep.subr.mxu0 0.0
    %2296 = vmatpush1.msra.mxu0 0.0
    %2297 = vmatprep.subr.mxu0 0.0
    %2298 = vmatpush1.msra.mxu0 0.0
    %2299 = vmatprep.subr.mxu0 0.0
    %2300 = vmatpush1.msra.mxu0 0.0
    %2301 = vmatprep.subr.mxu0 0.0
    %2302 = vmatpush1.msra.mxu0 0.0
    %2303 = vmatprep.subr.mxu0 0.0
    %2304 = vmatpush1.msra.mxu0 0.0
    %2305 = vmatprep.subr.mxu0 0.0
    %2306 = vmatpush1.msra.mxu0 0.0
    %2307 = vmatprep.subr.mxu0 0.0
    %2308 = vmatpush1.msra.mxu0 0.0
    %2309 = vmatprep.subr.mxu0 0.0
    %2310 = vmatpush1.msra.mxu0 0.0
    %2311 = vmatprep.subr.mxu0 0.0
    %2312 = vmatpush1.msra.mxu0 0.0
    %2313 = vmatprep.subr.mxu0 0.0
    %2314 = vmatpush1.msra.mxu0 0.0
    %2315 = vmatprep.subr.mxu0 0.0
    %2316 = vmatpush1.msra.mxu0 0.0
    %2317 = vmatprep.subr.mxu0 0.0
    %2318 = vmatpush1.msra.mxu0 0.0
    %2319 = vmatprep.subr.mxu0 0.0
    %2320 = vmatpush1.msra.mxu0 0.0
    %2321 = vmatprep.mubr.f32.mxu0 0.0
    %2322 = vmatmul.mubr.f32.gmra.mrb[0].mxu0 %v1784
    %v2323 = vpop.f32.mrb[0].mxu0
    %v2324 = vadd.f32 %v1671, %v2323
    %v2325 = vpop.f32.mrb[0].mxu0
    %2326 = vdwg.mxu0
    %v2327 = vadd.f32 %v2256, %v2324
    %v2328 = vxor.u32 %v2327, 2147483648
    %v2329 = vmul.f32 %v2328, 1.442695
    %v2330 = vpow.pop %v2329
    %v2331 = vadd.f32 %v2330, 1.0
    %v2332 = vrcp.pop %v2331
    %v2333 = vmul.f32 1.0, %v2332
    %2335 = vrot.lane.b32.xlu0 %v2324, 64
    %v2336 = vpop.permute.xlu0 %2335
    %v2338 = vmul.f32 %v2333, %v2336
    %2340 = vrot.lane.b32.xlu0 %v2338, 64
    %v2341 = vpop.permute.xlu0 %2340
    %v2343 = vadd.f32 %v2256, %v2341
    %v2344 = vtanh.pop %v2343
    %v2345 = vsub.f32 1.0, %v2333
    %2347 = vrot.lane.b32.xlu0 %v2344, 96
    %v2348 = vpop.permute.xlu0 %2347
    %v2350 = vmul.f32 %v2345, %v2348
    %v2351 = vmul.f32 %v2333, %v1774
    %v2352 = vadd.f32 %v2350, %v2351
    %2354 = vrot.lane.b32.xlu0 %v2352, 96
    %v2355 = vpop.permute.xlu0 %2354
    %v2356 = vsel %vm232, %v2355, 0
    %2358 = vmatprep.subr.mxu0 0.0
    %2359 = vmatpush1.msra.mxu0 %v1269
    %2360 = vmatprep.subr.mxu0 0.0
    %2361 = vmatpush1.msra.mxu0 %v1270
    %2362 = vmatprep.subr.mxu0 0.0
    %2363 = vmatpush1.msra.mxu0 %v1271
    %2364 = vmatprep.subr.mxu0 0.0
    %2365 = vmatpush1.msra.mxu0 %v1272
    %2366 = vmatprep.subr.mxu0 0.0
    %2367 = vmatpush1.msra.mxu0 0.0
    %2368 = vmatprep.subr.mxu0 0.0
    %2369 = vmatpush1.msra.mxu0 0.0
    %2370 = vmatprep.subr.mxu0 0.0
    %2371 = vmatpush1.msra.mxu0 0.0
    %2372 = vmatprep.subr.mxu0 0.0
    %2373 = vmatpush1.msra.mxu0 0.0
    %2374 = vmatprep.subr.mxu0 0.0
    %2375 = vmatpush1.msra.mxu0 0.0
    %2376 = vmatprep.subr.mxu0 0.0
    %2377 = vmatpush1.msra.mxu0 0.0
    %2378 = vmatprep.subr.mxu0 0.0
    %2379 = vmatpush1.msra.mxu0 0.0
    %2380 = vmatprep.subr.mxu0 0.0
    %2381 = vmatpush1.msra.mxu0 0.0
    %2382 = vmatprep.subr.mxu0 0.0
    %2383 = vmatpush1.msra.mxu0 0.0
    %2384 = vmatprep.subr.mxu0 0.0
    %2385 = vmatpush1.msra.mxu0 0.0
    %2386 = vmatprep.subr.mxu0 0.0
    %2387 = vmatpush1.msra.mxu0 0.0
    %2388 = vmatprep.subr.mxu0 0.0
    %2389 = vmatpush1.msra.mxu0 0.0
    %2390 = vmatprep.subr.mxu0 0.0
    %2391 = vmatpush1.msra.mxu0 0.0
    %2392 = vmatprep.subr.mxu0 0.0
    %2393 = vmatpush1.msra.mxu0 0.0
    %2394 = vmatprep.subr.mxu0 0.0
    %2395 = vmatpush1.msra.mxu0 0.0
    %2396 = vmatprep.subr.mxu0 0.0
    %2397 = vmatpush1.msra.mxu0 0.0
    %2398 = vmatprep.subr.mxu0 0.0
    %2399 = vmatpush1.msra.mxu0 0.0
    %2400 = vmatprep.subr.mxu0 0.0
    %2401 = vmatpush1.msra.mxu0 0.0
    %2402 = vmatprep.subr.mxu0 0.0
    %2403 = vmatpush1.msra.mxu0 0.0
    %2404 = vmatprep.subr.mxu0 0.0
    %2405 = vmatpush1.msra.mxu0 0.0
    %2406 = vmatprep.subr.mxu0 0.0
    %2407 = vmatpush1.msra.mxu0 0.0
    %2408 = vmatprep.subr.mxu0 0.0
    %2409 = vmatpush1.msra.mxu0 0.0
    %2410 = vmatprep.subr.mxu0 0.0
    %2411 = vmatpush1.msra.mxu0 0.0
    %2412 = vmatprep.subr.mxu0 0.0
    %2413 = vmatpush1.msra.mxu0 0.0
    %2414 = vmatprep.subr.mxu0 0.0
    %2415 = vmatpush1.msra.mxu0 0.0
    %2416 = vmatprep.subr.mxu0 0.0
    %2417 = vmatpush1.msra.mxu0 0.0
    %2418 = vmatprep.subr.mxu0 0.0
    %2419 = vmatpush1.msra.mxu0 0.0
    %2420 = vmatprep.subr.mxu0 0.0
    %2421 = vmatpush1.msra.mxu0 0.0
    %2422 = vmatprep.mubr.f32.mxu0 0.0
    %2423 = vmatmul.mubr.f32.gmra.mrb[0].mxu0 %v2356
    %v2424 = vpop.f32.mrb[0].mxu0
    %v2425 = vadd.f32 %v1779, %v2424
    %v2426 = vpop.f32.mrb[0].mxu0
    %2427 = vdwg.mxu0
    %v2428 = vsel %vm1856, %v2425, -inf
    %2429 = vmax.xlane.f32.xlu0 %v2428
    %v2430 = vpop.xlane.xlu0 %2429
    %v2431 = vsub.f32 %v2425, %v2430
    %v2432 = vmul.f32 %v2431, 1.442695
    %v2433 = vpow.pop %v2432
    %v2434 = vsel %vm1856, %v2433, 0.0
    %2435 = vadd.xlane.f32.xlu0 %v2434
    %v2436 = vpop.xlane.xlu0 %2435
    %v2437 = vlog2.pop %v2436
    %v2438 = vmul.f32 %v2437, 0.6931472
    %v2439 = vsub.f32 %v2431, %v2438
    %s2440 = scalar_lea.vmem [#allocation13], 2
    %2441 = vst [vmem:[%s2440] sm:$0x3] %v2439
    %v2442 = vsel %vm1856, %v2439, -inf
    %2443 = vmax.xlane.f32.xlu0 %v2442
    %v2444 = vpop.xlane.xlu0 %2443
    %vm2445 = vcmp.eq.f32.partialorder %v2439, %v2444
    %v2446 = vsel %vm2445, %v1275, 128
    %v2447 = vsel %vm1856, %v2446, 2147483647
    %v2448 = vand.u32 %v2447, 65535
    %v2449 = vshra.s32 %v2447, 16
    %v2450 = vcvt.s32.f32 %v2448
    %v2451 = vcvt.s32.f32 %v2449
    %2452 = vmin.xlane.f32.xlu0 %v2451
    %v2453 = vpop.xlane.xlu0 %2452
    %vm2454 = vcmp.eq.f32.partialorder %v2451, %v2453
    %v2455 = vsel %vm2454, %v2450, inf
    %2456 = vmin.xlane.f32.xlu0 %v2455
    %v2457 = vpop.xlane.xlu0 %2456
    %v2458 = vcvt.f32.s32 %v2457
    %v2459 = vcvt.f32.s32 %v2453
    %v2460 = vshll.u32 %v2459, 16
    %v2461 = vadd.s32 %v2460, %v2458
    %s2462 = scalar_lea.vmem %s19, 2
    %2463 = vst.msk [vmem:[%s2462] sm:$0x3] %vm1387, %v2461
    %vm2464 = vcmp.eq.s32.totalorder %v1275, %v2461
    %v2465 = vsel %vm2464, 1, 0
    %v2466 = vcvt.s32.f32 %v2465
    %v2468 = vsel %vm1279, %v2466, 0
    %2470 = vmatprep.subr.mxu0 0.0
    %2471 = vmatpush1.msra.mxu0 %v1248
    %2472 = vmatprep.subr.mxu0 0.0
    %2473 = vmatpush1.msra.mxu0 %v1249
    %2474 = vmatprep.subr.mxu0 0.0
    %2475 = vmatpush1.msra.mxu0 %v1250
    %2476 = vmatprep.subr.mxu0 0.0
    %2477 = vmatpush1.msra.mxu0 %v1251
    %2478 = vmatprep.subr.mxu0 0.0
    %2479 = vmatpush1.msra.mxu0 %v1252
    %2480 = vmatprep.subr.mxu0 0.0
    %2481 = vmatpush1.msra.mxu0 0.0
    %2482 = vmatprep.subr.mxu0 0.0
    %2483 = vmatpush1.msra.mxu0 0.0
    %2484 = vmatprep.subr.mxu0 0.0
    %2485 = vmatpush1.msra.mxu0 0.0
    %2486 = vmatprep.subr.mxu0 0.0
    %2487 = vmatpush1.msra.mxu0 0.0
    %2488 = vmatprep.subr.mxu0 0.0
    %2489 = vmatpush1.msra.mxu0 0.0
    %2490 = vmatprep.subr.mxu0 0.0
    %2491 = vmatpush1.msra.mxu0 0.0
    %2492 = vmatprep.subr.mxu0 0.0
    %2493 = vmatpush1.msra.mxu0 0.0
    %2494 = vmatprep.subr.mxu0 0.0
    %2495 = vmatpush1.msra.mxu0 0.0
    %2496 = vmatprep.subr.mxu0 0.0
    %2497 = vmatpush1.msra.mxu0 0.0
    %2498 = vmatprep.subr.mxu0 0.0
    %2499 = vmatpush1.msra.mxu0 0.0
    %2500 = vmatprep.subr.mxu0 0.0
    %2501 = vmatpush1.msra.mxu0 0.0
    %2502 = vmatprep.subr.mxu0 0.0
    %2503 = vmatpush1.msra.mxu0 0.0
    %2504 = vmatprep.subr.mxu0 0.0
    %2505 = vmatpush1.msra.mxu0 0.0
    %2506 = vmatprep.subr.mxu0 0.0
    %2507 = vmatpush1.msra.mxu0 0.0
    %2508 = vmatprep.subr.mxu0 0.0
    %2509 = vmatpush1.msra.mxu0 0.0
    %2510 = vmatprep.subr.mxu0 0.0
    %2511 = vmatpush1.msra.mxu0 0.0
    %2512 = vmatprep.subr.mxu0 0.0
    %2513 = vmatpush1.msra.mxu0 0.0
    %2514 = vmatprep.subr.mxu0 0.0
    %2515 = vmatpush1.msra.mxu0 0.0
    %2516 = vmatprep.subr.mxu0 0.0
    %2517 = vmatpush1.msra.mxu0 0.0
    %2518 = vmatprep.subr.mxu0 0.0
    %2519 = vmatpush1.msra.mxu0 0.0
    %2520 = vmatprep.subr.mxu0 0.0
    %2521 = vmatpush1.msra.mxu0 0.0
    %2522 = vmatprep.subr.mxu0 0.0
    %2523 = vmatpush1.msra.mxu0 0.0
    %2524 = vmatprep.subr.mxu0 0.0
    %2525 = vmatpush1.msra.mxu0 0.0
    %2526 = vmatprep.subr.mxu0 0.0
    %2527 = vmatpush1.msra.mxu0 0.0
    %2528 = vmatprep.subr.mxu0 0.0
    %2529 = vmatpush1.msra.mxu0 0.0
    %2530 = vmatprep.subr.mxu0 0.0
    %2531 = vmatpush1.msra.mxu0 0.0
    %2532 = vmatprep.subr.mxu0 0.0
    %2533 = vmatpush1.msra.mxu0 0.0
    %2534 = vmatprep.mubr.f32.mxu0 0.0
    %2535 = vmatmul.mubr.f32.gmra.mrb[0].mxu0 %v2468
    %v2536 = vpop.f32.mrb[0].mxu0
    %v2537 = vadd.f32 0.0, %v2536
    %v2538 = vpop.f32.mrb[0].mxu0
    %2539 = vdwg.mxu0
    %v2540 = vmul.f32 %v2352, %v1359
    %2542 = vrot.lane.b32.xlu0 %v2540, 96
    %v2543 = vpop.permute.xlu0 %2542
    %v2545 = vsel %vm428, %v2543, 0.0
    %2546 = vadd.xlane.f32.xlu0 %v2545
    %v2547 = vpop.xlane.xlu0 %2546
    %v2548 = vadd.f32 %v2547, %v1373
    %v2549 = vadd.f32 %v1226, %v2548
    %v2550 = vadd.f32 %v1229, %v2548
    %v2551 = vadd.f32 %v1232, %v2548
    %v2552 = vadd.f32 %v1235, %v2548
    %v2553 = vadd.f32 %v1238, %v2548
    %v2554 = vadd.f32 %v1241, %v2548
    %v2555 = vadd.f32 %v1244, %v2548
    %v2556 = vadd.f32 %v1247, %v2548
    %v2557 = vsel %vm1387, %v2549, -inf
    %v2558 = vsel %vm1387, %v2550, -inf
    %v2559 = vsel %vm1387, %v2551, -inf
    %v2560 = vsel %vm1387, %v2552, -inf
    %v2561 = vsel %vm1387, %v2553, -inf
    %v2562 = vmax.f32 %v2557, %v2561
    %v2563 = vsel %vm1387, %v2554, -inf
    %v2564 = vmax.f32 %v2558, %v2563
    %v2565 = vsel %vm1387, %v2555, -inf
    %v2566 = vmax.f32 %v2559, %v2565
    %v2567 = vsel %vm1387, %v2556, -inf
    %v2568 = vmax.f32 %v2560, %v2567
    %v2569 = vmax.f32 %v2562, %v2564
    %v2570 = vmax.f32 %v2566, %v2568
    %v2571 = vmax.f32 %v2569, %v2570
    %v2572 = vsub.f32 %v2549, %v2571
    %v2573 = vsub.f32 %v2550, %v2571
    %v2574 = vsub.f32 %v2551, %v2571
    %v2575 = vsub.f32 %v2552, %v2571
    %v2576 = vsub.f32 %v2553, %v2571
    %v2577 = vsub.f32 %v2554, %v2571
    %v2578 = vsub.f32 %v2555, %v2571
    %v2579 = vsub.f32 %v2556, %v2571
    %v2580 = vmul.f32 %v2572, 1.442695
    %v2581 = vpow.pop %v2580
    %v2582 = vmul.f32 %v2573, 1.442695
    %v2583 = vpow.pop %v2582
    %v2584 = vmul.f32 %v2574, 1.442695
    %v2585 = vpow.pop %v2584
    %v2586 = vmul.f32 %v2575, 1.442695
    %v2587 = vpow.pop %v2586
    %v2588 = vmul.f32 %v2576, 1.442695
    %v2589 = vpow.pop %v2588
    %v2590 = vmul.f32 %v2577, 1.442695
    %v2591 = vpow.pop %v2590
    %v2592 = vmul.f32 %v2578, 1.442695
    %v2593 = vpow.pop %v2592
    %v2594 = vmul.f32 %v2579, 1.442695
    %v2595 = vpow.pop %v2594
    %v2596 = vsel %vm1387, %v2581, 0.0
    %v2597 = vsel %vm1387, %v2583, 0.0
    %v2598 = vadd.f32 %v2596, %v2597
    %v2599 = vsel %vm1387, %v2585, 0.0
    %v2600 = vadd.f32 %v2598, %v2599
    %v2601 = vsel %vm1387, %v2587, 0.0
    %v2602 = vadd.f32 %v2600, %v2601
    %v2603 = vsel %vm1387, %v2589, 0.0
    %v2604 = vadd.f32 %v2602, %v2603
    %v2605 = vsel %vm1387, %v2591, 0.0
    %v2606 = vadd.f32 %v2604, %v2605
    %v2607 = vsel %vm1387, %v2593, 0.0
    %v2608 = vadd.f32 %v2606, %v2607
    %v2609 = vsel %vm1387, %v2595, 0.0
    %v2610 = vadd.f32 %v2608, %v2609
    %v2611 = vrcp.pop %v2610
    %v2612 = vmul.f32 %v2581, %v2611
    %v2613 = vmul.f32 %v2583, %v2611
    %v2614 = vmul.f32 %v2585, %v2611
    %v2615 = vmul.f32 %v2587, %v2611
    %v2616 = vmul.f32 %v2589, %v2611
    %v2617 = vmul.f32 %v2591, %v2611
    %v2618 = vmul.f32 %v2593, %v2611
    %v2619 = vmul.f32 %v2595, %v2611
    %2621 = vset.pattern.permute.xlu0 0
    %2622 = vperm.xlu0 %2621, %v2612
    %v2623 = vpop.permute.xlu0 %2622
    %2626 = vset.pattern.permute.xlu0 0
    %2627 = vperm.xlu0 %2626, %v2613
    %v2628 = vpop.permute.xlu0 %2627
    %2631 = vset.pattern.permute.xlu0 0
    %2632 = vperm.xlu0 %2631, %v2614
    %v2633 = vpop.permute.xlu0 %2632
    %2636 = vset.pattern.permute.xlu0 0
    %2637 = vperm.xlu0 %2636, %v2615
    %v2638 = vpop.permute.xlu0 %2637
    %2641 = vset.pattern.permute.xlu0 0
    %2642 = vperm.xlu0 %2641, %v2616
    %v2643 = vpop.permute.xlu0 %2642
    %2646 = vset.pattern.permute.xlu0 0
    %2647 = vperm.xlu0 %2646, %v2617
    %v2648 = vpop.permute.xlu0 %2647
    %2651 = vset.pattern.permute.xlu0 0
    %2652 = vperm.xlu0 %2651, %v2618
    %v2653 = vpop.permute.xlu0 %2652
    %2656 = vset.pattern.permute.xlu0 0
    %2657 = vperm.xlu0 %2656, %v2619
    %v2658 = vpop.permute.xlu0 %2657
    %v2660 = vmul.f32 %v2623, %v1201
    %v2661 = vmul.f32 %v2628, %v1202
    %v2662 = vmul.f32 %v2633, %v1203
    %v2663 = vmul.f32 %v2638, %v1204
    %v2664 = vmul.f32 %v2643, %v1205
    %v2665 = vmul.f32 %v2648, %v1206
    %v2666 = vmul.f32 %v2653, %v1207
    %v2667 = vmul.f32 %v2658, %v1208
    %v2668 = vsel %vm428, %v2660, 0.0
    %v2669 = vsel %vm428, %v2661, 0.0
    %v2670 = vadd.f32 %v2668, %v2669
    %v2671 = vsel %vm428, %v2662, 0.0
    %v2672 = vadd.f32 %v2670, %v2671
    %v2673 = vsel %vm428, %v2663, 0.0
    %v2674 = vadd.f32 %v2672, %v2673
    %v2675 = vsel %vm428, %v2664, 0.0
    %v2676 = vadd.f32 %v2674, %v2675
    %v2677 = vsel %vm428, %v2665, 0.0
    %v2678 = vadd.f32 %v2676, %v2677
    %v2679 = vsel %vm428, %v2666, 0.0
    %v2680 = vadd.f32 %v2678, %v2679
    %v2681 = vsel %vm428, %v2667, 0.0
    %v2682 = vadd.f32 %v2680, %v2681
    %v2684 = vsel %vm232, %v2682, 0
    %2686 = vmatprep.subr.mxu0 0.0
    %2687 = vmatpush1.msra.mxu0 %v1259
    %2688 = vmatprep.subr.mxu0 0.0
    %2689 = vmatpush1.msra.mxu0 %v1260
    %2690 = vmatprep.subr.mxu0 0.0
    %2691 = vmatpush1.msra.mxu0 %v1261
    %2692 = vmatprep.subr.mxu0 0.0
    %2693 = vmatpush1.msra.mxu0 %v1262
    %2694 = vmatprep.subr.mxu0 0.0
    %2695 = vmatpush1.msra.mxu0 0.0
    %2696 = vmatprep.subr.mxu0 0.0
    %2697 = vmatpush1.msra.mxu0 0.0
    %2698 = vmatprep.subr.mxu0 0.0
    %2699 = vmatpush1.msra.mxu0 0.0
    %2700 = vmatprep.subr.mxu0 0.0
    %2701 = vmatpush1.msra.mxu0 0.0
    %2702 = vmatprep.subr.mxu0 0.0
    %2703 = vmatpush1.msra.mxu0 0.0
    %2704 = vmatprep.subr.mxu0 0.0
    %2705 = vmatpush1.msra.mxu0 0.0
    %2706 = vmatprep.subr.mxu0 0.0
    %2707 = vmatpush1.msra.mxu0 0.0
    %2708 = vmatprep.subr.mxu0 0.0
    %2709 = vmatpush1.msra.mxu0 0.0
    %2710 = vmatprep.subr.mxu0 0.0
    %2711 = vmatpush1.msra.mxu0 0.0
    %2712 = vmatprep.subr.mxu0 0.0
    %2713 = vmatpush1.msra.mxu0 0.0
    %2714 = vmatprep.subr.mxu0 0.0
    %2715 = vmatpush1.msra.mxu0 0.0
    %2716 = vmatprep.subr.mxu0 0.0
    %2717 = vmatpush1.msra.mxu0 0.0
    %2718 = vmatprep.subr.mxu0 0.0
    %2719 = vmatpush1.msra.mxu0 0.0
    %2720 = vmatprep.subr.mxu0 0.0
    %2721 = vmatpush1.msra.mxu0 0.0
    %2722 = vmatprep.subr.mxu0 0.0
    %2723 = vmatpush1.msra.mxu0 0.0
    %2724 = vmatprep.subr.mxu0 0.0
    %2725 = vmatpush1.msra.mxu0 0.0
    %2726 = vmatprep.subr.mxu0 0.0
    %2727 = vmatpush1.msra.mxu0 0.0
    %2728 = vmatprep.subr.mxu0 0.0
    %2729 = vmatpush1.msra.mxu0 0.0
    %2730 = vmatprep.subr.mxu0 0.0
    %2731 = vmatpush1.msra.mxu0 0.0
    %2732 = vmatprep.subr.mxu0 0.0
    %2733 = vmatpush1.msra.mxu0 0.0
    %2734 = vmatprep.subr.mxu0 0.0
    %2735 = vmatpush1.msra.mxu0 0.0
    %2736 = vmatprep.subr.mxu0 0.0
    %2737 = vmatpush1.msra.mxu0 0.0
    %2738 = vmatprep.subr.mxu0 0.0
    %2739 = vmatpush1.msra.mxu0 0.0
    %2740 = vmatprep.subr.mxu0 0.0
    %2741 = vmatpush1.msra.mxu0 0.0
    %2742 = vmatprep.subr.mxu0 0.0
    %2743 = vmatpush1.msra.mxu0 0.0
    %2744 = vmatprep.subr.mxu0 0.0
    %2745 = vmatpush1.msra.mxu0 0.0
    %2746 = vmatprep.subr.mxu0 0.0
    %2747 = vmatpush1.msra.mxu0 0.0
    %2748 = vmatprep.subr.mxu0 0.0
    %2749 = vmatpush1.msra.mxu0 0.0
    %2750 = vmatprep.mubr.f32.mxu0 0.0
    %2751 = vmatmul.mubr.f32.gmra.mrb[0].mxu0 %v2684
    %v2752 = vpop.f32.mrb[0].mxu0
    %v2753 = vadd.f32 0.0, %v2752
    %v2754 = vpop.f32.mrb[0].mxu0
    %2755 = vdwg.mxu0
    %v2757 = vsel %vm232, %v2537, 0
    %2759 = vmatprep.subr.mxu0 0.0
    %2760 = vmatpush1.msra.mxu0 %v1255
    %2761 = vmatprep.subr.mxu0 0.0
    %2762 = vmatpush1.msra.mxu0 %v1256
    %2763 = vmatprep.subr.mxu0 0.0
    %2764 = vmatpush1.msra.mxu0 %v1257
    %2765 = vmatprep.subr.mxu0 0.0
    %2766 = vmatpush1.msra.mxu0 %v1258
    %2767 = vmatprep.subr.mxu0 0.0
    %2768 = vmatpush1.msra.mxu0 0.0
    %2769 = vmatprep.subr.mxu0 0.0
    %2770 = vmatpush1.msra.mxu0 0.0
    %2771 = vmatprep.subr.mxu0 0.0
    %2772 = vmatpush1.msra.mxu0 0.0
    %2773 = vmatprep.subr.mxu0 0.0
    %2774 = vmatpush1.msra.mxu0 0.0
    %2775 = vmatprep.subr.mxu0 0.0
    %2776 = vmatpush1.msra.mxu0 0.0
    %2777 = vmatprep.subr.mxu0 0.0
    %2778 = vmatpush1.msra.mxu0 0.0
    %2779 = vmatprep.subr.mxu0 0.0
    %2780 = vmatpush1.msra.mxu0 0.0
    %2781 = vmatprep.subr.mxu0 0.0
    %2782 = vmatpush1.msra.mxu0 0.0
    %2783 = vmatprep.subr.mxu0 0.0
    %2784 = vmatpush1.msra.mxu0 0.0
    %2785 = vmatprep.subr.mxu0 0.0
    %2786 = vmatpush1.msra.mxu0 0.0
    %2787 = vmatprep.subr.mxu0 0.0
    %2788 = vmatpush1.msra.mxu0 0.0
    %2789 = vmatprep.subr.mxu0 0.0
    %2790 = vmatpush1.msra.mxu0 0.0
    %2791 = vmatprep.subr.mxu0 0.0
    %2792 = vmatpush1.msra.mxu0 0.0
    %2793 = vmatprep.subr.mxu0 0.0
    %2794 = vmatpush1.msra.mxu0 0.0
    %2795 = vmatprep.subr.mxu0 0.0
    %2796 = vmatpush1.msra.mxu0 0.0
    %2797 = vmatprep.subr.mxu0 0.0
    %2798 = vmatpush1.msra.mxu0 0.0
    %2799 = vmatprep.subr.mxu0 0.0
    %2800 = vmatpush1.msra.mxu0 0.0
    %2801 = vmatprep.subr.mxu0 0.0
    %2802 = vmatpush1.msra.mxu0 0.0
    %2803 = vmatprep.subr.mxu0 0.0
    %2804 = vmatpush1.msra.mxu0 0.0
    %2805 = vmatprep.subr.mxu0 0.0
    %2806 = vmatpush1.msra.mxu0 0.0
    %2807 = vmatprep.subr.mxu0 0.0
    %2808 = vmatpush1.msra.mxu0 0.0
    %2809 = vmatprep.subr.mxu0 0.0
    %2810 = vmatpush1.msra.mxu0 0.0
    %2811 = vmatprep.subr.mxu0 0.0
    %2812 = vmatpush1.msra.mxu0 0.0
    %2813 = vmatprep.subr.mxu0 0.0
    %2814 = vmatpush1.msra.mxu0 0.0
    %2815 = vmatprep.subr.mxu0 0.0
    %2816 = vmatpush1.msra.mxu0 0.0
    %2817 = vmatprep.subr.mxu0 0.0
    %2818 = vmatpush1.msra.mxu0 0.0
    %2819 = vmatprep.subr.mxu0 0.0
    %2820 = vmatpush1.msra.mxu0 0.0
    %2821 = vmatprep.subr.mxu0 0.0
    %2822 = vmatpush1.msra.mxu0 0.0
    %2823 = vmatprep.mubr.f32.mxu0 0.0
    %2824 = vmatmul.mubr.f32.gmra.mrb[0].mxu0 %v2757
    %v2825 = vpop.f32.mrb[0].mxu0
    %v2826 = vadd.f32 %v2753, %v2825
    %v2827 = vpop.f32.mrb[0].mxu0
    %2828 = vdwg.mxu0
    %v2829 = vadd.f32 %v2826, %v1664
    %2830 = vmatprep.subr.mxu0 0.0
    %2831 = vmatpush1.msra.mxu0 %v1264
    %2832 = vmatprep.subr.mxu0 0.0
    %2833 = vmatpush1.msra.mxu0 %v1265
    %2834 = vmatprep.subr.mxu0 0.0
    %2835 = vmatpush1.msra.mxu0 %v1266
    %2836 = vmatprep.subr.mxu0 0.0
    %2837 = vmatpush1.msra.mxu0 %v1267
    %2838 = vmatprep.subr.mxu0 0.0
    %2839 = vmatpush1.msra.mxu0 0.0
    %2840 = vmatprep.subr.mxu0 0.0
    %2841 = vmatpush1.msra.mxu0 0.0
    %2842 = vmatprep.subr.mxu0 0.0
    %2843 = vmatpush1.msra.mxu0 0.0
    %2844 = vmatprep.subr.mxu0 0.0
    %2845 = vmatpush1.msra.mxu0 0.0
    %2846 = vmatprep.subr.mxu0 0.0
    %2847 = vmatpush1.msra.mxu0 0.0
    %2848 = vmatprep.subr.mxu0 0.0
    %2849 = vmatpush1.msra.mxu0 0.0
    %2850 = vmatprep.subr.mxu0 0.0
    %2851 = vmatpush1.msra.mxu0 0.0
    %2852 = vmatprep.subr.mxu0 0.0
    %2853 = vmatpush1.msra.mxu0 0.0
    %2854 = vmatprep.subr.mxu0 0.0
    %2855 = vmatpush1.msra.mxu0 0.0
    %2856 = vmatprep.subr.mxu0 0.0
    %2857 = vmatpush1.msra.mxu0 0.0
    %2858 = vmatprep.subr.mxu0 0.0
    %2859 = vmatpush1.msra.mxu0 0.0
    %2860 = vmatprep.subr.mxu0 0.0
    %2861 = vmatpush1.msra.mxu0 0.0
    %2862 = vmatprep.subr.mxu0 0.0
    %2863 = vmatpush1.msra.mxu0 0.0
    %2864 = vmatprep.subr.mxu0 0.0
    %2865 = vmatpush1.msra.mxu0 0.0
    %2866 = vmatprep.subr.mxu0 0.0
    %2867 = vmatpush1.msra.mxu0 0.0
    %2868 = vmatprep.subr.mxu0 0.0
    %2869 = vmatpush1.msra.mxu0 0.0
    %2870 = vmatprep.subr.mxu0 0.0
    %2871 = vmatpush1.msra.mxu0 0.0
    %2872 = vmatprep.subr.mxu0 0.0
    %2873 = vmatpush1.msra.mxu0 0.0
    %2874 = vmatprep.subr.mxu0 0.0
    %2875 = vmatpush1.msra.mxu0 0.0
    %2876 = vmatprep.subr.mxu0 0.0
    %2877 = vmatpush1.msra.mxu0 0.0
    %2878 = vmatprep.subr.mxu0 0.0
    %2879 = vmatpush1.msra.mxu0 0.0
    %2880 = vmatprep.subr.mxu0 0.0
    %2881 = vmatpush1.msra.mxu0 0.0
    %2882 = vmatprep.subr.mxu0 0.0
    %2883 = vmatpush1.msra.mxu0 0.0
    %2884 = vmatprep.subr.mxu0 0.0
    %2885 = vmatpush1.msra.mxu0 0.0
    %2886 = vmatprep.subr.mxu0 0.0
    %2887 = vmatpush1.msra.mxu0 0.0
    %2888 = vmatprep.subr.mxu0 0.0
    %2889 = vmatpush1.msra.mxu0 0.0
    %2890 = vmatprep.subr.mxu0 0.0
    %2891 = vmatpush1.msra.mxu0 0.0
    %2892 = vmatprep.subr.mxu0 0.0
    %2893 = vmatpush1.msra.mxu0 0.0
    %2894 = vmatprep.mubr.f32.mxu0 0.0
    %2895 = vmatmul.mubr.f32.gmra.mrb[0].mxu0 %v2356
    %v2896 = vpop.f32.mrb[0].mxu0
    %v2897 = vadd.f32 %v1671, %v2896
    %v2898 = vpop.f32.mrb[0].mxu0
    %2899 = vdwg.mxu0
    %v2900 = vadd.f32 %v2829, %v2897
    %v2901 = vxor.u32 %v2900, 2147483648
    %v2902 = vmul.f32 %v2901, 1.442695
    %v2903 = vpow.pop %v2902
    %v2904 = vadd.f32 %v2903, 1.0
    %v2905 = vrcp.pop %v2904
    %v2906 = vmul.f32 1.0, %v2905
    %2908 = vrot.lane.b32.xlu0 %v2897, 64
    %v2909 = vpop.permute.xlu0 %2908
    %v2911 = vmul.f32 %v2906, %v2909
    %2913 = vrot.lane.b32.xlu0 %v2911, 64
    %v2914 = vpop.permute.xlu0 %2913
    %v2916 = vadd.f32 %v2829, %v2914
    %v2917 = vtanh.pop %v2916
    %v2918 = vsub.f32 1.0, %v2906
    %2920 = vrot.lane.b32.xlu0 %v2917, 96
    %v2921 = vpop.permute.xlu0 %2920
    %v2923 = vmul.f32 %v2918, %v2921
    %v2924 = vmul.f32 %v2906, %v2352
    %v2925 = vadd.f32 %v2923, %v2924
    %2927 = vrot.lane.b32.xlu0 %v2925, 96
    %v2928 = vpop.permute.xlu0 %2927
    %v2929 = vsel %vm232, %v2928, 0
    %2931 = vmatprep.subr.mxu0 0.0
    %2932 = vmatpush1.msra.mxu0 %v1269
    %2933 = vmatprep.subr.mxu0 0.0
    %2934 = vmatpush1.msra.mxu0 %v1270
    %2935 = vmatprep.subr.mxu0 0.0
    %2936 = vmatpush1.msra.mxu0 %v1271
    %2937 = vmatprep.subr.mxu0 0.0
    %2938 = vmatpush1.msra.mxu0 %v1272
    %2939 = vmatprep.subr.mxu0 0.0
    %2940 = vmatpush1.msra.mxu0 0.0
    %2941 = vmatprep.subr.mxu0 0.0
    %2942 = vmatpush1.msra.mxu0 0.0
    %2943 = vmatprep.subr.mxu0 0.0
    %2944 = vmatpush1.msra.mxu0 0.0
    %2945 = vmatprep.subr.mxu0 0.0
    %2946 = vmatpush1.msra.mxu0 0.0
    %2947 = vmatprep.subr.mxu0 0.0
    %2948 = vmatpush1.msra.mxu0 0.0
    %2949 = vmatprep.subr.mxu0 0.0
    %2950 = vmatpush1.msra.mxu0 0.0
    %2951 = vmatprep.subr.mxu0 0.0
    %2952 = vmatpush1.msra.mxu0 0.0
    %2953 = vmatprep.subr.mxu0 0.0
    %2954 = vmatpush1.msra.mxu0 0.0
    %2955 = vmatprep.subr.mxu0 0.0
    %2956 = vmatpush1.msra.mxu0 0.0
    %2957 = vmatprep.subr.mxu0 0.0
    %2958 = vmatpush1.msra.mxu0 0.0
    %2959 = vmatprep.subr.mxu0 0.0
    %2960 = vmatpush1.msra.mxu0 0.0
    %2961 = vmatprep.subr.mxu0 0.0
    %2962 = vmatpush1.msra.mxu0 0.0
    %2963 = vmatprep.subr.mxu0 0.0
    %2964 = vmatpush1.msra.mxu0 0.0
    %2965 = vmatprep.subr.mxu0 0.0
    %2966 = vmatpush1.msra.mxu0 0.0
    %2967 = vmatprep.subr.mxu0 0.0
    %2968 = vmatpush1.msra.mxu0 0.0
    %2969 = vmatprep.subr.mxu0 0.0
    %2970 = vmatpush1.msra.mxu0 0.0
    %2971 = vmatprep.subr.mxu0 0.0
    %2972 = vmatpush1.msra.mxu0 0.0
    %2973 = vmatprep.subr.mxu0 0.0
    %2974 = vmatpush1.msra.mxu0 0.0
    %2975 = vmatprep.subr.mxu0 0.0
    %2976 = vmatpush1.msra.mxu0 0.0
    %2977 = vmatprep.subr.mxu0 0.0
    %2978 = vmatpush1.msra.mxu0 0.0
    %2979 = vmatprep.subr.mxu0 0.0
    %2980 = vmatpush1.msra.mxu0 0.0
    %2981 = vmatprep.subr.mxu0 0.0
    %2982 = vmatpush1.msra.mxu0 0.0
    %2983 = vmatprep.subr.mxu0 0.0
    %2984 = vmatpush1.msra.mxu0 0.0
    %2985 = vmatprep.subr.mxu0 0.0
    %2986 = vmatpush1.msra.mxu0 0.0
    %2987 = vmatprep.subr.mxu0 0.0
    %2988 = vmatpush1.msra.mxu0 0.0
    %2989 = vmatprep.subr.mxu0 0.0
    %2990 = vmatpush1.msra.mxu0 0.0
    %2991 = vmatprep.subr.mxu0 0.0
    %2992 = vmatpush1.msra.mxu0 0.0
    %2993 = vmatprep.subr.mxu0 0.0
    %2994 = vmatpush1.msra.mxu0 0.0
    %2995 = vmatprep.mubr.f32.mxu0 0.0
    %2996 = vmatmul.mubr.f32.gmra.mrb[0].mxu0 %v2929
    %v2997 = vpop.f32.mrb[0].mxu0
    %v2998 = vadd.f32 %v1779, %v2997
    %v2999 = vpop.f32.mrb[0].mxu0
    %3000 = vdwg.mxu0
    %v3001 = vsel %vm1856, %v2998, -inf
    %3002 = vmax.xlane.f32.xlu0 %v3001
    %v3003 = vpop.xlane.xlu0 %3002
    %v3004 = vsub.f32 %v2998, %v3003
    %v3005 = vmul.f32 %v3004, 1.442695
    %v3006 = vpow.pop %v3005
    %v3007 = vsel %vm1856, %v3006, 0.0
    %3008 = vadd.xlane.f32.xlu0 %v3007
    %v3009 = vpop.xlane.xlu0 %3008
    %v3010 = vlog2.pop %v3009
    %v3011 = vmul.f32 %v3010, 0.6931472
    %v3012 = vsub.f32 %v3004, %v3011
    %s3013 = scalar_lea.vmem [#allocation13], 4
    %3014 = vst [vmem:[%s3013] sm:$0x3] %v3012
    %v3015 = vsel %vm1856, %v3012, -inf
    %3016 = vmax.xlane.f32.xlu0 %v3015
    %v3017 = vpop.xlane.xlu0 %3016
    %vm3018 = vcmp.eq.f32.partialorder %v3012, %v3017
    %v3019 = vsel %vm3018, %v1275, 128
    %v3020 = vsel %vm1856, %v3019, 2147483647
    %v3021 = vand.u32 %v3020, 65535
    %v3022 = vshra.s32 %v3020, 16
    %v3023 = vcvt.s32.f32 %v3021
    %v3024 = vcvt.s32.f32 %v3022
    %3025 = vmin.xlane.f32.xlu0 %v3024
    %v3026 = vpop.xlane.xlu0 %3025
    %vm3027 = vcmp.eq.f32.partialorder %v3024, %v3026
    %v3028 = vsel %vm3027, %v3023, inf
    %3029 = vmin.xlane.f32.xlu0 %v3028
    %v3030 = vpop.xlane.xlu0 %3029
    %v3031 = vcvt.f32.s32 %v3030
    %v3032 = vcvt.f32.s32 %v3026
    %v3033 = vshll.u32 %v3032, 16
    %v3034 = vadd.s32 %v3033, %v3031
    %s3035 = scalar_lea.vmem %s19, 4
    %3036 = vst.msk [vmem:[%s3035] sm:$0x3] %vm1387, %v3034
    %vm3037 = vcmp.eq.s32.totalorder %v1275, %v3034
    %v3038 = vsel %vm3037, 1, 0
    %v3039 = vcvt.s32.f32 %v3038
    %v3041 = vsel %vm1279, %v3039, 0
    %3043 = vmatprep.subr.mxu0 0.0
    %3044 = vmatpush1.msra.mxu0 %v1248
    %3045 = vmatprep.subr.mxu0 0.0
    %3046 = vmatpush1.msra.mxu0 %v1249
    %3047 = vmatprep.subr.mxu0 0.0
    %3048 = vmatpush1.msra.mxu0 %v1250
    %3049 = vmatprep.subr.mxu0 0.0
    %3050 = vmatpush1.msra.mxu0 %v1251
    %3051 = vmatprep.subr.mxu0 0.0
    %3052 = vmatpush1.msra.mxu0 %v1252
    %3053 = vmatprep.subr.mxu0 0.0
    %3054 = vmatpush1.msra.mxu0 0.0
    %3055 = vmatprep.subr.mxu0 0.0
    %3056 = vmatpush1.msra.mxu0 0.0
    %3057 = vmatprep.subr.mxu0 0.0
    %3058 = vmatpush1.msra.mxu0 0.0
    %3059 = vmatprep.subr.mxu0 0.0
    %3060 = vmatpush1.msra.mxu0 0.0
    %3061 = vmatprep.subr.mxu0 0.0
    %3062 = vmatpush1.msra.mxu0 0.0
    %3063 = vmatprep.subr.mxu0 0.0
    %3064 = vmatpush1.msra.mxu0 0.0
    %3065 = vmatprep.subr.mxu0 0.0
    %3066 = vmatpush1.msra.mxu0 0.0
    %3067 = vmatprep.subr.mxu0 0.0
    %3068 = vmatpush1.msra.mxu0 0.0
    %3069 = vmatprep.subr.mxu0 0.0
    %3070 = vmatpush1.msra.mxu0 0.0
    %3071 = vmatprep.subr.mxu0 0.0
    %3072 = vmatpush1.msra.mxu0 0.0
    %3073 = vmatprep.subr.mxu0 0.0
    %3074 = vmatpush1.msra.mxu0 0.0
    %3075 = vmatprep.subr.mxu0 0.0
    %3076 = vmatpush1.msra.mxu0 0.0
    %3077 = vmatprep.subr.mxu0 0.0
    %3078 = vmatpush1.msra.mxu0 0.0
    %3079 = vmatprep.subr.mxu0 0.0
    %3080 = vmatpush1.msra.mxu0 0.0
    %3081 = vmatprep.subr.mxu0 0.0
    %3082 = vmatpush1.msra.mxu0 0.0
    %3083 = vmatprep.subr.mxu0 0.0
    %3084 = vmatpush1.msra.mxu0 0.0
    %3085 = vmatprep.subr.mxu0 0.0
    %3086 = vmatpush1.msra.mxu0 0.0
    %3087 = vmatprep.subr.mxu0 0.0
    %3088 = vmatpush1.msra.mxu0 0.0
    %3089 = vmatprep.subr.mxu0 0.0
    %3090 = vmatpush1.msra.mxu0 0.0
    %3091 = vmatprep.subr.mxu0 0.0
    %3092 = vmatpush1.msra.mxu0 0.0
    %3093 = vmatprep.subr.mxu0 0.0
    %3094 = vmatpush1.msra.mxu0 0.0
    %3095 = vmatprep.subr.mxu0 0.0
    %3096 = vmatpush1.msra.mxu0 0.0
    %3097 = vmatprep.subr.mxu0 0.0
    %3098 = vmatpush1.msra.mxu0 0.0
    %3099 = vmatprep.subr.mxu0 0.0
    %3100 = vmatpush1.msra.mxu0 0.0
    %3101 = vmatprep.subr.mxu0 0.0
    %3102 = vmatpush1.msra.mxu0 0.0
    %3103 = vmatprep.subr.mxu0 0.0
    %3104 = vmatpush1.msra.mxu0 0.0
    %3105 = vmatprep.subr.mxu0 0.0
    %3106 = vmatpush1.msra.mxu0 0.0
    %3107 = vmatprep.mubr.f32.mxu0 0.0
    %3108 = vmatmul.mubr.f32.gmra.mrb[0].mxu0 %v3041
    %v3109 = vpop.f32.mrb[0].mxu0
    %v3110 = vadd.f32 0.0, %v3109
    %v3111 = vpop.f32.mrb[0].mxu0
    %3112 = vdwg.mxu0
    %v3113 = vmul.f32 %v2925, %v1359
    %3115 = vrot.lane.b32.xlu0 %v3113, 96
    %v3116 = vpop.permute.xlu0 %3115
    %v3118 = vsel %vm428, %v3116, 0.0
    %3119 = vadd.xlane.f32.xlu0 %v3118
    %v3120 = vpop.xlane.xlu0 %3119
    %v3121 = vadd.f32 %v3120, %v1373
    %v3122 = vadd.f32 %v1226, %v3121
    %v3123 = vadd.f32 %v1229, %v3121
    %v3124 = vadd.f32 %v1232, %v3121
    %v3125 = vadd.f32 %v1235, %v3121
    %v3126 = vadd.f32 %v1238, %v3121
    %v3127 = vadd.f32 %v1241, %v3121
    %v3128 = vadd.f32 %v1244, %v3121
    %v3129 = vadd.f32 %v1247, %v3121
    %v3130 = vsel %vm1387, %v3122, -inf
    %v3131 = vsel %vm1387, %v3123, -inf
    %v3132 = vsel %vm1387, %v3124, -inf
    %v3133 = vsel %vm1387, %v3125, -inf
    %v3134 = vsel %vm1387, %v3126, -inf
    %v3135 = vmax.f32 %v3130, %v3134
    %v3136 = vsel %vm1387, %v3127, -inf
    %v3137 = vmax.f32 %v3131, %v3136
    %v3138 = vsel %vm1387, %v3128, -inf
    %v3139 = vmax.f32 %v3132, %v3138
    %v3140 = vsel %vm1387, %v3129, -inf
    %v3141 = vmax.f32 %v3133, %v3140
    %v3142 = vmax.f32 %v3135, %v3137
    %v3143 = vmax.f32 %v3139, %v3141
    %v3144 = vmax.f32 %v3142, %v3143
    %v3145 = vsub.f32 %v3122, %v3144
    %v3146 = vsub.f32 %v3123, %v3144
    %v3147 = vsub.f32 %v3124, %v3144
    %v3148 = vsub.f32 %v3125, %v3144
    %v3149 = vsub.f32 %v3126, %v3144
    %v3150 = vsub.f32 %v3127, %v3144
    %v3151 = vsub.f32 %v3128, %v3144
    %v3152 = vsub.f32 %v3129, %v3144
    %v3153 = vmul.f32 %v3145, 1.442695
    %v3154 = vpow.pop %v3153
    %v3155 = vmul.f32 %v3146, 1.442695
    %v3156 = vpow.pop %v3155
    %v3157 = vmul.f32 %v3147, 1.442695
    %v3158 = vpow.pop %v3157
    %v3159 = vmul.f32 %v3148, 1.442695
    %v3160 = vpow.pop %v3159
    %v3161 = vmul.f32 %v3149, 1.442695
    %v3162 = vpow.pop %v3161
    %v3163 = vmul.f32 %v3150, 1.442695
    %v3164 = vpow.pop %v3163
    %v3165 = vmul.f32 %v3151, 1.442695
    %v3166 = vpow.pop %v3165
    %v3167 = vmul.f32 %v3152, 1.442695
    %v3168 = vpow.pop %v3167
    %v3169 = vsel %vm1387, %v3154, 0.0
    %v3170 = vsel %vm1387, %v3156, 0.0
    %v3171 = vadd.f32 %v3169, %v3170
    %v3172 = vsel %vm1387, %v3158, 0.0
    %v3173 = vadd.f32 %v3171, %v3172
    %v3174 = vsel %vm1387, %v3160, 0.0
    %v3175 = vadd.f32 %v3173, %v3174
    %v3176 = vsel %vm1387, %v3162, 0.0
    %v3177 = vadd.f32 %v3175, %v3176
    %v3178 = vsel %vm1387, %v3164, 0.0
    %v3179 = vadd.f32 %v3177, %v3178
    %v3180 = vsel %vm1387, %v3166, 0.0
    %v3181 = vadd.f32 %v3179, %v3180
    %v3182 = vsel %vm1387, %v3168, 0.0
    %v3183 = vadd.f32 %v3181, %v3182
    %v3184 = vrcp.pop %v3183
    %v3185 = vmul.f32 %v3154, %v3184
    %v3186 = vmul.f32 %v3156, %v3184
    %v3187 = vmul.f32 %v3158, %v3184
    %v3188 = vmul.f32 %v3160, %v3184
    %v3189 = vmul.f32 %v3162, %v3184
    %v3190 = vmul.f32 %v3164, %v3184
    %v3191 = vmul.f32 %v3166, %v3184
    %v3192 = vmul.f32 %v3168, %v3184
    %3194 = vset.pattern.permute.xlu0 0
    %3195 = vperm.xlu0 %3194, %v3185
    %v3196 = vpop.permute.xlu0 %3195
    %3199 = vset.pattern.permute.xlu0 0
    %3200 = vperm.xlu0 %3199, %v3186
    %v3201 = vpop.permute.xlu0 %3200
    %3204 = vset.pattern.permute.xlu0 0
    %3205 = vperm.xlu0 %3204, %v3187
    %v3206 = vpop.permute.xlu0 %3205
    %3209 = vset.pattern.permute.xlu0 0
    %3210 = vperm.xlu0 %3209, %v3188
    %v3211 = vpop.permute.xlu0 %3210
    %3214 = vset.pattern.permute.xlu0 0
    %3215 = vperm.xlu0 %3214, %v3189
    %v3216 = vpop.permute.xlu0 %3215
    %3219 = vset.pattern.permute.xlu0 0
    %3220 = vperm.xlu0 %3219, %v3190
    %v3221 = vpop.permute.xlu0 %3220
    %3224 = vset.pattern.permute.xlu0 0
    %3225 = vperm.xlu0 %3224, %v3191
    %v3226 = vpop.permute.xlu0 %3225
    %3229 = vset.pattern.permute.xlu0 0
    %3230 = vperm.xlu0 %3229, %v3192
    %v3231 = vpop.permute.xlu0 %3230
    %v3233 = vmul.f32 %v3196, %v1201
    %v3234 = vmul.f32 %v3201, %v1202
    %v3235 = vmul.f32 %v3206, %v1203
    %v3236 = vmul.f32 %v3211, %v1204
    %v3237 = vmul.f32 %v3216, %v1205
    %v3238 = vmul.f32 %v3221, %v1206
    %v3239 = vmul.f32 %v3226, %v1207
    %v3240 = vmul.f32 %v3231, %v1208
    %v3241 = vsel %vm428, %v3233, 0.0
    %v3242 = vsel %vm428, %v3234, 0.0
    %v3243 = vadd.f32 %v3241, %v3242
    %v3244 = vsel %vm428, %v3235, 0.0
    %v3245 = vadd.f32 %v3243, %v3244
    %v3246 = vsel %vm428, %v3236, 0.0
    %v3247 = vadd.f32 %v3245, %v3246
    %v3248 = vsel %vm428, %v3237, 0.0
    %v3249 = vadd.f32 %v3247, %v3248
    %v3250 = vsel %vm428, %v3238, 0.0
    %v3251 = vadd.f32 %v3249, %v3250
    %v3252 = vsel %vm428, %v3239, 0.0
    %v3253 = vadd.f32 %v3251, %v3252
    %v3254 = vsel %vm428, %v3240, 0.0
    %v3255 = vadd.f32 %v3253, %v3254
    %v3257 = vsel %vm232, %v3255, 0
    %3259 = vmatprep.subr.mxu0 0.0
    %3260 = vmatpush1.msra.mxu0 %v1259
    %3261 = vmatprep.subr.mxu0 0.0
    %3262 = vmatpush1.msra.mxu0 %v1260
    %3263 = vmatprep.subr.mxu0 0.0
    %3264 = vmatpush1.msra.mxu0 %v1261
    %3265 = vmatprep.subr.mxu0 0.0
    %3266 = vmatpush1.msra.mxu0 %v1262
    %3267 = vmatprep.subr.mxu0 0.0
    %3268 = vmatpush1.msra.mxu0 0.0
    %3269 = vmatprep.subr.mxu0 0.0
    %3270 = vmatpush1.msra.mxu0 0.0
    %3271 = vmatprep.subr.mxu0 0.0
    %3272 = vmatpush1.msra.mxu0 0.0
    %3273 = vmatprep.subr.mxu0 0.0
    %3274 = vmatpush1.msra.mxu0 0.0
    %3275 = vmatprep.subr.mxu0 0.0
    %3276 = vmatpush1.msra.mxu0 0.0
    %3277 = vmatprep.subr.mxu0 0.0
    %3278 = vmatpush1.msra.mxu0 0.0
    %3279 = vmatprep.subr.mxu0 0.0
    %3280 = vmatpush1.msra.mxu0 0.0
    %3281 = vmatprep.subr.mxu0 0.0
    %3282 = vmatpush1.msra.mxu0 0.0
    %3283 = vmatprep.subr.mxu0 0.0
    %3284 = vmatpush1.msra.mxu0 0.0
    %3285 = vmatprep.subr.mxu0 0.0
    %3286 = vmatpush1.msra.mxu0 0.0
    %3287 = vmatprep.subr.mxu0 0.0
    %3288 = vmatpush1.msra.mxu0 0.0
    %3289 = vmatprep.subr.mxu0 0.0
    %3290 = vmatpush1.msra.mxu0 0.0
    %3291 = vmatprep.subr.mxu0 0.0
    %3292 = vmatpush1.msra.mxu0 0.0
    %3293 = vmatprep.subr.mxu0 0.0
    %3294 = vmatpush1.msra.mxu0 0.0
    %3295 = vmatprep.subr.mxu0 0.0
    %3296 = vmatpush1.msra.mxu0 0.0
    %3297 = vmatprep.subr.mxu0 0.0
    %3298 = vmatpush1.msra.mxu0 0.0
    %3299 = vmatprep.subr.mxu0 0.0
    %3300 = vmatpush1.msra.mxu0 0.0
    %3301 = vmatprep.subr.mxu0 0.0
    %3302 = vmatpush1.msra.mxu0 0.0
    %3303 = vmatprep.subr.mxu0 0.0
    %3304 = vmatpush1.msra.mxu0 0.0
    %3305 = vmatprep.subr.mxu0 0.0
    %3306 = vmatpush1.msra.mxu0 0.0
    %3307 = vmatprep.subr.mxu0 0.0
    %3308 = vmatpush1.msra.mxu0 0.0
    %3309 = vmatprep.subr.mxu0 0.0
    %3310 = vmatpush1.msra.mxu0 0.0
    %3311 = vmatprep.subr.mxu0 0.0
    %3312 = vmatpush1.msra.mxu0 0.0
    %3313 = vmatprep.subr.mxu0 0.0
    %3314 = vmatpush1.msra.mxu0 0.0
    %3315 = vmatprep.subr.mxu0 0.0
    %3316 = vmatpush1.msra.mxu0 0.0
    %3317 = vmatprep.subr.mxu0 0.0
    %3318 = vmatpush1.msra.mxu0 0.0
    %3319 = vmatprep.subr.mxu0 0.0
    %3320 = vmatpush1.msra.mxu0 0.0
    %3321 = vmatprep.subr.mxu0 0.0
    %3322 = vmatpush1.msra.mxu0 0.0
    %3323 = vmatprep.mubr.f32.mxu0 0.0
    %3324 = vmatmul.mubr.f32.gmra.mrb[0].mxu0 %v3257
    %v3325 = vpop.f32.mrb[0].mxu0
    %v3326 = vadd.f32 0.0, %v3325
    %v3327 = vpop.f32.mrb[0].mxu0
    %3328 = vdwg.mxu0
    %v3330 = vsel %vm232, %v3110, 0
    %3332 = vmatprep.subr.mxu0 0.0
    %3333 = vmatpush1.msra.mxu0 %v1255
    %3334 = vmatprep.subr.mxu0 0.0
    %3335 = vmatpush1.msra.mxu0 %v1256
    %3336 = vmatprep.subr.mxu0 0.0
    %3337 = vmatpush1.msra.mxu0 %v1257
    %3338 = vmatprep.subr.mxu0 0.0
    %3339 = vmatpush1.msra.mxu0 %v1258
    %3340 = vmatprep.subr.mxu0 0.0
    %3341 = vmatpush1.msra.mxu0 0.0
    %3342 = vmatprep.subr.mxu0 0.0
    %3343 = vmatpush1.msra.mxu0 0.0
    %3344 = vmatprep.subr.mxu0 0.0
    %3345 = vmatpush1.msra.mxu0 0.0
    %3346 = vmatprep.subr.mxu0 0.0
    %3347 = vmatpush1.msra.mxu0 0.0
    %3348 = vmatprep.subr.mxu0 0.0
    %3349 = vmatpush1.msra.mxu0 0.0
    %3350 = vmatprep.subr.mxu0 0.0
    %3351 = vmatpush1.msra.mxu0 0.0
    %3352 = vmatprep.subr.mxu0 0.0
    %3353 = vmatpush1.msra.mxu0 0.0
    %3354 = vmatprep.subr.mxu0 0.0
    %3355 = vmatpush1.msra.mxu0 0.0
    %3356 = vmatprep.subr.mxu0 0.0
    %3357 = vmatpush1.msra.mxu0 0.0
    %3358 = vmatprep.subr.mxu0 0.0
    %3359 = vmatpush1.msra.mxu0 0.0
    %3360 = vmatprep.subr.mxu0 0.0
    %3361 = vmatpush1.msra.mxu0 0.0
    %3362 = vmatprep.subr.mxu0 0.0
    %3363 = vmatpush1.msra.mxu0 0.0
    %3364 = vmatprep.subr.mxu0 0.0
    %3365 = vmatpush1.msra.mxu0 0.0
    %3366 = vmatprep.subr.mxu0 0.0
    %3367 = vmatpush1.msra.mxu0 0.0
    %3368 = vmatprep.subr.mxu0 0.0
    %3369 = vmatpush1.msra.mxu0 0.0
    %3370 = vmatprep.subr.mxu0 0.0
    %3371 = vmatpush1.msra.mxu0 0.0
    %3372 = vmatprep.subr.mxu0 0.0
    %3373 = vmatpush1.msra.mxu0 0.0
    %3374 = vmatprep.subr.mxu0 0.0
    %3375 = vmatpush1.msra.mxu0 0.0
    %3376 = vmatprep.subr.mxu0 0.0
    %3377 = vmatpush1.msra.mxu0 0.0
    %3378 = vmatprep.subr.mxu0 0.0
    %3379 = vmatpush1.msra.mxu0 0.0
    %3380 = vmatprep.subr.mxu0 0.0
    %3381 = vmatpush1.msra.mxu0 0.0
    %3382 = vmatprep.subr.mxu0 0.0
    %3383 = vmatpush1.msra.mxu0 0.0
    %3384 = vmatprep.subr.mxu0 0.0
    %3385 = vmatpush1.msra.mxu0 0.0
    %3386 = vmatprep.subr.mxu0 0.0
    %3387 = vmatpush1.msra.mxu0 0.0
    %3388 = vmatprep.subr.mxu0 0.0
    %3389 = vmatpush1.msra.mxu0 0.0
    %3390 = vmatprep.subr.mxu0 0.0
    %3391 = vmatpush1.msra.mxu0 0.0
    %3392 = vmatprep.subr.mxu0 0.0
    %3393 = vmatpush1.msra.mxu0 0.0
    %3394 = vmatprep.subr.mxu0 0.0
    %3395 = vmatpush1.msra.mxu0 0.0
    %3396 = vmatprep.mubr.f32.mxu0 0.0
    %3397 = vmatmul.mubr.f32.gmra.mrb[0].mxu0 %v3330
    %v3398 = vpop.f32.mrb[0].mxu0
    %v3399 = vadd.f32 %v3326, %v3398
    %v3400 = vpop.f32.mrb[0].mxu0
    %3401 = vdwg.mxu0
    %v3402 = vadd.f32 %v3399, %v1664
    %3403 = vmatprep.subr.mxu0 0.0
    %3404 = vmatpush1.msra.mxu0 %v1264
    %3405 = vmatprep.subr.mxu0 0.0
    %3406 = vmatpush1.msra.mxu0 %v1265
    %3407 = vmatprep.subr.mxu0 0.0
    %3408 = vmatpush1.msra.mxu0 %v1266
    %3409 = vmatprep.subr.mxu0 0.0
    %3410 = vmatpush1.msra.mxu0 %v1267
    %3411 = vmatprep.subr.mxu0 0.0
    %3412 = vmatpush1.msra.mxu0 0.0
    %3413 = vmatprep.subr.mxu0 0.0
    %3414 = vmatpush1.msra.mxu0 0.0
    %3415 = vmatprep.subr.mxu0 0.0
    %3416 = vmatpush1.msra.mxu0 0.0
    %3417 = vmatprep.subr.mxu0 0.0
    %3418 = vmatpush1.msra.mxu0 0.0
    %3419 = vmatprep.subr.mxu0 0.0
    %3420 = vmatpush1.msra.mxu0 0.0
    %3421 = vmatprep.subr.mxu0 0.0
    %3422 = vmatpush1.msra.mxu0 0.0
    %3423 = vmatprep.subr.mxu0 0.0
    %3424 = vmatpush1.msra.mxu0 0.0
    %3425 = vmatprep.subr.mxu0 0.0
    %3426 = vmatpush1.msra.mxu0 0.0
    %3427 = vmatprep.subr.mxu0 0.0
    %3428 = vmatpush1.msra.mxu0 0.0
    %3429 = vmatprep.subr.mxu0 0.0
    %3430 = vmatpush1.msra.mxu0 0.0
    %3431 = vmatprep.subr.mxu0 0.0
    %3432 = vmatpush1.msra.mxu0 0.0
    %3433 = vmatprep.subr.mxu0 0.0
    %3434 = vmatpush1.msra.mxu0 0.0
    %3435 = vmatprep.subr.mxu0 0.0
    %3436 = vmatpush1.msra.mxu0 0.0
    %3437 = vmatprep.subr.mxu0 0.0
    %3438 = vmatpush1.msra.mxu0 0.0
    %3439 = vmatprep.subr.mxu0 0.0
    %3440 = vmatpush1.msra.mxu0 0.0
    %3441 = vmatprep.subr.mxu0 0.0
    %3442 = vmatpush1.msra.mxu0 0.0
    %3443 = vmatprep.subr.mxu0 0.0
    %3444 = vmatpush1.msra.mxu0 0.0
    %3445 = vmatprep.subr.mxu0 0.0
    %3446 = vmatpush1.msra.mxu0 0.0
    %3447 = vmatprep.subr.mxu0 0.0
    %3448 = vmatpush1.msra.mxu0 0.0
    %3449 = vmatprep.subr.mxu0 0.0
    %3450 = vmatpush1.msra.mxu0 0.0
    %3451 = vmatprep.subr.mxu0 0.0
    %3452 = vmatpush1.msra.mxu0 0.0
    %3453 = vmatprep.subr.mxu0 0.0
    %3454 = vmatpush1.msra.mxu0 0.0
    %3455 = vmatprep.subr.mxu0 0.0
    %3456 = vmatpush1.msra.mxu0 0.0
    %3457 = vmatprep.subr.mxu0 0.0
    %3458 = vmatpush1.msra.mxu0 0.0
    %3459 = vmatprep.subr.mxu0 0.0
    %3460 = vmatpush1.msra.mxu0 0.0
    %3461 = vmatprep.subr.mxu0 0.0
    %3462 = vmatpush1.msra.mxu0 0.0
    %3463 = vmatprep.subr.mxu0 0.0
    %3464 = vmatpush1.msra.mxu0 0.0
    %3465 = vmatprep.subr.mxu0 0.0
    %3466 = vmatpush1.msra.mxu0 0.0
    %3467 = vmatprep.mubr.f32.mxu0 0.0
    %3468 = vmatmul.mubr.f32.gmra.mrb[0].mxu0 %v2929
    %v3469 = vpop.f32.mrb[0].mxu0
    %v3470 = vadd.f32 %v1671, %v3469
    %v3471 = vpop.f32.mrb[0].mxu0
    %3472 = vdwg.mxu0
    %v3473 = vadd.f32 %v3402, %v3470
    %v3474 = vxor.u32 %v3473, 2147483648
    %v3475 = vmul.f32 %v3474, 1.442695
    %v3476 = vpow.pop %v3475
    %v3477 = vadd.f32 %v3476, 1.0
    %v3478 = vrcp.pop %v3477
    %v3479 = vmul.f32 1.0, %v3478
    %3481 = vrot.lane.b32.xlu0 %v3470, 64
    %v3482 = vpop.permute.xlu0 %3481
    %v3484 = vmul.f32 %v3479, %v3482
    %3486 = vrot.lane.b32.xlu0 %v3484, 64
    %v3487 = vpop.permute.xlu0 %3486
    %v3489 = vadd.f32 %v3402, %v3487
    %v3490 = vtanh.pop %v3489
    %v3491 = vsub.f32 1.0, %v3479
    %3493 = vrot.lane.b32.xlu0 %v3490, 96
    %v3494 = vpop.permute.xlu0 %3493
    %v3496 = vmul.f32 %v3491, %v3494
    %v3497 = vmul.f32 %v3479, %v2925
    %v3498 = vadd.f32 %v3496, %v3497
    %3500 = vrot.lane.b32.xlu0 %v3498, 96
    %v3501 = vpop.permute.xlu0 %3500
    %v3502 = vsel %vm232, %v3501, 0
    %3504 = vmatprep.subr.mxu0 0.0
    %3505 = vmatpush1.msra.mxu0 %v1269
    %3506 = vmatprep.subr.mxu0 0.0
    %3507 = vmatpush1.msra.mxu0 %v1270
    %3508 = vmatprep.subr.mxu0 0.0
    %3509 = vmatpush1.msra.mxu0 %v1271
    %3510 = vmatprep.subr.mxu0 0.0
    %3511 = vmatpush1.msra.mxu0 %v1272
    %3512 = vmatprep.subr.mxu0 0.0
    %3513 = vmatpush1.msra.mxu0 0.0
    %3514 = vmatprep.subr.mxu0 0.0
    %3515 = vmatpush1.msra.mxu0 0.0
    %3516 = vmatprep.subr.mxu0 0.0
    %3517 = vmatpush1.msra.mxu0 0.0
    %3518 = vmatprep.subr.mxu0 0.0
    %3519 = vmatpush1.msra.mxu0 0.0
    %3520 = vmatprep.subr.mxu0 0.0
    %3521 = vmatpush1.msra.mxu0 0.0
    %3522 = vmatprep.subr.mxu0 0.0
    %3523 = vmatpush1.msra.mxu0 0.0
    %3524 = vmatprep.subr.mxu0 0.0
    %3525 = vmatpush1.msra.mxu0 0.0
    %3526 = vmatprep.subr.mxu0 0.0
    %3527 = vmatpush1.msra.mxu0 0.0
    %3528 = vmatprep.subr.mxu0 0.0
    %3529 = vmatpush1.msra.mxu0 0.0
    %3530 = vmatprep.subr.mxu0 0.0
    %3531 = vmatpush1.msra.mxu0 0.0
    %3532 = vmatprep.subr.mxu0 0.0
    %3533 = vmatpush1.msra.mxu0 0.0
    %3534 = vmatprep.subr.mxu0 0.0
    %3535 = vmatpush1.msra.mxu0 0.0
    %3536 = vmatprep.subr.mxu0 0.0
    %3537 = vmatpush1.msra.mxu0 0.0
    %3538 = vmatprep.subr.mxu0 0.0
    %3539 = vmatpush1.msra.mxu0 0.0
    %3540 = vmatprep.subr.mxu0 0.0
    %3541 = vmatpush1.msra.mxu0 0.0
    %3542 = vmatprep.subr.mxu0 0.0
    %3543 = vmatpush1.msra.mxu0 0.0
    %3544 = vmatprep.subr.mxu0 0.0
    %3545 = vmatpush1.msra.mxu0 0.0
    %3546 = vmatprep.subr.mxu0 0.0
    %3547 = vmatpush1.msra.mxu0 0.0
    %3548 = vmatprep.subr.mxu0 0.0
    %3549 = vmatpush1.msra.mxu0 0.0
    %3550 = vmatprep.subr.mxu0 0.0
    %3551 = vmatpush1.msra.mxu0 0.0
    %3552 = vmatprep.subr.mxu0 0.0
    %3553 = vmatpush1.msra.mxu0 0.0
    %3554 = vmatprep.subr.mxu0 0.0
    %3555 = vmatpush1.msra.mxu0 0.0
    %3556 = vmatprep.subr.mxu0 0.0
    %3557 = vmatpush1.msra.mxu0 0.0
    %3558 = vmatprep.subr.mxu0 0.0
    %3559 = vmatpush1.msra.mxu0 0.0
    %3560 = vmatprep.subr.mxu0 0.0
    %3561 = vmatpush1.msra.mxu0 0.0
    %3562 = vmatprep.subr.mxu0 0.0
    %3563 = vmatpush1.msra.mxu0 0.0
    %3564 = vmatprep.subr.mxu0 0.0
    %3565 = vmatpush1.msra.mxu0 0.0
    %3566 = vmatprep.subr.mxu0 0.0
    %3567 = vmatpush1.msra.mxu0 0.0
    %3568 = vmatprep.mubr.f32.mxu0 0.0
    %3569 = vmatmul.mubr.f32.gmra.mrb[0].mxu0 %v3502
    %v3570 = vpop.f32.mrb[0].mxu0
    %v3571 = vadd.f32 %v1779, %v3570
    %v3572 = vpop.f32.mrb[0].mxu0
    %3573 = vdwg.mxu0
    %v3574 = vsel %vm1856, %v3571, -inf
    %3575 = vmax.xlane.f32.xlu0 %v3574
    %v3576 = vpop.xlane.xlu0 %3575
    %v3577 = vsub.f32 %v3571, %v3576
    %v3578 = vmul.f32 %v3577, 1.442695
    %v3579 = vpow.pop %v3578
    %v3580 = vsel %vm1856, %v3579, 0.0
    %3581 = vadd.xlane.f32.xlu0 %v3580
    %v3582 = vpop.xlane.xlu0 %3581
    %v3583 = vlog2.pop %v3582
    %v3584 = vmul.f32 %v3583, 0.6931472
    %v3585 = vsub.f32 %v3577, %v3584
    %s3586 = scalar_lea.vmem [#allocation13], 6
    %3587 = vst [vmem:[%s3586] sm:$0x3] %v3585
    %v3588 = vsel %vm1856, %v3585, -inf
    %3589 = vmax.xlane.f32.xlu0 %v3588
    %v3590 = vpop.xlane.xlu0 %3589
    %vm3591 = vcmp.eq.f32.partialorder %v3585, %v3590
    %v3592 = vsel %vm3591, %v1275, 128
    %v3593 = vsel %vm1856, %v3592, 2147483647
    %v3594 = vand.u32 %v3593, 65535
    %v3595 = vshra.s32 %v3593, 16
    %v3596 = vcvt.s32.f32 %v3594
    %v3597 = vcvt.s32.f32 %v3595
    %3598 = vmin.xlane.f32.xlu0 %v3597
    %v3599 = vpop.xlane.xlu0 %3598
    %vm3600 = vcmp.eq.f32.partialorder %v3597, %v3599
    %v3601 = vsel %vm3600, %v3596, inf
    %3602 = vmin.xlane.f32.xlu0 %v3601
    %v3603 = vpop.xlane.xlu0 %3602
    %v3604 = vcvt.f32.s32 %v3603
    %v3605 = vcvt.f32.s32 %v3599
    %v3606 = vshll.u32 %v3605, 16
    %v3607 = vadd.s32 %v3606, %v3604
    %s3608 = scalar_lea.vmem %s19, 6
    %3609 = vst.msk [vmem:[%s3608] sm:$0x3] %vm1387, %v3607
    %vm3610 = vcmp.eq.s32.totalorder %v1275, %v3607
    %v3611 = vsel %vm3610, 1, 0
    %v3612 = vcvt.s32.f32 %v3611
    %v3614 = vsel %vm1279, %v3612, 0
    %3616 = vmatprep.subr.mxu0 0.0
    %3617 = vmatpush1.msra.mxu0 %v1248
    %3618 = vmatprep.subr.mxu0 0.0
    %3619 = vmatpush1.msra.mxu0 %v1249
    %3620 = vmatprep.subr.mxu0 0.0
    %3621 = vmatpush1.msra.mxu0 %v1250
    %3622 = vmatprep.subr.mxu0 0.0
    %3623 = vmatpush1.msra.mxu0 %v1251
    %3624 = vmatprep.subr.mxu0 0.0
    %3625 = vmatpush1.msra.mxu0 %v1252
    %3626 = vmatprep.subr.mxu0 0.0
    %3627 = vmatpush1.msra.mxu0 0.0
    %3628 = vmatprep.subr.mxu0 0.0
    %3629 = vmatpush1.msra.mxu0 0.0
    %3630 = vmatprep.subr.mxu0 0.0
    %3631 = vmatpush1.msra.mxu0 0.0
    %3632 = vmatprep.subr.mxu0 0.0
    %3633 = vmatpush1.msra.mxu0 0.0
    %3634 = vmatprep.subr.mxu0 0.0
    %3635 = vmatpush1.msra.mxu0 0.0
    %3636 = vmatprep.subr.mxu0 0.0
    %3637 = vmatpush1.msra.mxu0 0.0
    %3638 = vmatprep.subr.mxu0 0.0
    %3639 = vmatpush1.msra.mxu0 0.0
    %3640 = vmatprep.subr.mxu0 0.0
    %3641 = vmatpush1.msra.mxu0 0.0
    %3642 = vmatprep.subr.mxu0 0.0
    %3643 = vmatpush1.msra.mxu0 0.0
    %3644 = vmatprep.subr.mxu0 0.0
    %3645 = vmatpush1.msra.mxu0 0.0
    %3646 = vmatprep.subr.mxu0 0.0
    %3647 = vmatpush1.msra.mxu0 0.0
    %3648 = vmatprep.subr.mxu0 0.0
    %3649 = vmatpush1.msra.mxu0 0.0
    %3650 = vmatprep.subr.mxu0 0.0
    %3651 = vmatpush1.msra.mxu0 0.0
    %3652 = vmatprep.subr.mxu0 0.0
    %3653 = vmatpush1.msra.mxu0 0.0
    %3654 = vmatprep.subr.mxu0 0.0
    %3655 = vmatpush1.msra.mxu0 0.0
    %3656 = vmatprep.subr.mxu0 0.0
    %3657 = vmatpush1.msra.mxu0 0.0
    %3658 = vmatprep.subr.mxu0 0.0
    %3659 = vmatpush1.msra.mxu0 0.0
    %3660 = vmatprep.subr.mxu0 0.0
    %3661 = vmatpush1.msra.mxu0 0.0
    %3662 = vmatprep.subr.mxu0 0.0
    %3663 = vmatpush1.msra.mxu0 0.0
    %3664 = vmatprep.subr.mxu0 0.0
    %3665 = vmatpush1.msra.mxu0 0.0
    %3666 = vmatprep.subr.mxu0 0.0
    %3667 = vmatpush1.msra.mxu0 0.0
    %3668 = vmatprep.subr.mxu0 0.0
    %3669 = vmatpush1.msra.mxu0 0.0
    %3670 = vmatprep.subr.mxu0 0.0
    %3671 = vmatpush1.msra.mxu0 0.0
    %3672 = vmatprep.subr.mxu0 0.0
    %3673 = vmatpush1.msra.mxu0 0.0
    %3674 = vmatprep.subr.mxu0 0.0
    %3675 = vmatpush1.msra.mxu0 0.0
    %3676 = vmatprep.subr.mxu0 0.0
    %3677 = vmatpush1.msra.mxu0 0.0
    %3678 = vmatprep.subr.mxu0 0.0
    %3679 = vmatpush1.msra.mxu0 0.0
    %3680 = vmatprep.mubr.f32.mxu0 0.0
    %3681 = vmatmul.mubr.f32.gmra.mrb[0].mxu0 %v3614
    %v3682 = vpop.f32.mrb[0].mxu0
    %v3683 = vadd.f32 0.0, %v3682
    %v3684 = vpop.f32.mrb[0].mxu0
    %3685 = vdwg.mxu0
    %v3686 = vmul.f32 %v3498, %v1359
    %3688 = vrot.lane.b32.xlu0 %v3686, 96
    %v3689 = vpop.permute.xlu0 %3688
    %v3691 = vsel %vm428, %v3689, 0.0
    %3692 = vadd.xlane.f32.xlu0 %v3691
    %v3693 = vpop.xlane.xlu0 %3692
    %v3694 = vadd.f32 %v3693, %v1373
    %v3695 = vadd.f32 %v1226, %v3694
    %v3696 = vadd.f32 %v1229, %v3694
    %v3697 = vadd.f32 %v1232, %v3694
    %v3698 = vadd.f32 %v1235, %v3694
    %v3699 = vadd.f32 %v1238, %v3694
    %v3700 = vadd.f32 %v1241, %v3694
    %v3701 = vadd.f32 %v1244, %v3694
    %v3702 = vadd.f32 %v1247, %v3694
    %v3703 = vsel %vm1387, %v3695, -inf
    %v3704 = vsel %vm1387, %v3696, -inf
    %v3705 = vsel %vm1387, %v3697, -inf
    %v3706 = vsel %vm1387, %v3698, -inf
    %v3707 = vsel %vm1387, %v3699, -inf
    %v3708 = vmax.f32 %v3703, %v3707
    %v3709 = vsel %vm1387, %v3700, -inf
    %v3710 = vmax.f32 %v3704, %v3709
    %v3711 = vsel %vm1387, %v3701, -inf
    %v3712 = vmax.f32 %v3705, %v3711
    %v3713 = vsel %vm1387, %v3702, -inf
    %v3714 = vmax.f32 %v3706, %v3713
    %v3715 = vmax.f32 %v3708, %v3710
    %v3716 = vmax.f32 %v3712, %v3714
    %v3717 = vmax.f32 %v3715, %v3716
    %v3718 = vsub.f32 %v3695, %v3717
    %v3719 = vsub.f32 %v3696, %v3717
    %v3720 = vsub.f32 %v3697, %v3717
    %v3721 = vsub.f32 %v3698, %v3717
    %v3722 = vsub.f32 %v3699, %v3717
    %v3723 = vsub.f32 %v3700, %v3717
    %v3724 = vsub.f32 %v3701, %v3717
    %v3725 = vsub.f32 %v3702, %v3717
    %v3726 = vmul.f32 %v3718, 1.442695
    %v3727 = vpow.pop %v3726
    %v3728 = vmul.f32 %v3719, 1.442695
    %v3729 = vpow.pop %v3728
    %v3730 = vmul.f32 %v3720, 1.442695
    %v3731 = vpow.pop %v3730
    %v3732 = vmul.f32 %v3721, 1.442695
    %v3733 = vpow.pop %v3732
    %v3734 = vmul.f32 %v3722, 1.442695
    %v3735 = vpow.pop %v3734
    %v3736 = vmul.f32 %v3723, 1.442695
    %v3737 = vpow.pop %v3736
    %v3738 = vmul.f32 %v3724, 1.442695
    %v3739 = vpow.pop %v3738
    %v3740 = vmul.f32 %v3725, 1.442695
    %v3741 = vpow.pop %v3740
    %v3742 = vsel %vm1387, %v3727, 0.0
    %v3743 = vsel %vm1387, %v3729, 0.0
    %v3744 = vadd.f32 %v3742, %v3743
    %v3745 = vsel %vm1387, %v3731, 0.0
    %v3746 = vadd.f32 %v3744, %v3745
    %v3747 = vsel %vm1387, %v3733, 0.0
    %v3748 = vadd.f32 %v3746, %v3747
    %v3749 = vsel %vm1387, %v3735, 0.0
    %v3750 = vadd.f32 %v3748, %v3749
    %v3751 = vsel %vm1387, %v3737, 0.0
    %v3752 = vadd.f32 %v3750, %v3751
    %v3753 = vsel %vm1387, %v3739, 0.0
    %v3754 = vadd.f32 %v3752, %v3753
    %v3755 = vsel %vm1387, %v3741, 0.0
    %v3756 = vadd.f32 %v3754, %v3755
    %v3757 = vrcp.pop %v3756
    %v3758 = vmul.f32 %v3727, %v3757
    %v3759 = vmul.f32 %v3729, %v3757
    %v3760 = vmul.f32 %v3731, %v3757
    %v3761 = vmul.f32 %v3733, %v3757
    %v3762 = vmul.f32 %v3735, %v3757
    %v3763 = vmul.f32 %v3737, %v3757
    %v3764 = vmul.f32 %v3739, %v3757
    %v3765 = vmul.f32 %v3741, %v3757
    %3767 = vset.pattern.permute.xlu0 0
    %3768 = vperm.xlu0 %3767, %v3758
    %v3769 = vpop.permute.xlu0 %3768
    %3772 = vset.pattern.permute.xlu0 0
    %3773 = vperm.xlu0 %3772, %v3759
    %v3774 = vpop.permute.xlu0 %3773
    %3777 = vset.pattern.permute.xlu0 0
    %3778 = vperm.xlu0 %3777, %v3760
    %v3779 = vpop.permute.xlu0 %3778
    %3782 = vset.pattern.permute.xlu0 0
    %3783 = vperm.xlu0 %3782, %v3761
    %v3784 = vpop.permute.xlu0 %3783
    %3787 = vset.pattern.permute.xlu0 0
    %3788 = vperm.xlu0 %3787, %v3762
    %v3789 = vpop.permute.xlu0 %3788
    %3792 = vset.pattern.permute.xlu0 0
    %3793 = vperm.xlu0 %3792, %v3763
    %v3794 = vpop.permute.xlu0 %3793
    %3797 = vset.pattern.permute.xlu0 0
    %3798 = vperm.xlu0 %3797, %v3764
    %v3799 = vpop.permute.xlu0 %3798
    %3802 = vset.pattern.permute.xlu0 0
    %3803 = vperm.xlu0 %3802, %v3765
    %v3804 = vpop.permute.xlu0 %3803
    %v3806 = vmul.f32 %v3769, %v1201
    %v3807 = vmul.f32 %v3774, %v1202
    %v3808 = vmul.f32 %v3779, %v1203
    %v3809 = vmul.f32 %v3784, %v1204
    %v3810 = vmul.f32 %v3789, %v1205
    %v3811 = vmul.f32 %v3794, %v1206
    %v3812 = vmul.f32 %v3799, %v1207
    %v3813 = vmul.f32 %v3804, %v1208
    %v3814 = vsel %vm428, %v3806, 0.0
    %v3815 = vsel %vm428, %v3807, 0.0
    %v3816 = vadd.f32 %v3814, %v3815
    %v3817 = vsel %vm428, %v3808, 0.0
    %v3818 = vadd.f32 %v3816, %v3817
    %v3819 = vsel %vm428, %v3809, 0.0
    %v3820 = vadd.f32 %v3818, %v3819
    %v3821 = vsel %vm428, %v3810, 0.0
    %v3822 = vadd.f32 %v3820, %v3821
    %v3823 = vsel %vm428, %v3811, 0.0
    %v3824 = vadd.f32 %v3822, %v3823
    %v3825 = vsel %vm428, %v3812, 0.0
    %v3826 = vadd.f32 %v3824, %v3825
    %v3827 = vsel %vm428, %v3813, 0.0
    %v3828 = vadd.f32 %v3826, %v3827
    %v3830 = vsel %vm232, %v3828, 0
    %3832 = vmatprep.subr.mxu0 0.0
    %3833 = vmatpush1.msra.mxu0 %v1259
    %3834 = vmatprep.subr.mxu0 0.0
    %3835 = vmatpush1.msra.mxu0 %v1260
    %3836 = vmatprep.subr.mxu0 0.0
    %3837 = vmatpush1.msra.mxu0 %v1261
    %3838 = vmatprep.subr.mxu0 0.0
    %3839 = vmatpush1.msra.mxu0 %v1262
    %3840 = vmatprep.subr.mxu0 0.0
    %3841 = vmatpush1.msra.mxu0 0.0
    %3842 = vmatprep.subr.mxu0 0.0
    %3843 = vmatpush1.msra.mxu0 0.0
    %3844 = vmatprep.subr.mxu0 0.0
    %3845 = vmatpush1.msra.mxu0 0.0
    %3846 = vmatprep.subr.mxu0 0.0
    %3847 = vmatpush1.msra.mxu0 0.0
    %3848 = vmatprep.subr.mxu0 0.0
    %3849 = vmatpush1.msra.mxu0 0.0
    %3850 = vmatprep.subr.mxu0 0.0
    %3851 = vmatpush1.msra.mxu0 0.0
    %3852 = vmatprep.subr.mxu0 0.0
    %3853 = vmatpush1.msra.mxu0 0.0
    %3854 = vmatprep.subr.mxu0 0.0
    %3855 = vmatpush1.msra.mxu0 0.0
    %3856 = vmatprep.subr.mxu0 0.0
    %3857 = vmatpush1.msra.mxu0 0.0
    %3858 = vmatprep.subr.mxu0 0.0
    %3859 = vmatpush1.msra.mxu0 0.0
    %3860 = vmatprep.subr.mxu0 0.0
    %3861 = vmatpush1.msra.mxu0 0.0
    %3862 = vmatprep.subr.mxu0 0.0
    %3863 = vmatpush1.msra.mxu0 0.0
    %3864 = vmatprep.subr.mxu0 0.0
    %3865 = vmatpush1.msra.mxu0 0.0
    %3866 = vmatprep.subr.mxu0 0.0
    %3867 = vmatpush1.msra.mxu0 0.0
    %3868 = vmatprep.subr.mxu0 0.0
    %3869 = vmatpush1.msra.mxu0 0.0
    %3870 = vmatprep.subr.mxu0 0.0
    %3871 = vmatpush1.msra.mxu0 0.0
    %3872 = vmatprep.subr.mxu0 0.0
    %3873 = vmatpush1.msra.mxu0 0.0
    %3874 = vmatprep.subr.mxu0 0.0
    %3875 = vmatpush1.msra.mxu0 0.0
    %3876 = vmatprep.subr.mxu0 0.0
    %3877 = vmatpush1.msra.mxu0 0.0
    %3878 = vmatprep.subr.mxu0 0.0
    %3879 = vmatpush1.msra.mxu0 0.0
    %3880 = vmatprep.subr.mxu0 0.0
    %3881 = vmatpush1.msra.mxu0 0.0
    %3882 = vmatprep.subr.mxu0 0.0
    %3883 = vmatpush1.msra.mxu0 0.0
    %3884 = vmatprep.subr.mxu0 0.0
    %3885 = vmatpush1.msra.mxu0 0.0
    %3886 = vmatprep.subr.mxu0 0.0
    %3887 = vmatpush1.msra.mxu0 0.0
    %3888 = vmatprep.subr.mxu0 0.0
    %3889 = vmatpush1.msra.mxu0 0.0
    %3890 = vmatprep.subr.mxu0 0.0
    %3891 = vmatpush1.msra.mxu0 0.0
    %3892 = vmatprep.subr.mxu0 0.0
    %3893 = vmatpush1.msra.mxu0 0.0
    %3894 = vmatprep.subr.mxu0 0.0
    %3895 = vmatpush1.msra.mxu0 0.0
    %3896 = vmatprep.mubr.f32.mxu0 0.0
    %3897 = vmatmul.mubr.f32.gmra.mrb[0].mxu0 %v3830
    %v3898 = vpop.f32.mrb[0].mxu0
    %v3899 = vadd.f32 0.0, %v3898
    %v3900 = vpop.f32.mrb[0].mxu0
    %3901 = vdwg.mxu0
    %v3903 = vsel %vm232, %v3683, 0
    %3905 = vmatprep.subr.mxu0 0.0
    %3906 = vmatpush1.msra.mxu0 %v1255
    %3907 = vmatprep.subr.mxu0 0.0
    %3908 = vmatpush1.msra.mxu0 %v1256
    %3909 = vmatprep.subr.mxu0 0.0
    %3910 = vmatpush1.msra.mxu0 %v1257
    %3911 = vmatprep.subr.mxu0 0.0
    %3912 = vmatpush1.msra.mxu0 %v1258
    %3913 = vmatprep.subr.mxu0 0.0
    %3914 = vmatpush1.msra.mxu0 0.0
    %3915 = vmatprep.subr.mxu0 0.0
    %3916 = vmatpush1.msra.mxu0 0.0
    %3917 = vmatprep.subr.mxu0 0.0
    %3918 = vmatpush1.msra.mxu0 0.0
    %3919 = vmatprep.subr.mxu0 0.0
    %3920 = vmatpush1.msra.mxu0 0.0
    %3921 = vmatprep.subr.mxu0 0.0
    %3922 = vmatpush1.msra.mxu0 0.0
    %3923 = vmatprep.subr.mxu0 0.0
    %3924 = vmatpush1.msra.mxu0 0.0
    %3925 = vmatprep.subr.mxu0 0.0
    %3926 = vmatpush1.msra.mxu0 0.0
    %3927 = vmatprep.subr.mxu0 0.0
    %3928 = vmatpush1.msra.mxu0 0.0
    %3929 = vmatprep.subr.mxu0 0.0
    %3930 = vmatpush1.msra.mxu0 0.0
    %3931 = vmatprep.subr.mxu0 0.0
    %3932 = vmatpush1.msra.mxu0 0.0
    %3933 = vmatprep.subr.mxu0 0.0
    %3934 = vmatpush1.msra.mxu0 0.0
    %3935 = vmatprep.subr.mxu0 0.0
    %3936 = vmatpush1.msra.mxu0 0.0
    %3937 = vmatprep.subr.mxu0 0.0
    %3938 = vmatpush1.msra.mxu0 0.0
    %3939 = vmatprep.subr.mxu0 0.0
    %3940 = vmatpush1.msra.mxu0 0.0
    %3941 = vmatprep.subr.mxu0 0.0
    %3942 = vmatpush1.msra.mxu0 0.0
    %3943 = vmatprep.subr.mxu0 0.0
    %3944 = vmatpush1.msra.mxu0 0.0
    %3945 = vmatprep.subr.mxu0 0.0
    %3946 = vmatpush1.msra.mxu0 0.0
    %3947 = vmatprep.subr.mxu0 0.0
    %3948 = vmatpush1.msra.mxu0 0.0
    %3949 = vmatprep.subr.mxu0 0.0
    %3950 = vmatpush1.msra.mxu0 0.0
    %3951 = vmatprep.subr.mxu0 0.0
    %3952 = vmatpush1.msra.mxu0 0.0
    %3953 = vmatprep.subr.mxu0 0.0
    %3954 = vmatpush1.msra.mxu0 0.0
    %3955 = vmatprep.subr.mxu0 0.0
    %3956 = vmatpush1.msra.mxu0 0.0
    %3957 = vmatprep.subr.mxu0 0.0
    %3958 = vmatpush1.msra.mxu0 0.0
    %3959 = vmatprep.subr.mxu0 0.0
    %3960 = vmatpush1.msra.mxu0 0.0
    %3961 = vmatprep.subr.mxu0 0.0
    %3962 = vmatpush1.msra.mxu0 0.0
    %3963 = vmatprep.subr.mxu0 0.0
    %3964 = vmatpush1.msra.mxu0 0.0
    %3965 = vmatprep.subr.mxu0 0.0
    %3966 = vmatpush1.msra.mxu0 0.0
    %3967 = vmatprep.subr.mxu0 0.0
    %3968 = vmatpush1.msra.mxu0 0.0
    %3969 = vmatprep.mubr.f32.mxu0 0.0
    %3970 = vmatmul.mubr.f32.gmra.mrb[0].mxu0 %v3903
    %v3971 = vpop.f32.mrb[0].mxu0
    %v3972 = vadd.f32 %v3899, %v3971
    %v3973 = vpop.f32.mrb[0].mxu0
    %3974 = vdwg.mxu0
    %v3975 = vadd.f32 %v3972, %v1664
    %3976 = vmatprep.subr.mxu0 0.0
    %3977 = vmatpush1.msra.mxu0 %v1264
    %3978 = vmatprep.subr.mxu0 0.0
    %3979 = vmatpush1.msra.mxu0 %v1265
    %3980 = vmatprep.subr.mxu0 0.0
    %3981 = vmatpush1.msra.mxu0 %v1266
    %3982 = vmatprep.subr.mxu0 0.0
    %3983 = vmatpush1.msra.mxu0 %v1267
    %3984 = vmatprep.subr.mxu0 0.0
    %3985 = vmatpush1.msra.mxu0 0.0
    %3986 = vmatprep.subr.mxu0 0.0
    %3987 = vmatpush1.msra.mxu0 0.0
    %3988 = vmatprep.subr.mxu0 0.0
    %3989 = vmatpush1.msra.mxu0 0.0
    %3990 = vmatprep.subr.mxu0 0.0
    %3991 = vmatpush1.msra.mxu0 0.0
    %3992 = vmatprep.subr.mxu0 0.0
    %3993 = vmatpush1.msra.mxu0 0.0
    %3994 = vmatprep.subr.mxu0 0.0
    %3995 = vmatpush1.msra.mxu0 0.0
    %3996 = vmatprep.subr.mxu0 0.0
    %3997 = vmatpush1.msra.mxu0 0.0
    %3998 = vmatprep.subr.mxu0 0.0
    %3999 = vmatpush1.msra.mxu0 0.0
    %4000 = vmatprep.subr.mxu0 0.0
    %4001 = vmatpush1.msra.mxu0 0.0
    %4002 = vmatprep.subr.mxu0 0.0
    %4003 = vmatpush1.msra.mxu0 0.0
    %4004 = vmatprep.subr.mxu0 0.0
    %4005 = vmatpush1.msra.mxu0 0.0
    %4006 = vmatprep.subr.mxu0 0.0
    %4007 = vmatpush1.msra.mxu0 0.0
    %4008 = vmatprep.subr.mxu0 0.0
    %4009 = vmatpush1.msra.mxu0 0.0
    %4010 = vmatprep.subr.mxu0 0.0
    %4011 = vmatpush1.msra.mxu0 0.0
    %4012 = vmatprep.subr.mxu0 0.0
    %4013 = vmatpush1.msra.mxu0 0.0
    %4014 = vmatprep.subr.mxu0 0.0
    %4015 = vmatpush1.msra.mxu0 0.0
    %4016 = vmatprep.subr.mxu0 0.0
    %4017 = vmatpush1.msra.mxu0 0.0
    %4018 = vmatprep.subr.mxu0 0.0
    %4019 = vmatpush1.msra.mxu0 0.0
    %4020 = vmatprep.subr.mxu0 0.0
    %4021 = vmatpush1.msra.mxu0 0.0
    %4022 = vmatprep.subr.mxu0 0.0
    %4023 = vmatpush1.msra.mxu0 0.0
    %4024 = vmatprep.subr.mxu0 0.0
    %4025 = vmatpush1.msra.mxu0 0.0
    %4026 = vmatprep.subr.mxu0 0.0
    %4027 = vmatpush1.msra.mxu0 0.0
    %4028 = vmatprep.subr.mxu0 0.0
    %4029 = vmatpush1.msra.mxu0 0.0
    %4030 = vmatprep.subr.mxu0 0.0
    %4031 = vmatpush1.msra.mxu0 0.0
    %4032 = vmatprep.subr.mxu0 0.0
    %4033 = vmatpush1.msra.mxu0 0.0
    %4034 = vmatprep.subr.mxu0 0.0
    %4035 = vmatpush1.msra.mxu0 0.0
    %4036 = vmatprep.subr.mxu0 0.0
    %4037 = vmatpush1.msra.mxu0 0.0
    %4038 = vmatprep.subr.mxu0 0.0
    %4039 = vmatpush1.msra.mxu0 0.0
    %4040 = vmatprep.mubr.f32.mxu0 0.0
    %4041 = vmatmul.mubr.f32.gmra.mrb[0].mxu0 %v3502
    %v4042 = vpop.f32.mrb[0].mxu0
    %v4043 = vadd.f32 %v1671, %v4042
    %v4044 = vpop.f32.mrb[0].mxu0
    %4045 = vdwg.mxu0
    %v4046 = vadd.f32 %v3975, %v4043
    %v4047 = vxor.u32 %v4046, 2147483648
    %v4048 = vmul.f32 %v4047, 1.442695
    %v4049 = vpow.pop %v4048
    %v4050 = vadd.f32 %v4049, 1.0
    %v4051 = vrcp.pop %v4050
    %v4052 = vmul.f32 1.0, %v4051
    %4054 = vrot.lane.b32.xlu0 %v4043, 64
    %v4055 = vpop.permute.xlu0 %4054
    %v4057 = vmul.f32 %v4052, %v4055
    %4059 = vrot.lane.b32.xlu0 %v4057, 64
    %v4060 = vpop.permute.xlu0 %4059
    %v4062 = vadd.f32 %v3975, %v4060
    %v4063 = vtanh.pop %v4062
    %v4064 = vsub.f32 1.0, %v4052
    %4066 = vrot.lane.b32.xlu0 %v4063, 96
    %v4067 = vpop.permute.xlu0 %4066
    %v4069 = vmul.f32 %v4064, %v4067
    %v4070 = vmul.f32 %v4052, %v3498
    %v4071 = vadd.f32 %v4069, %v4070
    %4073 = vrot.lane.b32.xlu0 %v4071, 96
    %v4074 = vpop.permute.xlu0 %4073
    %v4075 = vsel %vm232, %v4074, 0
    %4077 = vmatprep.subr.mxu0 0.0
    %4078 = vmatpush1.msra.mxu0 %v1269
    %4079 = vmatprep.subr.mxu0 0.0
    %4080 = vmatpush1.msra.mxu0 %v1270
    %4081 = vmatprep.subr.mxu0 0.0
    %4082 = vmatpush1.msra.mxu0 %v1271
    %4083 = vmatprep.subr.mxu0 0.0
    %4084 = vmatpush1.msra.mxu0 %v1272
    %4085 = vmatprep.subr.mxu0 0.0
    %4086 = vmatpush1.msra.mxu0 0.0
    %4087 = vmatprep.subr.mxu0 0.0
    %4088 = vmatpush1.msra.mxu0 0.0
    %4089 = vmatprep.subr.mxu0 0.0
    %4090 = vmatpush1.msra.mxu0 0.0
    %4091 = vmatprep.subr.mxu0 0.0
    %4092 = vmatpush1.msra.mxu0 0.0
    %4093 = vmatprep.subr.mxu0 0.0
    %4094 = vmatpush1.msra.mxu0 0.0
    %4095 = vmatprep.subr.mxu0 0.0
    %4096 = vmatpush1.msra.mxu0 0.0
    %4097 = vmatprep.subr.mxu0 0.0
    %4098 = vmatpush1.msra.mxu0 0.0
    %4099 = vmatprep.subr.mxu0 0.0
    %4100 = vmatpush1.msra.mxu0 0.0
    %4101 = vmatprep.subr.mxu0 0.0
    %4102 = vmatpush1.msra.mxu0 0.0
    %4103 = vmatprep.subr.mxu0 0.0
    %4104 = vmatpush1.msra.mxu0 0.0
    %4105 = vmatprep.subr.mxu0 0.0
    %4106 = vmatpush1.msra.mxu0 0.0
    %4107 = vmatprep.subr.mxu0 0.0
    %4108 = vmatpush1.msra.mxu0 0.0
    %4109 = vmatprep.subr.mxu0 0.0
    %4110 = vmatpush1.msra.mxu0 0.0
    %4111 = vmatprep.subr.mxu0 0.0
    %4112 = vmatpush1.msra.mxu0 0.0
    %4113 = vmatprep.subr.mxu0 0.0
    %4114 = vmatpush1.msra.mxu0 0.0
    %4115 = vmatprep.subr.mxu0 0.0
    %4116 = vmatpush1.msra.mxu0 0.0
    %4117 = vmatprep.subr.mxu0 0.0
    %4118 = vmatpush1.msra.mxu0 0.0
    %4119 = vmatprep.subr.mxu0 0.0
    %4120 = vmatpush1.msra.mxu0 0.0
    %4121 = vmatprep.subr.mxu0 0.0
    %4122 = vmatpush1.msra.mxu0 0.0
    %4123 = vmatprep.subr.mxu0 0.0
    %4124 = vmatpush1.msra.mxu0 0.0
    %4125 = vmatprep.subr.mxu0 0.0
    %4126 = vmatpush1.msra.mxu0 0.0
    %4127 = vmatprep.subr.mxu0 0.0
    %4128 = vmatpush1.msra.mxu0 0.0
    %4129 = vmatprep.subr.mxu0 0.0
    %4130 = vmatpush1.msra.mxu0 0.0
    %4131 = vmatprep.subr.mxu0 0.0
    %4132 = vmatpush1.msra.mxu0 0.0
    %4133 = vmatprep.subr.mxu0 0.0
    %4134 = vmatpush1.msra.mxu0 0.0
    %4135 = vmatprep.subr.mxu0 0.0
    %4136 = vmatpush1.msra.mxu0 0.0
    %4137 = vmatprep.subr.mxu0 0.0
    %4138 = vmatpush1.msra.mxu0 0.0
    %4139 = vmatprep.subr.mxu0 0.0
    %4140 = vmatpush1.msra.mxu0 0.0
    %4141 = vmatprep.mubr.f32.mxu0 0.0
    %4142 = vmatmul.mubr.f32.gmra.mrb[0].mxu0 %v4075
    %v4143 = vpop.f32.mrb[0].mxu0
    %v4144 = vadd.f32 %v1779, %v4143
    %v4145 = vpop.f32.mrb[0].mxu0
    %4146 = vdwg.mxu0
    %v4147 = vsel %vm1856, %v4144, -inf
    %4148 = vmax.xlane.f32.xlu0 %v4147
    %v4149 = vpop.xlane.xlu0 %4148
    %v4150 = vsub.f32 %v4144, %v4149
    %v4151 = vmul.f32 %v4150, 1.442695
    %v4152 = vpow.pop %v4151
    %v4153 = vsel %vm1856, %v4152, 0.0
    %4154 = vadd.xlane.f32.xlu0 %v4153
    %v4155 = vpop.xlane.xlu0 %4154
    %v4156 = vlog2.pop %v4155
    %v4157 = vmul.f32 %v4156, 0.6931472
    %v4158 = vsub.f32 %v4150, %v4157
    %s4159 = scalar_lea.vmem [#allocation13], 8
    %4160 = vst [vmem:[%s4159] sm:$0x3] %v4158
    %v4161 = vsel %vm1856, %v4158, -inf
    %4162 = vmax.xlane.f32.xlu0 %v4161
    %v4163 = vpop.xlane.xlu0 %4162
    %vm4164 = vcmp.eq.f32.partialorder %v4158, %v4163
    %v4165 = vsel %vm4164, %v1275, 128
    %v4166 = vsel %vm1856, %v4165, 2147483647
    %v4167 = vand.u32 %v4166, 65535
    %v4168 = vshra.s32 %v4166, 16
    %v4169 = vcvt.s32.f32 %v4167
    %v4170 = vcvt.s32.f32 %v4168
    %4171 = vmin.xlane.f32.xlu0 %v4170
    %v4172 = vpop.xlane.xlu0 %4171
    %vm4173 = vcmp.eq.f32.partialorder %v4170, %v4172
    %v4174 = vsel %vm4173, %v4169, inf
    %4175 = vmin.xlane.f32.xlu0 %v4174
    %v4176 = vpop.xlane.xlu0 %4175
    %v4177 = vcvt.f32.s32 %v4176
    %v4178 = vcvt.f32.s32 %v4172
    %v4179 = vshll.u32 %v4178, 16
    %v4180 = vadd.s32 %v4179, %v4177
    %s4181 = scalar_lea.vmem %s19, 8
    %4182 = vst.msk [vmem:[%s4181] sm:$0x3] %vm1387, %v4180
    // Predicated region
    $region94: #{models_forward.1} parent=1 // pred_check
      _
    $region95: #{models_forward.1} parent=1 // pred_check_branch
      %4184 = sbr.rel (0) target = $region97
    $region96: #{models_forward.1} parent=1 // pred_region
      %s4186 = ssub.s32 160, 160
      %4187 = vsyncadd [#allocation6], %s4186
      %s4188 = sshll.u32 [#allocation13], 4
      %s4189 = int_to_ptr.vmem [resolvable:$true] %s4188
      %4194 = dma.vmem_to_hbm [thread:$0]  %s4189, 160, %s18, [#allocation6], 32, 32, 2
    $region97: #{models_forward.1} parent=1 // pred_fallthru
      _
    // Predicated region
    $region98: #{models_forward.1} parent=1 // pred_check
      _
    $region99: #{models_forward.1} parent=1 // pred_check_branch
      %4196 = sbr.rel (0) target = $region101
    $region100: #{models_forward.1} parent=1 // pred_region
      _
    $region101: #{models_forward.1} parent=1 // pred_fallthru
      _
    // Predicated region
    $region102: #{models_forward.1} parent=1 // pred_check
      _
    $region103: #{models_forward.1} parent=1 // pred_check_branch
      %4198 = sbr.rel (0) target = $region105
    $region104: #{models_forward.1} parent=1 // pred_region
      %4199 = dma.done [#allocation6], 160
    $region105: #{models_forward.1} parent=1 // pred_fallthru
      _
    // Predicated region
    $region106: #{models_forward.1} parent=1 // pred_check
      _
    $region107: #{models_forward.1} parent=1 // pred_check_branch
      %4201 = sbr.rel (0) target = $region109
    $region108: #{models_forward.1} parent=1 // pred_region
      _
    $region109: #{models_forward.1} parent=1 // pred_fallthru
      _
    %4202 = vsyncpa [#allocation5], 1
    %4203 = vsyncpa [#allocation8], 1
    %4204 = vsyncpa [#allocation11], 1
    %4205 = vsyncpa [#allocation6], 1

</llo_original>
